<compile_context>
chip_gen: v5e
topology: v5e:2x2
jax: 0.10.0
libtpu: 0.0.40
codegen_flags: <defaults>
</compile_context>

<pallas_src>
import math
import jax
import jax.numpy as jnp
from jax.experimental import pallas as pl
from jax.experimental.pallas import tpu as pltpu

EPS = 1e-5
NUM_GROUPS = 8
_Q_TILE_TARGET = 512      # max query rows whose (tq, HW) score tile is materialized at once


def _choose_q_tile(hw):
    """Query-tile size: full HW if small, else a nice divisor <= 512, else 512 with a
    clamped (overlapping) tail tile handled in-kernel.  Never degrades to tq=8 or tq=HW."""
    if hw <= _Q_TILE_TARGET:
        return hw
    for cand in (512, 448, 384, 320, 256, 192, 128, 64):
        if hw % cand == 0:
            return cand
    return _Q_TILE_TARGET


def _vmem_limit_bytes(HW, C, tq):
    """Working-set estimate with margin, clamped to ~85% of this generation's VMEM."""
    f32, bf16 = 4, 2
    io = 2 * 2 * HW * C * f32                               # x + out blocks, double-buffered
    weights = 2 * (4 * C * C * bf16 + C * C * f32 + 6 * C * f32)
    scratch = 3 * HW * C * bf16                             # q / kT / v bf16 scratch
    trans = HW * C * (f32 + bf16) + tq * HW * f32 + 2 * tq * C * f32
    est = int(1.4 * (io + weights + scratch + trans))
    try:
        phys = getattr(pltpu.get_tpu_info(), "vmem_capacity_bytes", 64 * 1024 * 1024)
    except Exception:
        phys = 64 * 1024 * 1024                             # conservative (v7x per-TC)
    ceiling = int(phys * 0.85)                              # headroom for Mosaic scratch
    return min(max(est, 32 * 1024 * 1024), ceiling)


def _make_attention_kernel(tq):
    def kernel(x_ref, gamma_ref, beta_ref, gavg_ref,
               wq_ref, bq_ref, wk_ref, bk_ref, wv_ref, bv_ref,
               wp_ref, bp_ref, o_ref, q_scr, kT_scr, v_scr):
        HW, C = q_scr.shape
        n_tiles = pl.cdiv(HW, tq)
        divisible = (HW % tq == 0)

        x = x_ref[0].astype(jnp.float32)                    # (HW, C)

        # ---- GroupNorm(8, C): stats via one (2,C)@(C,C) matmul, affine folded ----
        ch_sum = jnp.sum(x, axis=0, keepdims=True)          # (1, C)
        ch_sq = jnp.sum(x * x, axis=0, keepdims=True)       # (1, C)
        stats = jnp.concatenate([ch_sum, ch_sq], axis=0)    # (2, C)
        moments = jnp.dot(stats, gavg_ref[...], preferred_element_type=jnp.float32)
        mean_c = moments[0:1, :]
        var_c = moments[1:2, :] - mean_c * mean_c
        scale_c = jax.lax.rsqrt(var_c + EPS) * gamma_ref[...]     # (1, C)
        shift_c = beta_ref[...] - mean_c * scale_c                 # (1, C)
        h = (x * scale_c + shift_c).astype(jnp.bfloat16)           # single (HW,C) FMA pass

        # ---- QKV: three chunked bf16 MXU matmuls -> bf16 scratch (no (HW,3C) f32) ----
        q_scr[...] = (jnp.dot(h, wq_ref[...], preferred_element_type=jnp.float32)
                      + bq_ref[...]).astype(jnp.bfloat16)          # 1/sqrt(C) folded in wq/bq
        k_f32 = jnp.dot(h, wk_ref[...], preferred_element_type=jnp.float32) + bk_ref[...]
        kT_scr[...] = k_f32.T.astype(jnp.bfloat16)                 # hoisted XLU transpose
        v_scr[...] = (jnp.dot(h, wv_ref[...], preferred_element_type=jnp.float32)
                      + bv_ref[...]).astype(jnp.bfloat16)

        wp = wp_ref[...]                                           # (C, C) bf16
        bp = bp_ref[...]                                           # (1, C) f32

        # ---- attention, tiled over query rows; only a (tq, HW) score tile is live ----
        def tile_body(lo):
            qt = q_scr[pl.ds(lo, tq), :]                                        # (tq, C) bf16
            s = jnp.dot(qt, kT_scr[...], preferred_element_type=jnp.float32)    # (tq, HW) f32
            m = jnp.max(s, axis=-1, keepdims=True)
            p = jnp.exp(s - m)
            denom = jnp.sum(p, axis=-1, keepdims=True)                          # f32 accumulate
            pv = jnp.dot(p.astype(jnp.bfloat16), v_scr[...],
                         preferred_element_type=jnp.float32)                    # (tq, C) f32
            ot = pv * pl.reciprocal(denom, approx=True)       # denom applied post-PV (tq,C)
            ot = jnp.dot(ot.astype(jnp.bfloat16), wp, preferred_element_type=jnp.float32) + bp
            o_ref[0, pl.ds(lo, tq), :] = (ot + x_ref[0, pl.ds(lo, tq), :]).astype(o_ref.dtype)

        if n_tiles <= 2:
            # short trip count: static unroll with static slice starts
            for t in range(n_tiles):
                tile_body(min(t * tq, HW - tq))
        else:
            @pl.loop(0, n_tiles)
            def _(t):
                if divisible:
                    lo = pl.multiple_of(t * tq, tq)
                else:
                    lo = jnp.minimum(t * tq, HW - tq)         # clamp last tile (overlap rows)
                tile_body(lo)

        # TODO(synk): for very large HW*C (e.g. HW>=2048 at C=512 on v7x's 64 MiB VMEM) add a
        # flash-style key-tiled path (m/l/acc scratch, streamed k/v) instead of resident k/v.
        # TODO(synk): on single-TC chips (v5e/v6e) merge >=2 batch elements per grid step to
        # amortize per-step overhead; kept at 1/step so v7x megacore splits over batch.
    return kernel


def attention_block(x_nchw, params):
    """x_nchw: (B, C, H, W). Returns (B, C, H, W)."""
    B, C, H, W = x_nchw.shape
    assert C % NUM_GROUPS == 0
    HW = H * W
    tq = _choose_q_tile(HW)

    # NCHW -> (B, HW, C)   [layout glue outside the kernel]
    x = jnp.transpose(x_nchw.reshape(B, C, HW), (0, 2, 1))

    # (C, C) group-averaging matrix: 1/(HW*cg) where channels share a group, else 0.
    cg = C // NUM_GROUPS
    gid = jnp.arange(C) // cg
    gavg = (gid[:, None] == gid[None, :]).astype(jnp.float32) / float(HW * cg)

    scale = 1.0 / math.sqrt(C)
    # Conv2d weight (C_out, C_in, 1, 1) -> (C_in, C_out) matmul weight; fold the attention
    # scale into the q projection.  Separate q/k/v refs avoid lane-slicing a fused weight
    # (keeps the kernel correct/fast for any C; C multiple of 128 is still the fast path).
    wq = (params["wq"].reshape(C, C).T * scale).astype(jnp.bfloat16)
    wk = params["wk"].reshape(C, C).T.astype(jnp.bfloat16)
    wv = params["wv"].reshape(C, C).T.astype(jnp.bfloat16)
    wp = params["wp"].reshape(C, C).T.astype(jnp.bfloat16)
    bq = (params["bq"] * scale).reshape(1, C).astype(jnp.float32)
    bk = params["bk"].reshape(1, C).astype(jnp.float32)
    bv = params["bv"].reshape(1, C).astype(jnp.float32)
    bp = params["bp"].reshape(1, C).astype(jnp.float32)
    gamma = params["gamma"].reshape(1, C).astype(jnp.float32)
    beta = params["beta"].reshape(1, C).astype(jnp.float32)

    # Constant index_map blocks: Pallas does not re-DMA a block whose index is unchanged
    # across grid steps, so weights/biases/gavg are fetched once per call.
    def const(shape):
        return pl.BlockSpec(shape, lambda b: (0,) * len(shape))

    out = pl.pallas_call(
        _make_attention_kernel(tq),
        out_shape=jax.ShapeDtypeStruct((B, HW, C), x.dtype),
        grid_spec=pltpu.PrefetchScalarGridSpec(
            num_scalar_prefetch=0,
            grid=(B,),
            in_specs=[
                pl.BlockSpec((1, HW, C), lambda b: (b, 0, 0)),   # x
                const((1, C)),                                   # gamma
                const((1, C)),                                   # beta
                const((C, C)),                                   # group-averaging matrix (f32)
                const((C, C)), const((1, C)),                    # wq (bf16, scaled), bq
                const((C, C)), const((1, C)),                    # wk, bk
                const((C, C)), const((1, C)),                    # wv, bv
                const((C, C)), const((1, C)),                    # wp, bp
            ],
            out_specs=pl.BlockSpec((1, HW, C), lambda b: (b, 0, 0)),
            scratch_shapes=[
                pltpu.VMEM((HW, C), jnp.bfloat16),               # q
                pltpu.VMEM((C, HW), jnp.bfloat16),               # k^T (hoisted transpose)
                pltpu.VMEM((HW, C), jnp.bfloat16),               # v
            ],
        ),
        compiler_params=pltpu.CompilerParams(
            dimension_semantics=("parallel",),        # B >= 2 keeps both v7x TCs busy
            vmem_limit_bytes=_vmem_limit_bytes(HW, C, tq),
        ),
    )(x, gamma, beta, gavg, wq, bq, wk, bk, wv, bv, wp, bp)

    # (B, HW, C) -> NCHW
    return jnp.transpose(out, (0, 2, 1)).reshape(B, C, H, W)


def reference_attention_block(x_nchw, params):
    """Pure-JAX f32 reference mirroring the PyTorch forward exactly."""
    B, C, H, W = x_nchw.shape
    HW = H * W
    cg = C // NUM_GROUPS
    xg = x_nchw.reshape(B, NUM_GROUPS, cg, H, W)
    mean = jnp.mean(xg, axis=(2, 3, 4), keepdims=True)
    var = jnp.mean((xg - mean) ** 2, axis=(2, 3, 4), keepdims=True)
    hn = ((xg - mean) / jnp.sqrt(var + EPS)).reshape(B, C, H, W)
    hn = hn * params["gamma"].reshape(1, C, 1, 1) + params["beta"].reshape(1, C, 1, 1)

    def conv1x1(h, w, b):
        return jnp.einsum("oc,bchw->bohw", w.reshape(C, C), h) + b.reshape(1, C, 1, 1)

    q = conv1x1(hn, params["wq"], params["bq"]).reshape(B, C, HW).transpose(0, 2, 1)
    k = conv1x1(hn, params["wk"], params["bk"]).reshape(B, C, HW)
    v = conv1x1(hn, params["wv"], params["bv"]).reshape(B, C, HW).transpose(0, 2, 1)
    attn = jnp.einsum("bnc,bcm->bnm", q, k) / math.sqrt(C)
    attn = jax.nn.softmax(attn, axis=-1)
    out = jnp.einsum("bnm,bmc->bnc", attn, v).transpose(0, 2, 1).reshape(B, C, H, W)
    out = conv1x1(out, params["wp"], params["bp"])
    return out + x_nchw


if __name__ == "__main__":
    # Small but TPU-friendly shapes: C multiple of 128 (lane-dense output block),
    # HW = 256 (matmul M >= 256), B = 2 parallel grid steps.
    B, C, H, W = 2, 128, 16, 16
    key = jax.random.PRNGKey(0)
    keys = jax.random.split(key, 12)

    x = jax.random.normal(keys[0], (B, C, H, W), dtype=jnp.float32)
    params = {
        "gamma": 1.0 + 0.1 * jax.random.normal(keys[9], (C,), jnp.float32),
        "beta": 0.1 * jax.random.normal(keys[10], (C,), jnp.float32),
        "wq": jax.random.normal(keys[1], (C, C, 1, 1), jnp.float32) * (1.0 / math.sqrt(C)),
        "bq": jax.random.normal(keys[2], (C,), jnp.float32) * 0.02,
        "wk": jax.random.normal(keys[3], (C, C, 1, 1), jnp.float32) * (1.0 / math.sqrt(C)),
        "bk": jax.random.normal(keys[4], (C,), jnp.float32) * 0.02,
        "wv": jax.random.normal(keys[5], (C, C, 1, 1), jnp.float32) * (1.0 / math.sqrt(C)),
        "bv": jax.random.normal(keys[6], (C,), jnp.float32) * 0.02,
        "wp": jax.random.normal(keys[7], (C, C, 1, 1), jnp.float32) * (1.0 / math.sqrt(C)),
        "bp": jax.random.normal(keys[8], (C,), jnp.float32) * 0.02,
    }

    out = jax.block_until_ready(attention_block(x, params))
    ref = jax.block_until_ready(reference_attention_block(x, params))

    assert out.shape == (B, C, H, W), out.shape
    # bf16 MXU operands + approx reciprocal => compare with a relative-error criterion.
    rel_err = float(jnp.linalg.norm(out - ref) / jnp.linalg.norm(ref))
    assert rel_err < 2e-2, rel_err
    print("KERNEL_OK")
</pallas_src>

<mosaic_0001>
module attributes {stable_mosaic.version = 11 : i64} {
  func.func @kernel(%arg0: i32, %arg1: memref<1x256x128xf32, #tpu.memory_space<vmem>>, %arg2: memref<1x128xf32, #tpu.memory_space<vmem>>, %arg3: memref<1x128xf32, #tpu.memory_space<vmem>>, %arg4: memref<128x128xf32, #tpu.memory_space<vmem>>, %arg5: memref<128x128xbf16, #tpu.memory_space<vmem>>, %arg6: memref<1x128xf32, #tpu.memory_space<vmem>>, %arg7: memref<128x128xbf16, #tpu.memory_space<vmem>>, %arg8: memref<1x128xf32, #tpu.memory_space<vmem>>, %arg9: memref<128x128xbf16, #tpu.memory_space<vmem>>, %arg10: memref<1x128xf32, #tpu.memory_space<vmem>>, %arg11: memref<128x128xbf16, #tpu.memory_space<vmem>>, %arg12: memref<1x128xf32, #tpu.memory_space<vmem>>, %arg13: memref<1x256x128xf32, #tpu.memory_space<vmem>>, %arg14: memref<256x128xbf16, #tpu.memory_space<vmem>>, %arg15: memref<128x256xbf16, #tpu.memory_space<vmem>>, %arg16: memref<256x128xbf16, #tpu.memory_space<vmem>>) attributes {dimension_semantics = [#tpu.dimension_semantics<parallel>], iteration_bounds = array<i64: 2>, scalar_prefetch = 0 : i64, scratch_operands = 3 : i64, tpu.core_type = #tpu.core_type<tc>, window_params = [{transform_indices = @transform_0, window_bounds = array<i64: 1, 256, 128>}, {pipeline_mode = #tpu.pipeline_mode<synchronous>, transform_indices = @transform_1, window_bounds = array<i64: 1, 128>}, {pipeline_mode = #tpu.pipeline_mode<synchronous>, transform_indices = @transform_2, window_bounds = array<i64: 1, 128>}, {pipeline_mode = #tpu.pipeline_mode<synchronous>, transform_indices = @transform_3, window_bounds = array<i64: 128, 128>}, {pipeline_mode = #tpu.pipeline_mode<synchronous>, transform_indices = @transform_4, window_bounds = array<i64: 128, 128>}, {pipeline_mode = #tpu.pipeline_mode<synchronous>, transform_indices = @transform_5, window_bounds = array<i64: 1, 128>}, {pipeline_mode = #tpu.pipeline_mode<synchronous>, transform_indices = @transform_6, window_bounds = array<i64: 128, 128>}, {pipeline_mode = #tpu.pipeline_mode<synchronous>, transform_indices = @transform_7, window_bounds = array<i64: 1, 128>}, {pipeline_mode = #tpu.pipeline_mode<synchronous>, transform_indices = @transform_8, window_bounds = array<i64: 128, 128>}, {pipeline_mode = #tpu.pipeline_mode<synchronous>, transform_indices = @transform_9, window_bounds = array<i64: 1, 128>}, {pipeline_mode = #tpu.pipeline_mode<synchronous>, transform_indices = @transform_10, window_bounds = array<i64: 128, 128>}, {pipeline_mode = #tpu.pipeline_mode<synchronous>, transform_indices = @transform_11, window_bounds = array<i64: 1, 128>}, {transform_indices = @transform_12, window_bounds = array<i64: 1, 256, 128>}]} {
    %c0 = arith.constant 0 : index
    %c0_0 = arith.constant 0 : index
    %c0_1 = arith.constant 0 : index
    %0 = vector.load %arg1[%c0, %c0_0, %c0_1] : memref<1x256x128xf32, #tpu.memory_space<vmem>>, vector<1x256x128xf32>
    %1 = vector.shape_cast %0 : vector<1x256x128xf32> to vector<256x128xf32>
    %cst = arith.constant dense<0.000000e+00> : vector<128xf32>
    %2 = vector.multi_reduction <add>, %1, %cst [0] : vector<256x128xf32> to vector<128xf32>
    %3 = vector.shape_cast %2 : vector<128xf32> to vector<1x128xf32>
    %4 = arith.mulf %1, %1 : vector<256x128xf32>
    %cst_2 = arith.constant dense<0.000000e+00> : vector<128xf32>
    %5 = vector.multi_reduction <add>, %4, %cst_2 [0] : vector<256x128xf32> to vector<128xf32>
    %6 = vector.shape_cast %5 : vector<128xf32> to vector<1x128xf32>
    %7 = tpu.concatenate %3, %6 in 0 : vector<1x128xf32>, vector<1x128xf32> -> vector<2x128xf32>
    %c0_3 = arith.constant 0 : index
    %c0_4 = arith.constant 0 : index
    %8 = vector.load %arg4[%c0_3, %c0_4] : memref<128x128xf32, #tpu.memory_space<vmem>>, vector<128x128xf32>
    %cst_5 = arith.constant dense<0.000000e+00> : vector<2x128xf32>
    %9 = tpu.matmul %7, %8, %cst_5 {dimension_numbers = #tpu.dot_dimension_numbers<[1], [0], [0], [1], [0, 0, 1, 1], [], []>} : vector<2x128xf32>, vector<128x128xf32>, vector<2x128xf32> -> vector<2x128xf32>
    %10 = vector.extract_strided_slice %9 {offsets = [0, 0], sizes = [1, 128], strides = [1, 1]} : vector<2x128xf32> to vector<1x128xf32>
    %11 = vector.extract_strided_slice %9 {offsets = [1, 0], sizes = [1, 128], strides = [1, 1]} : vector<2x128xf32> to vector<1x128xf32>
    %12 = arith.mulf %10, %10 : vector<1x128xf32>
    %13 = arith.subf %11, %12 : vector<1x128xf32>
    %cst_6 = arith.constant 9.99999974E-6 : f32
    %14 = vector.broadcast %cst_6 : f32 to vector<1x128xf32>
    %15 = arith.addf %13, %14 : vector<1x128xf32>
    %16 = math.rsqrt %15 : vector<1x128xf32>
    %c0_7 = arith.constant 0 : index
    %c0_8 = arith.constant 0 : index
    %17 = vector.load %arg2[%c0_7, %c0_8] : memref<1x128xf32, #tpu.memory_space<vmem>>, vector<1x128xf32>
    %18 = arith.mulf %16, %17 : vector<1x128xf32>
    %c0_9 = arith.constant 0 : index
    %c0_10 = arith.constant 0 : index
    %19 = vector.load %arg3[%c0_9, %c0_10] : memref<1x128xf32, #tpu.memory_space<vmem>>, vector<1x128xf32>
    %20 = arith.mulf %10, %18 : vector<1x128xf32>
    %21 = arith.subf %19, %20 : vector<1x128xf32>
    %22 = vector.broadcast %18 : vector<1x128xf32> to vector<256x128xf32>
    %23 = arith.mulf %1, %22 : vector<256x128xf32>
    %24 = vector.broadcast %21 : vector<1x128xf32> to vector<256x128xf32>
    %25 = arith.addf %23, %24 : vector<256x128xf32>
    %26 = arith.truncf %25 : vector<256x128xf32> to vector<256x128xbf16>
    %c0_11 = arith.constant 0 : index
    %c0_12 = arith.constant 0 : index
    %27 = vector.load %arg5[%c0_11, %c0_12] : memref<128x128xbf16, #tpu.memory_space<vmem>>, vector<128x128xbf16>
    %cst_13 = arith.constant dense<0.000000e+00> : vector<256x128xf32>
    %28 = tpu.matmul %26, %27, %cst_13 {dimension_numbers = #tpu.dot_dimension_numbers<[1], [0], [0], [1], [0, 0, 1, 1], [], []>} : vector<256x128xbf16>, vector<128x128xbf16>, vector<256x128xf32> -> vector<256x128xf32>
    %c0_14 = arith.constant 0 : index
    %c0_15 = arith.constant 0 : index
    %29 = vector.load %arg6[%c0_14, %c0_15] : memref<1x128xf32, #tpu.memory_space<vmem>>, vector<1x128xf32>
    %30 = vector.broadcast %29 : vector<1x128xf32> to vector<256x128xf32>
    %31 = arith.addf %28, %30 : vector<256x128xf32>
    %32 = arith.truncf %31 : vector<256x128xf32> to vector<256x128xbf16>
    %c0_16 = arith.constant 0 : index
    %c0_17 = arith.constant 0 : index
    %33 = vector.load %arg14[%c0_16, %c0_17] : memref<256x128xbf16, #tpu.memory_space<vmem>>, vector<256x128xbf16>
    tpu.vector_store %arg14[%c0_16, %c0_17], %32 {strides = array<i32>} : memref<256x128xbf16, #tpu.memory_space<vmem>>, vector<256x128xbf16>,
    %c0_18 = arith.constant 0 : index
    %c0_19 = arith.constant 0 : index
    %34 = vector.load %arg7[%c0_18, %c0_19] : memref<128x128xbf16, #tpu.memory_space<vmem>>, vector<128x128xbf16>
    %cst_20 = arith.constant dense<0.000000e+00> : vector<256x128xf32>
    %35 = tpu.matmul %26, %34, %cst_20 {dimension_numbers = #tpu.dot_dimension_numbers<[1], [0], [0], [1], [0, 0, 1, 1], [], []>} : vector<256x128xbf16>, vector<128x128xbf16>, vector<256x128xf32> -> vector<256x128xf32>
    %c0_21 = arith.constant 0 : index
    %c0_22 = arith.constant 0 : index
    %36 = vector.load %arg8[%c0_21, %c0_22] : memref<1x128xf32, #tpu.memory_space<vmem>>, vector<1x128xf32>
    %37 = vector.broadcast %36 : vector<1x128xf32> to vector<256x128xf32>
    %38 = arith.addf %35, %37 : vector<256x128xf32>
    %39 = tpu.transpose %38, [1, 0] : vector<256x128xf32> -> vector<128x256xf32>
    %40 = arith.truncf %39 : vector<128x256xf32> to vector<128x256xbf16>
    %c0_23 = arith.constant 0 : index
    %c0_24 = arith.constant 0 : index
    %41 = vector.load %arg15[%c0_23, %c0_24] : memref<128x256xbf16, #tpu.memory_space<vmem>>, vector<128x256xbf16>
    tpu.vector_store %arg15[%c0_23, %c0_24], %40 {strides = array<i32>} : memref<128x256xbf16, #tpu.memory_space<vmem>>, vector<128x256xbf16>,
    %c0_25 = arith.constant 0 : index
    %c0_26 = arith.constant 0 : index
    %42 = vector.load %arg9[%c0_25, %c0_26] : memref<128x128xbf16, #tpu.memory_space<vmem>>, vector<128x128xbf16>
    %cst_27 = arith.constant dense<0.000000e+00> : vector<256x128xf32>
    %43 = tpu.matmul %26, %42, %cst_27 {dimension_numbers = #tpu.dot_dimension_numbers<[1], [0], [0], [1], [0, 0, 1, 1], [], []>} : vector<256x128xbf16>, vector<128x128xbf16>, vector<256x128xf32> -> vector<256x128xf32>
    %c0_28 = arith.constant 0 : index
    %c0_29 = arith.constant 0 : index
    %44 = vector.load %arg10[%c0_28, %c0_29] : memref<1x128xf32, #tpu.memory_space<vmem>>, vector<1x128xf32>
    %45 = vector.broadcast %44 : vector<1x128xf32> to vector<256x128xf32>
    %46 = arith.addf %43, %45 : vector<256x128xf32>
    %47 = arith.truncf %46 : vector<256x128xf32> to vector<256x128xbf16>
    %c0_30 = arith.constant 0 : index
    %c0_31 = arith.constant 0 : index
    %48 = vector.load %arg16[%c0_30, %c0_31] : memref<256x128xbf16, #tpu.memory_space<vmem>>, vector<256x128xbf16>
    tpu.vector_store %arg16[%c0_30, %c0_31], %47 {strides = array<i32>} : memref<256x128xbf16, #tpu.memory_space<vmem>>, vector<256x128xbf16>,
    %c0_32 = arith.constant 0 : index
    %c0_33 = arith.constant 0 : index
    %49 = vector.load %arg11[%c0_32, %c0_33] : memref<128x128xbf16, #tpu.memory_space<vmem>>, vector<128x128xbf16>
    %c0_34 = arith.constant 0 : index
    %c0_35 = arith.constant 0 : index
    %50 = vector.load %arg12[%c0_34, %c0_35] : memref<1x128xf32, #tpu.memory_space<vmem>>, vector<1x128xf32>
    %c0_36 = arith.constant 0 : index
    %c0_37 = arith.constant 0 : index
    %51 = vector.load %arg14[%c0_36, %c0_37] : memref<256x128xbf16, #tpu.memory_space<vmem>>, vector<256x128xbf16>
    %c0_38 = arith.constant 0 : index
    %c0_39 = arith.constant 0 : index
    %52 = vector.load %arg15[%c0_38, %c0_39] : memref<128x256xbf16, #tpu.memory_space<vmem>>, vector<128x256xbf16>
    %cst_40 = arith.constant dense<0.000000e+00> : vector<256x256xf32>
    %53 = tpu.matmul %51, %52, %cst_40 {dimension_numbers = #tpu.dot_dimension_numbers<[1], [0], [0], [1], [0, 0, 1, 1], [], []>} : vector<256x128xbf16>, vector<128x256xbf16>, vector<256x256xf32> -> vector<256x256xf32>
    %cst_41 = arith.constant dense<0xFF800000> : vector<256xf32>
    %54 = vector.multi_reduction <maximumf>, %53, %cst_41 [1] : vector<256x256xf32> to vector<256xf32>
    %55 = vector.shape_cast %54 : vector<256xf32> to vector<256x1xf32>
    %56 = vector.broadcast %55 : vector<256x1xf32> to vector<256x256xf32>
    %57 = arith.subf %53, %56 : vector<256x256xf32>
    %58 = math.exp %57 : vector<256x256xf32>
    %cst_42 = arith.constant dense<0.000000e+00> : vector<256xf32>
    %59 = vector.multi_reduction <add>, %58, %cst_42 [1] : vector<256x256xf32> to vector<256xf32>
    %60 = vector.shape_cast %59 : vector<256xf32> to vector<256x1xf32>
    %61 = arith.truncf %58 : vector<256x256xf32> to vector<256x256xbf16>
    %c0_43 = arith.constant 0 : index
    %c0_44 = arith.constant 0 : index
    %62 = vector.load %arg16[%c0_43, %c0_44] : memref<256x128xbf16, #tpu.memory_space<vmem>>, vector<256x128xbf16>
    %cst_45 = arith.constant dense<0.000000e+00> : vector<256x128xf32>
    %63 = tpu.matmul %61, %62, %cst_45 {dimension_numbers = #tpu.dot_dimension_numbers<[1], [0], [0], [1], [0, 0, 1, 1], [], []>} : vector<256x256xbf16>, vector<256x128xbf16>, vector<256x128xf32> -> vector<256x128xf32>
    %64 = tpu.reciprocal %60 {approx = true} : vector<256x1xf32> -> vector<256x1xf32>
    %65 = vector.broadcast %64 : vector<256x1xf32> to vector<256x128xf32>
    %66 = arith.mulf %63, %65 : vector<256x128xf32>
    %67 = arith.truncf %66 : vector<256x128xf32> to vector<256x128xbf16>
    %cst_46 = arith.constant dense<0.000000e+00> : vector<256x128xf32>
    %68 = tpu.matmul %67, %49, %cst_46 {dimension_numbers = #tpu.dot_dimension_numbers<[1], [0], [0], [1], [0, 0, 1, 1], [], []>} : vector<256x128xbf16>, vector<128x128xbf16>, vector<256x128xf32> -> vector<256x128xf32>
    %69 = vector.broadcast %50 : vector<1x128xf32> to vector<256x128xf32>
    %70 = arith.addf %68, %69 : vector<256x128xf32>
    %c0_47 = arith.constant 0 : index
    %c0_48 = arith.constant 0 : index
    %c0_49 = arith.constant 0 : index
    %71 = vector.load %arg1[%c0_47, %c0_48, %c0_49] : memref<1x256x128xf32, #tpu.memory_space<vmem>>, vector<1x256x128xf32>
    %72 = vector.shape_cast %71 : vector<1x256x128xf32> to vector<256x128xf32>
    %73 = arith.addf %70, %72 : vector<256x128xf32>
    %c0_50 = arith.constant 0 : index
    %c0_51 = arith.constant 0 : index
    %c0_52 = arith.constant 0 : index
    %74 = vector.load %arg13[%c0_50, %c0_51, %c0_52] : memref<1x256x128xf32, #tpu.memory_space<vmem>>, vector<1x256x128xf32>
    %75 = vector.shape_cast %74 : vector<1x256x128xf32> to vector<256x128xf32>
    %76 = vector.shape_cast %73 : vector<256x128xf32> to vector<1x256x128xf32>
    tpu.vector_store %arg13[%c0_50, %c0_51, %c0_52], %76 {strides = array<i32>} : memref<1x256x128xf32, #tpu.memory_space<vmem>>, vector<1x256x128xf32>,
    return
  }
  func.func @transform_0(%arg0: i32) -> (i32, i32, i32) {
    %c0_i32 = arith.constant 0 : i32
    %c0_i32_0 = arith.constant 0 : i32
    %c0_i32_1 = arith.constant 0 : i32
    return %arg0, %c0_i32, %c0_i32_0 : i32, i32, i32
  }
  func.func @transform_1(%arg0: i32) -> (i32, i32) {
    %c0_i32 = arith.constant 0 : i32
    %c0_i32_0 = arith.constant 0 : i32
    %c0_i32_1 = arith.constant 0 : i32
    return %c0_i32, %c0_i32_0 : i32, i32
  }
  func.func @transform_2(%arg0: i32) -> (i32, i32) {
    %c0_i32 = arith.constant 0 : i32
    %c0_i32_0 = arith.constant 0 : i32
    %c0_i32_1 = arith.constant 0 : i32
    return %c0_i32, %c0_i32_0 : i32, i32
  }
  func.func @transform_3(%arg0: i32) -> (i32, i32) {
    %c0_i32 = arith.constant 0 : i32
    %c0_i32_0 = arith.constant 0 : i32
    %c0_i32_1 = arith.constant 0 : i32
    return %c0_i32, %c0_i32_0 : i32, i32
  }
  func.func @transform_4(%arg0: i32) -> (i32, i32) {
    %c0_i32 = arith.constant 0 : i32
    %c0_i32_0 = arith.constant 0 : i32
    %c0_i32_1 = arith.constant 0 : i32
    return %c0_i32, %c0_i32_0 : i32, i32
  }
  func.func @transform_5(%arg0: i32) -> (i32, i32) {
    %c0_i32 = arith.constant 0 : i32
    %c0_i32_0 = arith.constant 0 : i32
    %c0_i32_1 = arith.constant 0 : i32
    return %c0_i32, %c0_i32_0 : i32, i32
  }
  func.func @transform_6(%arg0: i32) -> (i32, i32) {
    %c0_i32 = arith.constant 0 : i32
    %c0_i32_0 = arith.constant 0 : i32
    %c0_i32_1 = arith.constant 0 : i32
    return %c0_i32, %c0_i32_0 : i32, i32
  }
  func.func @transform_7(%arg0: i32) -> (i32, i32) {
    %c0_i32 = arith.constant 0 : i32
    %c0_i32_0 = arith.constant 0 : i32
    %c0_i32_1 = arith.constant 0 : i32
    return %c0_i32, %c0_i32_0 : i32, i32
  }
  func.func @transform_8(%arg0: i32) -> (i32, i32) {
    %c0_i32 = arith.constant 0 : i32
    %c0_i32_0 = arith.constant 0 : i32
    %c0_i32_1 = arith.constant 0 : i32
    return %c0_i32, %c0_i32_0 : i32, i32
  }
  func.func @transform_9(%arg0: i32) -> (i32, i32) {
    %c0_i32 = arith.constant 0 : i32
    %c0_i32_0 = arith.constant 0 : i32
    %c0_i32_1 = arith.constant 0 : i32
    return %c0_i32, %c0_i32_0 : i32, i32
  }
  func.func @transform_10(%arg0: i32) -> (i32, i32) {
    %c0_i32 = arith.constant 0 : i32
    %c0_i32_0 = arith.constant 0 : i32
    %c0_i32_1 = arith.constant 0 : i32
    return %c0_i32, %c0_i32_0 : i32, i32
  }
  func.func @transform_11(%arg0: i32) -> (i32, i32) {
    %c0_i32 = arith.constant 0 : i32
    %c0_i32_0 = arith.constant 0 : i32
    %c0_i32_1 = arith.constant 0 : i32
    return %c0_i32, %c0_i32_0 : i32, i32
  }
  func.func @transform_12(%arg0: i32) -> (i32, i32, i32) {
    %c0_i32 = arith.constant 0 : i32
    %c0_i32_0 = arith.constant 0 : i32
    %c0_i32_1 = arith.constant 0 : i32
    return %arg0, %c0_i32, %c0_i32_0 : i32, i32, i32
  }
}

</mosaic_0001>

<llo_original>
// kernel: tpu_custom_call.1
$region0: #{tpu_custom_call.1}
  #allocation0 [shape = 'u32[]', space=smem, size = 0x4, offset = 0x4, fixed_abs, tag = 'smem constant byte address 0x4 - core index']
  #allocation1 [shape = 'u32[72,128]{1,0:T(1,128)}', space=vmem, size = 0x9000, scoped, tag = 'internal scratch']
  #allocation2 [shape = 'bf16[256,128]{1,0:T(8,128)(2,1)}', space=vmem, size = 0x10000, scoped, tag = 'scratch operand']
  #allocation3 [shape = 'bf16[128,256]{1,0:T(8,128)(2,1)}', space=vmem, size = 0x10000, scoped, tag = 'scratch operand']
  #allocation4 [shape = 'bf16[256,128]{1,0:T(8,128)(2,1)}', space=vmem, size = 0x10000, scoped, tag = 'scratch operand']
  %s0 = inlined_call_operand.hbm [shape: f32[2,256,128], index: 0, kind: input, shape index: {}]
  %s1 = inlined_call_operand.hbm [shape: f32[1,128], index: 1, kind: input, shape index: {}]
  %s2 = inlined_call_operand.vmem [shape: f32[1,128], index: 2, kind: input, shape index: {}]
  %s3 = inlined_call_operand.hbm [shape: f32[128,128], index: 3, kind: input, shape index: {}]
  %s4 = inlined_call_operand.hbm [shape: bf16[128,128], index: 4, kind: input, shape index: {}]
  %s5 = inlined_call_operand.vmem [shape: f32[1,128], index: 5, kind: input, shape index: {}]
  %s6 = inlined_call_operand.hbm [shape: bf16[128,128], index: 6, kind: input, shape index: {}]
  %s7 = inlined_call_operand.vmem [shape: f32[1,128], index: 7, kind: input, shape index: {}]
  %s8 = inlined_call_operand.hbm [shape: bf16[128,128], index: 8, kind: input, shape index: {}]
  %s9 = inlined_call_operand.vmem [shape: f32[1,128], index: 9, kind: input, shape index: {}]
  %s10 = inlined_call_operand.hbm [shape: bf16[128,128], index: 10, kind: input, shape index: {}]
  %s11 = inlined_call_operand.vmem [shape: f32[1,128], index: 11, kind: input, shape index: {}]
  %s12 = inlined_call_operand.hbm [shape: f32[2,256,128], index: 12, kind: output, shape index: {}]
  %s13 = sld [smem:[#allocation0]]
  $region109: #{tpu_custom_call.1} parent=0
    _
  %s15 = ssub.s32 1, %s13
  %s16 = scalar_select 0, %s15, %s13
  $region1: #{tpu_custom_call.1} parent=0
    #allocation5 [shape = 'u8[262144]{0}', space=vmem, size = 0x40000, scoped, tag = 'input window, operand 0']
    #allocation6 [shape = 's32[2]{0}', space=sflag, size = 0x8, scoped, tag = 'scoped memory for tpu_custom_call.1']
    #allocation7 [shape = 's32[2]{0}', space=sflag, size = 0x8, scoped, tag = 'scoped memory for tpu_custom_call.1']
    #allocation8 [shape = 'u8[512]{0}', space=vmem, size = 0x400, scoped, tag = 'input window, operand 1, single buffered']
    #allocation9 [shape = 's32[1]{0}', space=sflag, size = 0x4, scoped, tag = 'scoped memory for tpu_custom_call.1']
    #allocation10 [shape = 'u8[65536]{0}', space=vmem, size = 0x10000, scoped, tag = 'input window, operand 3, single buffered']
    #allocation11 [shape = 'u8[32768]{0}', space=vmem, size = 0x8000, scoped, tag = 'input window, operand 4, single buffered']
    #allocation12 [shape = 's32[1]{0}', space=sflag, size = 0x4, scoped, tag = 'scoped memory for tpu_custom_call.1']
    #allocation13 [shape = 'u8[32768]{0}', space=vmem, size = 0x8000, scoped, tag = 'input window, operand 6, single buffered']
    #allocation14 [shape = 'u8[32768]{0}', space=vmem, size = 0x8000, scoped, tag = 'input window, operand 8, single buffered']
    #allocation15 [shape = 's32[1]{0}', space=sflag, size = 0x4, scoped, tag = 'scoped memory for tpu_custom_call.1']
    #allocation16 [shape = 'u8[32768]{0}', space=vmem, size = 0x8000, scoped, tag = 'input window, operand 10, single buffered']
    #allocation17 [shape = 'u8[262144]{0}', space=vmem, size = 0x40000, scoped, tag = 'output window, operand 0']
    %17 = vsyncpa [#allocation6], 0
    %s18 = scalar_lea.sflag [#allocation6], 1
    %19 = vsyncpa %s18, 0
    %20 = vsyncpa [#allocation9], 0
    %21 = vsyncpa [#allocation12], 0
    %22 = vsyncpa [#allocation15], 0
    %23 = vsyncpa [#allocation7], 0
    %s24 = scalar_lea.sflag [#allocation7], 1
    %25 = vsyncpa %s24, 0
    loop: start=0, step=1, limit=4
    $region2: #{tpu_custom_call.1} parent=1 // loop_pre_header
      _
    $region3: #{tpu_custom_call.1} parent=1 // loop_header
      %s27 = sphi 0, %s31
      %p28 = scmp.ge.s32.totalorder %s27, 4
      %s37 = sphi 0, %s39
      %s40 = sphi 0, %s37
      %s41 = sphi 0, %s40
      %s57 = sphi 0, %s41
      %s61 = sphi 0, %s61
      %s63 = sphi 0, %s61
      %s64 = sphi 0, %s63
      %s78 = sphi 0, %s64
      %s82 = sphi 0, %s82
      %s84 = sphi 0, %s82
      %s85 = sphi 0, %s84
      %s99 = sphi 0, %s85
      %s103 = sphi 0, %s103
      %s105 = sphi 0, %s103
      %s106 = sphi 0, %s105
      %s120 = sphi 0, %s106
      %s124 = sphi 0, %s124
      %s126 = sphi 0, %s124
      %s127 = sphi 0, %s126
      %s141 = sphi 0, %s127
      %s145 = sphi 0, %s145
      %s147 = sphi 0, %s145
      %s148 = sphi 0, %s147
      %s162 = sphi 0, %s148
      %s166 = sphi 0, %s166
      %s168 = sphi 0, %s166
      %s169 = sphi 0, %s168
      %s183 = sphi 0, %s169
      %s187 = sphi 0, %s187
      %s189 = sphi 0, %s187
      %s190 = sphi 0, %s189
      %s204 = sphi 0, %s190
      %s208 = sphi 0, %s208
      %s210 = sphi 0, %s208
      %s211 = sphi 0, %s210
      %s225 = sphi 0, %s211
      %s229 = sphi 0, %s229
      %s231 = sphi 0, %s229
      %s232 = sphi 0, %s231
      %s246 = sphi 0, %s232
      %s250 = sphi 0, %s250
      %s252 = sphi 0, %s250
      %s253 = sphi 0, %s252
      %s267 = sphi 0, %s253
      %s271 = sphi 0, %s271
      %s273 = sphi 0, %s271
      %s274 = sphi 0, %s273
      %s288 = sphi 0, %s274
      %s294 = sphi 0, %s296
      %s297 = sphi 0, %s294
      %s298 = sphi 0, %s297
      %s314 = sphi 0, %s298
    $region4: #{tpu_custom_call.1} parent=1 // loop_header_branch
      %30 = sbr.rel (%p28) target = $region8
    $region5: #{tpu_custom_call.1} parent=1 // loop_body
      %s32 = ssub.s32 %s27, 1
      %s33 = ssub.s32 %s27, 2
      %s34 = sadd.s32 %s27, 1
      %s35 = ssub.s32 %s27, %s34
      %p36 = scmp.eq.s32.totalorder %s35, 0
      %s38 = sadd.s32 %s37, 1
      %s39 = scalar_select %p36, %s37, %s38
      %p42 = pneg %p36
      %p43 = scmp.eq.s32.totalorder %s27, 1
      %p44 = por %p42, %p43
      %p45 = scmp.ne.s32.totalorder %s37, %s40
      %p46 = scmp.eq.s32.totalorder %s27, 0
      %p47 = por %p45, %p46
      %p48 = scmp.ne.s32.totalorder %s37, %s40
      %p49 = scmp.eq.s32.totalorder %s32, 1
      %p50 = por %p48, %p49
      %p51 = scmp.ne.s32.totalorder %s40, %s41
      %p52 = scmp.eq.s32.totalorder %s32, 0
      %p53 = por %p51, %p52
      %p54 = scmp.ne.s32.totalorder %s40, %s41
      %p55 = scmp.eq.s32.totalorder %s33, 1
      %p56 = por %p54, %p55
      %p58 = scmp.ne.s32.totalorder %s41, %s57
      %p59 = scmp.eq.s32.totalorder %s33, 0
      %p60 = por %p58, %p59
      %s62 = sadd.s32 %s61, 1
      %p65 = scmp.eq.s32.totalorder %s27, 1
      %p66 = scmp.ne.s32.totalorder %s61, %s63
      %p67 = scmp.eq.s32.totalorder %s27, 0
      %p68 = por %p66, %p67
      %p69 = scmp.ne.s32.totalorder %s61, %s63
      %p70 = scmp.eq.s32.totalorder %s32, 1
      %p71 = por %p69, %p70
      %p72 = scmp.ne.s32.totalorder %s63, %s64
      %p73 = scmp.eq.s32.totalorder %s32, 0
      %p74 = por %p72, %p73
      %p75 = scmp.ne.s32.totalorder %s63, %s64
      %p76 = scmp.eq.s32.totalorder %s33, 1
      %p77 = por %p75, %p76
      %p79 = scmp.ne.s32.totalorder %s64, %s78
      %p80 = scmp.eq.s32.totalorder %s33, 0
      %p81 = por %p79, %p80
      %s83 = sadd.s32 %s82, 1
      %p86 = scmp.eq.s32.totalorder %s27, 1
      %p87 = scmp.ne.s32.totalorder %s82, %s84
      %p88 = scmp.eq.s32.totalorder %s27, 0
      %p89 = por %p87, %p88
      %p90 = scmp.ne.s32.totalorder %s82, %s84
      %p91 = scmp.eq.s32.totalorder %s32, 1
      %p92 = por %p90, %p91
      %p93 = scmp.ne.s32.totalorder %s84, %s85
      %p94 = scmp.eq.s32.totalorder %s32, 0
      %p95 = por %p93, %p94
      %p96 = scmp.ne.s32.totalorder %s84, %s85
      %p97 = scmp.eq.s32.totalorder %s33, 1
      %p98 = por %p96, %p97
      %p100 = scmp.ne.s32.totalorder %s85, %s99
      %p101 = scmp.eq.s32.totalorder %s33, 0
      %p102 = por %p100, %p101
      %s104 = sadd.s32 %s103, 1
      %p107 = scmp.eq.s32.totalorder %s27, 1
      %p108 = scmp.ne.s32.totalorder %s103, %s105
      %p109 = scmp.eq.s32.totalorder %s27, 0
      %p110 = por %p108, %p109
      %p111 = scmp.ne.s32.totalorder %s103, %s105
      %p112 = scmp.eq.s32.totalorder %s32, 1
      %p113 = por %p111, %p112
      %p114 = scmp.ne.s32.totalorder %s105, %s106
      %p115 = scmp.eq.s32.totalorder %s32, 0
      %p116 = por %p114, %p115
      %p117 = scmp.ne.s32.totalorder %s105, %s106
      %p118 = scmp.eq.s32.totalorder %s33, 1
      %p119 = por %p117, %p118
      %p121 = scmp.ne.s32.totalorder %s106, %s120
      %p122 = scmp.eq.s32.totalorder %s33, 0
      %p123 = por %p121, %p122
      %s125 = sadd.s32 %s124, 1
      %p128 = scmp.eq.s32.totalorder %s27, 1
      %p129 = scmp.ne.s32.totalorder %s124, %s126
      %p130 = scmp.eq.s32.totalorder %s27, 0
      %p131 = por %p129, %p130
      %p132 = scmp.ne.s32.totalorder %s124, %s126
      %p133 = scmp.eq.s32.totalorder %s32, 1
      %p134 = por %p132, %p133
      %p135 = scmp.ne.s32.totalorder %s126, %s127
      %p136 = scmp.eq.s32.totalorder %s32, 0
      %p137 = por %p135, %p136
      %p138 = scmp.ne.s32.totalorder %s126, %s127
      %p139 = scmp.eq.s32.totalorder %s33, 1
      %p140 = por %p138, %p139
      %p142 = scmp.ne.s32.totalorder %s127, %s141
      %p143 = scmp.eq.s32.totalorder %s33, 0
      %p144 = por %p142, %p143
      %s146 = sadd.s32 %s145, 1
      %p149 = scmp.eq.s32.totalorder %s27, 1
      %p150 = scmp.ne.s32.totalorder %s145, %s147
      %p151 = scmp.eq.s32.totalorder %s27, 0
      %p152 = por %p150, %p151
      %p153 = scmp.ne.s32.totalorder %s145, %s147
      %p154 = scmp.eq.s32.totalorder %s32, 1
      %p155 = por %p153, %p154
      %p156 = scmp.ne.s32.totalorder %s147, %s148
      %p157 = scmp.eq.s32.totalorder %s32, 0
      %p158 = por %p156, %p157
      %p159 = scmp.ne.s32.totalorder %s147, %s148
      %p160 = scmp.eq.s32.totalorder %s33, 1
      %p161 = por %p159, %p160
      %p163 = scmp.ne.s32.totalorder %s148, %s162
      %p164 = scmp.eq.s32.totalorder %s33, 0
      %p165 = por %p163, %p164
      %s167 = sadd.s32 %s166, 1
      %p170 = scmp.eq.s32.totalorder %s27, 1
      %p171 = scmp.ne.s32.totalorder %s166, %s168
      %p172 = scmp.eq.s32.totalorder %s27, 0
      %p173 = por %p171, %p172
      %p174 = scmp.ne.s32.totalorder %s166, %s168
      %p175 = scmp.eq.s32.totalorder %s32, 1
      %p176 = por %p174, %p175
      %p177 = scmp.ne.s32.totalorder %s168, %s169
      %p178 = scmp.eq.s32.totalorder %s32, 0
      %p179 = por %p177, %p178
      %p180 = scmp.ne.s32.totalorder %s168, %s169
      %p181 = scmp.eq.s32.totalorder %s33, 1
      %p182 = por %p180, %p181
      %p184 = scmp.ne.s32.totalorder %s169, %s183
      %p185 = scmp.eq.s32.totalorder %s33, 0
      %p186 = por %p184, %p185
      %s188 = sadd.s32 %s187, 1
      %p191 = scmp.eq.s32.totalorder %s27, 1
      %p192 = scmp.ne.s32.totalorder %s187, %s189
      %p193 = scmp.eq.s32.totalorder %s27, 0
      %p194 = por %p192, %p193
      %p195 = scmp.ne.s32.totalorder %s187, %s189
      %p196 = scmp.eq.s32.totalorder %s32, 1
      %p197 = por %p195, %p196
      %p198 = scmp.ne.s32.totalorder %s189, %s190
      %p199 = scmp.eq.s32.totalorder %s32, 0
      %p200 = por %p198, %p199
      %p201 = scmp.ne.s32.totalorder %s189, %s190
      %p202 = scmp.eq.s32.totalorder %s33, 1
      %p203 = por %p201, %p202
      %p205 = scmp.ne.s32.totalorder %s190, %s204
      %p206 = scmp.eq.s32.totalorder %s33, 0
      %p207 = por %p205, %p206
      %s209 = sadd.s32 %s208, 1
      %p212 = scmp.eq.s32.totalorder %s27, 1
      %p213 = scmp.ne.s32.totalorder %s208, %s210
      %p214 = scmp.eq.s32.totalorder %s27, 0
      %p215 = por %p213, %p214
      %p216 = scmp.ne.s32.totalorder %s208, %s210
      %p217 = scmp.eq.s32.totalorder %s32, 1
      %p218 = por %p216, %p217
      %p219 = scmp.ne.s32.totalorder %s210, %s211
      %p220 = scmp.eq.s32.totalorder %s32, 0
      %p221 = por %p219, %p220
      %p222 = scmp.ne.s32.totalorder %s210, %s211
      %p223 = scmp.eq.s32.totalorder %s33, 1
      %p224 = por %p222, %p223
      %p226 = scmp.ne.s32.totalorder %s211, %s225
      %p227 = scmp.eq.s32.totalorder %s33, 0
      %p228 = por %p226, %p227
      %s230 = sadd.s32 %s229, 1
      %p233 = scmp.eq.s32.totalorder %s27, 1
      %p234 = scmp.ne.s32.totalorder %s229, %s231
      %p235 = scmp.eq.s32.totalorder %s27, 0
      %p236 = por %p234, %p235
      %p237 = scmp.ne.s32.totalorder %s229, %s231
      %p238 = scmp.eq.s32.totalorder %s32, 1
      %p239 = por %p237, %p238
      %p240 = scmp.ne.s32.totalorder %s231, %s232
      %p241 = scmp.eq.s32.totalorder %s32, 0
      %p242 = por %p240, %p241
      %p243 = scmp.ne.s32.totalorder %s231, %s232
      %p244 = scmp.eq.s32.totalorder %s33, 1
      %p245 = por %p243, %p244
      %p247 = scmp.ne.s32.totalorder %s232, %s246
      %p248 = scmp.eq.s32.totalorder %s33, 0
      %p249 = por %p247, %p248
      %s251 = sadd.s32 %s250, 1
      %p254 = scmp.eq.s32.totalorder %s27, 1
      %p255 = scmp.ne.s32.totalorder %s250, %s252
      %p256 = scmp.eq.s32.totalorder %s27, 0
      %p257 = por %p255, %p256
      %p258 = scmp.ne.s32.totalorder %s250, %s252
      %p259 = scmp.eq.s32.totalorder %s32, 1
      %p260 = por %p258, %p259
      %p261 = scmp.ne.s32.totalorder %s252, %s253
      %p262 = scmp.eq.s32.totalorder %s32, 0
      %p263 = por %p261, %p262
      %p264 = scmp.ne.s32.totalorder %s252, %s253
      %p265 = scmp.eq.s32.totalorder %s33, 1
      %p266 = por %p264, %p265
      %p268 = scmp.ne.s32.totalorder %s253, %s267
      %p269 = scmp.eq.s32.totalorder %s33, 0
      %p270 = por %p268, %p269
      %s272 = sadd.s32 %s271, 1
      %p275 = scmp.eq.s32.totalorder %s27, 1
      %p276 = scmp.ne.s32.totalorder %s271, %s273
      %p277 = scmp.eq.s32.totalorder %s27, 0
      %p278 = por %p276, %p277
      %p279 = scmp.ne.s32.totalorder %s271, %s273
      %p280 = scmp.eq.s32.totalorder %s32, 1
      %p281 = por %p279, %p280
      %p282 = scmp.ne.s32.totalorder %s273, %s274
      %p283 = scmp.eq.s32.totalorder %s32, 0
      %p284 = por %p282, %p283
      %p285 = scmp.ne.s32.totalorder %s273, %s274
      %p286 = scmp.eq.s32.totalorder %s33, 1
      %p287 = por %p285, %p286
      %p289 = scmp.ne.s32.totalorder %s274, %s288
      %p290 = scmp.eq.s32.totalorder %s33, 0
      %p291 = por %p289, %p290
      %s292 = ssub.s32 %s27, %s34
      %p293 = scmp.eq.s32.totalorder %s292, 0
      %s295 = sadd.s32 %s294, 1
      %s296 = scalar_select %p293, %s294, %s295
      %p299 = pneg %p293
      %p300 = scmp.eq.s32.totalorder %s27, 1
      %p301 = por %p299, %p300
      %p302 = scmp.ne.s32.totalorder %s294, %s297
      %p303 = scmp.eq.s32.totalorder %s27, 0
      %p304 = por %p302, %p303
      %p305 = scmp.ne.s32.totalorder %s294, %s297
      %p306 = scmp.eq.s32.totalorder %s32, 1
      %p307 = por %p305, %p306
      %p308 = scmp.ne.s32.totalorder %s297, %s298
      %p309 = scmp.eq.s32.totalorder %s32, 0
      %p310 = por %p308, %p309
      %p311 = scmp.ne.s32.totalorder %s297, %s298
      %p312 = scmp.eq.s32.totalorder %s33, 1
      %p313 = por %p311, %p312
      %p315 = scmp.ne.s32.totalorder %s298, %s314
      %p316 = scmp.eq.s32.totalorder %s33, 0
      %p317 = por %p315, %p316
      %p318 = scmp.le.s32.totalorder 1, %s27
      %p319 = scmp.lt.s32.totalorder %s27, 3
      %p320 = pnand %p318, %p319
      %p321 = pneg %p320
      // Predicated region
      $region9: #{tpu_custom_call.1} parent=5 // pred_check
        _
      $region10: #{tpu_custom_call.1} parent=5 // pred_check_branch
        %323 = sbr.rel (%p320) target = $region12
      $region11: #{tpu_custom_call.1} parent=5 // pred_region
        %s324 = ssub.s32 %s27, 1
        // Predicated region
        $region13: #{tpu_custom_call.1} parent=11 // pred_check
          %p325 = pneg %p74
        $region14: #{tpu_custom_call.1} parent=11 // pred_check_branch
          %327 = sbr.rel (%p325) target = $region16
        $region15: #{tpu_custom_call.1} parent=11 // pred_region
          %329 = vsyncadd [#allocation9], 0
          %s331 = sshll.u32 %s1, 4
          %s332 = int_to_ptr.hbm [resolvable:$true] %s331
          %s333 = sshll.u32 [#allocation8], 4
          %s334 = int_to_ptr.vmem [resolvable:$true] %s333
          %336 = dma.hbm_to_vmem [thread:$0]  %s332, 16, %s334, [#allocation9]
        $region16: #{tpu_custom_call.1} parent=11 // pred_fallthru
          _
        // Predicated region
        $region17: #{tpu_custom_call.1} parent=11 // pred_check
          %p337 = pneg %p95
        $region18: #{tpu_custom_call.1} parent=11 // pred_check_branch
          %339 = sbr.rel (%p337) target = $region20
        $region19: #{tpu_custom_call.1} parent=11 // pred_region
          _
        $region20: #{tpu_custom_call.1} parent=11 // pred_fallthru
          _
        // Predicated region
        $region21: #{tpu_custom_call.1} parent=11 // pred_check
          %p340 = pneg %p116
        $region22: #{tpu_custom_call.1} parent=11 // pred_check_branch
          %342 = sbr.rel (%p340) target = $region24
        $region23: #{tpu_custom_call.1} parent=11 // pred_region
          %344 = vsyncadd [#allocation9], 0
          %s345 = sshll.u32 %s3, 4
          %s346 = int_to_ptr.hbm [resolvable:$true] %s345
          %s347 = sshll.u32 [#allocation10], 4
          %s348 = int_to_ptr.vmem [resolvable:$true] %s347
          %353 = dma.hbm_to_vmem [thread:$0]  %s346, 2048, %s348, [#allocation9], 128, 128, 8
        $region24: #{tpu_custom_call.1} parent=11 // pred_fallthru
          _
        // Predicated region
        $region25: #{tpu_custom_call.1} parent=11 // pred_check
          %p354 = pneg %p137
        $region26: #{tpu_custom_call.1} parent=11 // pred_check_branch
          %356 = sbr.rel (%p354) target = $region28
        $region27: #{tpu_custom_call.1} parent=11 // pred_region
          %358 = vsyncadd [#allocation12], 0
          %s359 = sshll.u32 %s4, 4
          %s360 = int_to_ptr.hbm [resolvable:$true] %s359
          %s361 = sshll.u32 [#allocation11], 4
          %s362 = int_to_ptr.vmem [resolvable:$true] %s361
          %367 = dma.hbm_to_vmem [thread:$0]  %s360, 1024, %s362, [#allocation12], 64, 64, 4
        $region28: #{tpu_custom_call.1} parent=11 // pred_fallthru
          _
        // Predicated region
        $region29: #{tpu_custom_call.1} parent=11 // pred_check
          %p368 = pneg %p158
        $region30: #{tpu_custom_call.1} parent=11 // pred_check_branch
          %370 = sbr.rel (%p368) target = $region32
        $region31: #{tpu_custom_call.1} parent=11 // pred_region
          _
        $region32: #{tpu_custom_call.1} parent=11 // pred_fallthru
          _
        // Predicated region
        $region33: #{tpu_custom_call.1} parent=11 // pred_check
          %p371 = pneg %p179
        $region34: #{tpu_custom_call.1} parent=11 // pred_check_branch
          %373 = sbr.rel (%p371) target = $region36
        $region35: #{tpu_custom_call.1} parent=11 // pred_region
          %375 = vsyncadd [#allocation12], 0
          %s376 = sshll.u32 %s6, 4
          %s377 = int_to_ptr.hbm [resolvable:$true] %s376
          %s378 = sshll.u32 [#allocation13], 4
          %s379 = int_to_ptr.vmem [resolvable:$true] %s378
          %384 = dma.hbm_to_vmem [thread:$0]  %s377, 1024, %s379, [#allocation12], 64, 64, 4
        $region36: #{tpu_custom_call.1} parent=11 // pred_fallthru
          _
        // Predicated region
        $region37: #{tpu_custom_call.1} parent=11 // pred_check
          %p385 = pneg %p200
        $region38: #{tpu_custom_call.1} parent=11 // pred_check_branch
          %387 = sbr.rel (%p385) target = $region40
        $region39: #{tpu_custom_call.1} parent=11 // pred_region
          _
        $region40: #{tpu_custom_call.1} parent=11 // pred_fallthru
          _
        // Predicated region
        $region41: #{tpu_custom_call.1} parent=11 // pred_check
          %p388 = pneg %p221
        $region42: #{tpu_custom_call.1} parent=11 // pred_check_branch
          %390 = sbr.rel (%p388) target = $region44
        $region43: #{tpu_custom_call.1} parent=11 // pred_region
          %392 = vsyncadd [#allocation15], 0
          %s393 = sshll.u32 %s8, 4
          %s394 = int_to_ptr.hbm [resolvable:$true] %s393
          %s395 = sshll.u32 [#allocation14], 4
          %s396 = int_to_ptr.vmem [resolvable:$true] %s395
          %401 = dma.hbm_to_vmem [thread:$0]  %s394, 1024, %s396, [#allocation15], 64, 64, 4
        $region44: #{tpu_custom_call.1} parent=11 // pred_fallthru
          _
        // Predicated region
        $region45: #{tpu_custom_call.1} parent=11 // pred_check
          %p402 = pneg %p242
        $region46: #{tpu_custom_call.1} parent=11 // pred_check_branch
          %404 = sbr.rel (%p402) target = $region48
        $region47: #{tpu_custom_call.1} parent=11 // pred_region
          _
        $region48: #{tpu_custom_call.1} parent=11 // pred_fallthru
          _
        // Predicated region
        $region49: #{tpu_custom_call.1} parent=11 // pred_check
          %p405 = pneg %p263
        $region50: #{tpu_custom_call.1} parent=11 // pred_check_branch
          %407 = sbr.rel (%p405) target = $region52
        $region51: #{tpu_custom_call.1} parent=11 // pred_region
          %409 = vsyncadd [#allocation15], 0
          %s410 = sshll.u32 %s10, 4
          %s411 = int_to_ptr.hbm [resolvable:$true] %s410
          %s412 = sshll.u32 [#allocation16], 4
          %s413 = int_to_ptr.vmem [resolvable:$true] %s412
          %418 = dma.hbm_to_vmem [thread:$0]  %s411, 1024, %s413, [#allocation15], 64, 64, 4
        $region52: #{tpu_custom_call.1} parent=11 // pred_fallthru
          _
        // Predicated region
        $region53: #{tpu_custom_call.1} parent=11 // pred_check
          %p419 = pneg %p284
        $region54: #{tpu_custom_call.1} parent=11 // pred_check_branch
          %421 = sbr.rel (%p419) target = $region56
        $region55: #{tpu_custom_call.1} parent=11 // pred_region
          _
        $region56: #{tpu_custom_call.1} parent=11 // pred_fallthru
          _
      $region12: #{tpu_custom_call.1} parent=5 // pred_fallthru
        _
      %p422 = scmp.lt.s32.totalorder %s27, 2
      // Predicated region
      $region57: #{tpu_custom_call.1} parent=5 // pred_check
        %p423 = pneg %p422
      $region58: #{tpu_custom_call.1} parent=5 // pred_check_branch
        %425 = sbr.rel (%p423) target = $region60
      $region59: #{tpu_custom_call.1} parent=5 // pred_region
        // Predicated region
        $region61: #{tpu_custom_call.1} parent=59 // pred_check
          %p426 = pneg %p47
        $region62: #{tpu_custom_call.1} parent=59 // pred_check_branch
          %428 = sbr.rel (%p426) target = $region64
        $region63: #{tpu_custom_call.1} parent=59 // pred_region
          %s429 = sand.u32 %s37, 1
          %s430 = scalar_lea.sflag [#allocation6], %s429
          %s431 = sand.u32 %s37, 1
          %s432 = smul.addr %s431, 256
          %s433 = scalar_lea.vmem [#allocation5], %s432
          %435 = vsyncadd %s430, 0
          %s436 = smul.addr %s27, 32
          %s437 = smul.addr %s436, 8
          %s438 = scalar_lea.hbm %s0, %s437
          %s439 = sshll.u32 %s438, 4
          %s440 = int_to_ptr.hbm [resolvable:$true] %s439
          %s441 = sshll.u32 %s433, 4
          %s442 = int_to_ptr.vmem [resolvable:$true] %s441
          %447 = dma.hbm_to_vmem [thread:$0]  %s440, 4096, %s442, %s430, 128, 128, 8
        $region64: #{tpu_custom_call.1} parent=59 // pred_fallthru
          _
      $region60: #{tpu_custom_call.1} parent=5 // pred_fallthru
        _
      %p448 = scmp.le.s32.totalorder 1, %s27
      %p449 = scmp.lt.s32.totalorder %s27, 3
      %p450 = pnand %p448, %p449
      %p451 = pneg %p450
      // Predicated region
      $region65: #{tpu_custom_call.1} parent=5 // pred_check
        _
      $region66: #{tpu_custom_call.1} parent=5 // pred_check_branch
        %453 = sbr.rel (%p450) target = $region68
      $region67: #{tpu_custom_call.1} parent=5 // pred_region
        %s454 = ssub.s32 %s27, 1
        %s455 = sand.u32 %s40, 1
        %s456 = scalar_lea.sflag [#allocation6], %s455
        %s457 = sand.u32 %s40, 1
        %s458 = smul.addr %s457, 256
        %s459 = scalar_lea.vmem [#allocation5], %s458
        // Predicated region
        $region69: #{tpu_custom_call.1} parent=67 // pred_check
          %p460 = pneg %p53
        $region70: #{tpu_custom_call.1} parent=67 // pred_check_branch
          %462 = sbr.rel (%p460) target = $region72
        $region71: #{tpu_custom_call.1} parent=67 // pred_region
          %464 = dma.done %s456, 4096
        $region72: #{tpu_custom_call.1} parent=67 // pred_fallthru
          _
        // Predicated region
        $region73: #{tpu_custom_call.1} parent=67 // pred_check
          %p465 = pneg %p74
        $region74: #{tpu_custom_call.1} parent=67 // pred_check_branch
          %467 = sbr.rel (%p465) target = $region76
        $region75: #{tpu_custom_call.1} parent=67 // pred_region
          %469 = dma.done [#allocation9], 16
        $region76: #{tpu_custom_call.1} parent=67 // pred_fallthru
          _
        // Predicated region
        $region77: #{tpu_custom_call.1} parent=67 // pred_check
          %p470 = pneg %p116
        $region78: #{tpu_custom_call.1} parent=67 // pred_check_branch
          %472 = sbr.rel (%p470) target = $region80
        $region79: #{tpu_custom_call.1} parent=67 // pred_region
          %474 = dma.done [#allocation9], 2048
        $region80: #{tpu_custom_call.1} parent=67 // pred_fallthru
          _
        // Predicated region
        $region81: #{tpu_custom_call.1} parent=67 // pred_check
          %p475 = pneg %p137
        $region82: #{tpu_custom_call.1} parent=67 // pred_check_branch
          %477 = sbr.rel (%p475) target = $region84
        $region83: #{tpu_custom_call.1} parent=67 // pred_region
          %479 = dma.done [#allocation12], 1024
        $region84: #{tpu_custom_call.1} parent=67 // pred_fallthru
          _
        // Predicated region
        $region85: #{tpu_custom_call.1} parent=67 // pred_check
          %p480 = pneg %p179
        $region86: #{tpu_custom_call.1} parent=67 // pred_check_branch
          %482 = sbr.rel (%p480) target = $region88
        $region87: #{tpu_custom_call.1} parent=67 // pred_region
          %484 = dma.done [#allocation12], 1024
        $region88: #{tpu_custom_call.1} parent=67 // pred_fallthru
          _
        // Predicated region
        $region89: #{tpu_custom_call.1} parent=67 // pred_check
          %p485 = pneg %p221
        $region90: #{tpu_custom_call.1} parent=67 // pred_check_branch
          %487 = sbr.rel (%p485) target = $region92
        $region91: #{tpu_custom_call.1} parent=67 // pred_region
          %489 = dma.done [#allocation15], 1024
        $region92: #{tpu_custom_call.1} parent=67 // pred_fallthru
          _
        // Predicated region
        $region93: #{tpu_custom_call.1} parent=67 // pred_check
          %p490 = pneg %p263
        $region94: #{tpu_custom_call.1} parent=67 // pred_check_branch
          %492 = sbr.rel (%p490) target = $region96
        $region95: #{tpu_custom_call.1} parent=67 // pred_region
          %494 = dma.done [#allocation15], 1024
        $region96: #{tpu_custom_call.1} parent=67 // pred_fallthru
          _
        %s495 = sand.u32 %s40, 1
        %s496 = scalar_lea.sflag [#allocation6], %s495
        %s497 = sand.u32 %s40, 1
        %s498 = smul.addr %s497, 256
        %s499 = scalar_lea.vmem [#allocation5], %s498
        %p500 = pneg %p53
        %p501 = pneg %p50
        %p502 = pneg %p74
        %p503 = pneg %p71
        %p504 = pneg %p95
        %p505 = pneg %p92
        %p506 = pneg %p116
        %p507 = pneg %p113
        %p508 = pneg %p137
        %p509 = pneg %p134
        %p510 = pneg %p158
        %p511 = pneg %p155
        %p512 = pneg %p179
        %p513 = pneg %p176
        %p514 = pneg %p200
        %p515 = pneg %p197
        %p516 = pneg %p221
        %p517 = pneg %p218
        %p518 = pneg %p242
        %p519 = pneg %p239
        %p520 = pneg %p263
        %p521 = pneg %p260
        %p522 = pneg %p284
        %p523 = pneg %p281
        %p524 = pneg %p310
        %p525 = pneg %p307
        %s526 = sand.u32 %s297, 1
        %s527 = scalar_lea.sflag [#allocation7], %s526
        %s528 = sand.u32 %s297, 1
        %s529 = smul.addr %s528, 256
        %s530 = scalar_lea.vmem [#allocation17], %s529
        %v531 = vld [vmem:[%s459] sm:$0xff]
        %v532 = vld [vmem:[%s459 + $0x8] sm:$0xff]
        %v533 = vld [vmem:[%s459 + $0x10] sm:$0xff]
        %v534 = vld [vmem:[%s459 + $0x18] sm:$0xff]
        %v535 = vld [vmem:[%s459 + $0x20] sm:$0xff]
        %v536 = vld [vmem:[%s459 + $0x28] sm:$0xff]
        %v537 = vld [vmem:[%s459 + $0x30] sm:$0xff]
        %v538 = vld [vmem:[%s459 + $0x38] sm:$0xff]
        %v539 = vld [vmem:[%s459 + $0x40] sm:$0xff]
        %v540 = vld [vmem:[%s459 + $0x48] sm:$0xff]
        %v541 = vld [vmem:[%s459 + $0x50] sm:$0xff]
        %v542 = vld [vmem:[%s459 + $0x58] sm:$0xff]
        %v543 = vld [vmem:[%s459 + $0x60] sm:$0xff]
        %v544 = vld [vmem:[%s459 + $0x68] sm:$0xff]
        %v545 = vld [vmem:[%s459 + $0x70] sm:$0xff]
        %v546 = vld [vmem:[%s459 + $0x78] sm:$0xff]
        %v547 = vld [vmem:[%s459 + $0x80] sm:$0xff]
        %v548 = vld [vmem:[%s459 + $0x88] sm:$0xff]
        %v549 = vld [vmem:[%s459 + $0x90] sm:$0xff]
        %v550 = vld [vmem:[%s459 + $0x98] sm:$0xff]
        %v551 = vld [vmem:[%s459 + $0xa0] sm:$0xff]
        %v552 = vld [vmem:[%s459 + $0xa8] sm:$0xff]
        %v553 = vld [vmem:[%s459 + $0xb0] sm:$0xff]
        %v554 = vld [vmem:[%s459 + $0xb8] sm:$0xff]
        %v555 = vld [vmem:[%s459 + $0xc0] sm:$0xff]
        %v556 = vld [vmem:[%s459 + $0xc8] sm:$0xff]
        %v557 = vld [vmem:[%s459 + $0xd0] sm:$0xff]
        %v558 = vld [vmem:[%s459 + $0xd8] sm:$0xff]
        %v559 = vld [vmem:[%s459 + $0xe0] sm:$0xff]
        %v560 = vld [vmem:[%s459 + $0xe8] sm:$0xff]
        %v561 = vld [vmem:[%s459 + $0xf0] sm:$0xff]
        %v562 = vld [vmem:[%s459 + $0xf8] sm:$0xff]
        %v563 = vadd.f32 %v531, %v532
        %v564 = vadd.f32 %v563, %v533
        %v565 = vadd.f32 %v564, %v534
        %v566 = vadd.f32 %v565, %v535
        %v567 = vadd.f32 %v566, %v536
        %v568 = vadd.f32 %v567, %v537
        %v569 = vadd.f32 %v568, %v538
        %v570 = vadd.f32 %v569, %v539
        %v571 = vadd.f32 %v570, %v540
        %v572 = vadd.f32 %v571, %v541
        %v573 = vadd.f32 %v572, %v542
        %v574 = vadd.f32 %v573, %v543
        %v575 = vadd.f32 %v574, %v544
        %v576 = vadd.f32 %v575, %v545
        %v577 = vadd.f32 %v576, %v546
        %v578 = vadd.f32 %v577, %v547
        %v579 = vadd.f32 %v578, %v548
        %v580 = vadd.f32 %v579, %v549
        %v581 = vadd.f32 %v580, %v550
        %v582 = vadd.f32 %v581, %v551
        %v583 = vadd.f32 %v582, %v552
        %v584 = vadd.f32 %v583, %v553
        %v585 = vadd.f32 %v584, %v554
        %v586 = vadd.f32 %v585, %v555
        %v587 = vadd.f32 %v586, %v556
        %v588 = vadd.f32 %v587, %v557
        %v589 = vadd.f32 %v588, %v558
        %v590 = vadd.f32 %v589, %v559
        %v591 = vadd.f32 %v590, %v560
        %v592 = vadd.f32 %v591, %v561
        %v593 = vadd.f32 %v592, %v562
        %v594 = vrot.slane %v593, 4
        %v595 = vadd.f32 %v593, %v594
        %v596 = vrot.slane %v595, 2
        %v597 = vadd.f32 %v595, %v596
        %v598 = vrot.slane %v597, 1
        %v599 = vadd.f32 %v597, %v598
        %v600 = vmul.f32 %v531, %v531
        %v601 = vmul.f32 %v532, %v532
        %v602 = vmul.f32 %v533, %v533
        %v603 = vmul.f32 %v534, %v534
        %v604 = vmul.f32 %v535, %v535
        %v605 = vmul.f32 %v536, %v536
        %v606 = vmul.f32 %v537, %v537
        %v607 = vmul.f32 %v538, %v538
        %v608 = vmul.f32 %v539, %v539
        %v609 = vmul.f32 %v540, %v540
        %v610 = vmul.f32 %v541, %v541
        %v611 = vmul.f32 %v542, %v542
        %v612 = vmul.f32 %v543, %v543
        %v613 = vmul.f32 %v544, %v544
        %v614 = vmul.f32 %v545, %v545
        %v615 = vmul.f32 %v546, %v546
        %v616 = vmul.f32 %v547, %v547
        %v617 = vmul.f32 %v548, %v548
        %v618 = vmul.f32 %v549, %v549
        %v619 = vmul.f32 %v550, %v550
        %v620 = vmul.f32 %v551, %v551
        %v621 = vmul.f32 %v552, %v552
        %v622 = vmul.f32 %v553, %v553
        %v623 = vmul.f32 %v554, %v554
        %v624 = vmul.f32 %v555, %v555
        %v625 = vmul.f32 %v556, %v556
        %v626 = vmul.f32 %v557, %v557
        %v627 = vmul.f32 %v558, %v558
        %v628 = vmul.f32 %v559, %v559
        %v629 = vmul.f32 %v560, %v560
        %v630 = vmul.f32 %v561, %v561
        %v631 = vmul.f32 %v562, %v562
        %v632 = vadd.f32 %v600, %v601
        %v633 = vadd.f32 %v632, %v602
        %v634 = vadd.f32 %v633, %v603
        %v635 = vadd.f32 %v634, %v604
        %v636 = vadd.f32 %v635, %v605
        %v637 = vadd.f32 %v636, %v606
        %v638 = vadd.f32 %v637, %v607
        %v639 = vadd.f32 %v638, %v608
        %v640 = vadd.f32 %v639, %v609
        %v641 = vadd.f32 %v640, %v610
        %v642 = vadd.f32 %v641, %v611
        %v643 = vadd.f32 %v642, %v612
        %v644 = vadd.f32 %v643, %v613
        %v645 = vadd.f32 %v644, %v614
        %v646 = vadd.f32 %v645, %v615
        %v647 = vadd.f32 %v646, %v616
        %v648 = vadd.f32 %v647, %v617
        %v649 = vadd.f32 %v648, %v618
        %v650 = vadd.f32 %v649, %v619
        %v651 = vadd.f32 %v650, %v620
        %v652 = vadd.f32 %v651, %v621
        %v653 = vadd.f32 %v652, %v622
        %v654 = vadd.f32 %v653, %v623
        %v655 = vadd.f32 %v654, %v624
        %v656 = vadd.f32 %v655, %v625
        %v657 = vadd.f32 %v656, %v626
        %v658 = vadd.f32 %v657, %v627
        %v659 = vadd.f32 %v658, %v628
        %v660 = vadd.f32 %v659, %v629
        %v661 = vadd.f32 %v660, %v630
        %v662 = vadd.f32 %v661, %v631
        %v663 = vrot.slane %v662, 4
        %v664 = vadd.f32 %v662, %v663
        %v665 = vrot.slane %v664, 2
        %v666 = vadd.f32 %v664, %v665
        %v667 = vrot.slane %v666, 1
        %v668 = vadd.f32 %v666, %v667
        %vm669 = vcmask 1040384
        %v670 = vsel %vm669, %v599, %v668
        %v671 = vld [vmem:[#allocation10] sm:$0xff]
        %v672 = vld [vmem:[#allocation10 + $0x8] sm:$0xff]
        %v673 = vld [vmem:[#allocation10 + $0x10] sm:$0xff]
        %v674 = vld [vmem:[#allocation10 + $0x18] sm:$0xff]
        %v675 = vld [vmem:[#allocation10 + $0x20] sm:$0xff]
        %v676 = vld [vmem:[#allocation10 + $0x28] sm:$0xff]
        %v677 = vld [vmem:[#allocation10 + $0x30] sm:$0xff]
        %v678 = vld [vmem:[#allocation10 + $0x38] sm:$0xff]
        %v679 = vld [vmem:[#allocation10 + $0x40] sm:$0xff]
        %v680 = vld [vmem:[#allocation10 + $0x48] sm:$0xff]
        %v681 = vld [vmem:[#allocation10 + $0x50] sm:$0xff]
        %v682 = vld [vmem:[#allocation10 + $0x58] sm:$0xff]
        %v683 = vld [vmem:[#allocation10 + $0x60] sm:$0xff]
        %v684 = vld [vmem:[#allocation10 + $0x68] sm:$0xff]
        %v685 = vld [vmem:[#allocation10 + $0x70] sm:$0xff]
        %v686 = vld [vmem:[#allocation10 + $0x78] sm:$0xff]
        %687 = vmatpush.msra.mxu0 %v686
        %688 = vmatpush.msra.mxu0 %v685
        %689 = vmatpush.msra.mxu0 %v684
        %690 = vmatpush.msra.mxu0 %v683
        %691 = vmatpush.msra.mxu0 %v682
        %692 = vmatpush.msra.mxu0 %v681
        %693 = vmatpush.msra.mxu0 %v680
        %694 = vmatpush.msra.mxu0 %v679
        %695 = vmatpush.msra.mxu0 %v678
        %696 = vmatpush.msra.mxu0 %v677
        %697 = vmatpush.msra.mxu0 %v676
        %698 = vmatpush.msra.mxu0 %v675
        %699 = vmatpush.msra.mxu0 %v674
        %700 = vmatpush.msra.mxu0 %v673
        %701 = vmatpush.msra.mxu0 %v672
        %702 = vmatpush.msra.mxu0 %v671
        %703 = vmatmul.f32.gmra.mxu0 %v670
        %v704 = vpop.f32.mrf.mxu0
        %v705 = vadd.f32 0.0, %v704
        %706 = vdwg.mxu0
        %v707 = vmul.f32 %v705, %v705
        %v709 = vrot.slane %v707, 7
        %v711 = vsub.f32 %v705, %v709
        %v712 = vadd.f32 %v711, 1e-05
        %v713 = vrsqrt.pop %v712
        %v714 = vmul.f32 %v713, %v712
        %v715 = vmul.f32 %v714, %v713
        %v716 = vmul.f32 0.5, %v715
        %v717 = vsub.f32 1.5, %v716
        %v718 = vmul.f32 %v713, %v717
        %vm719 = vweird.f32 %v712
        %vm720 = vweird.f32 %v713
        %vm721 = vmor %vm719, %vm720
        %v722 = vsel %vm721, %v713, %v718
        %v723 = vld [vmem:[#allocation8] sm:$0x1]
        %v725 = vperm.slane %v723, 0
        %v727 = vmul.f32 %v722, %v725
        %v728 = vld [vmem:[%s2] sm:$0x1]
        %v730 = vrot.slane %v727, 1
        %v732 = vmul.f32 %v705, %v730
        %v733 = vsub.f32 %v728, %v732
        %v734 = vperm.slane %v727, 1
        %v735 = vmul.f32 %v531, %v734
        %v736 = vmul.f32 %v532, %v734
        %v737 = vmul.f32 %v533, %v734
        %v738 = vmul.f32 %v534, %v734
        %v739 = vmul.f32 %v535, %v734
        %v740 = vmul.f32 %v536, %v734
        %v741 = vmul.f32 %v537, %v734
        %v742 = vmul.f32 %v538, %v734
        %v743 = vmul.f32 %v539, %v734
        %v744 = vmul.f32 %v540, %v734
        %v745 = vmul.f32 %v541, %v734
        %v746 = vmul.f32 %v542, %v734
        %v747 = vmul.f32 %v543, %v734
        %v748 = vmul.f32 %v544, %v734
        %v749 = vmul.f32 %v545, %v734
        %v750 = vmul.f32 %v546, %v734
        %v751 = vmul.f32 %v547, %v734
        %v752 = vmul.f32 %v548, %v734
        %v753 = vmul.f32 %v549, %v734
        %v754 = vmul.f32 %v550, %v734
        %v755 = vmul.f32 %v551, %v734
        %v756 = vmul.f32 %v552, %v734
        %v757 = vmul.f32 %v553, %v734
        %v758 = vmul.f32 %v554, %v734
        %v759 = vmul.f32 %v555, %v734
        %v760 = vmul.f32 %v556, %v734
        %v761 = vmul.f32 %v557, %v734
        %v762 = vmul.f32 %v558, %v734
        %v763 = vmul.f32 %v559, %v734
        %v764 = vmul.f32 %v560, %v734
        %v765 = vmul.f32 %v561, %v734
        %v766 = vmul.f32 %v562, %v734
        %v768 = vperm.slane %v733, 0
        %v770 = vadd.f32 %v735, %v768
        %v771 = vadd.f32 %v736, %v768
        %v772 = vadd.f32 %v737, %v768
        %v773 = vadd.f32 %v738, %v768
        %v774 = vadd.f32 %v739, %v768
        %v775 = vadd.f32 %v740, %v768
        %v776 = vadd.f32 %v741, %v768
        %v777 = vadd.f32 %v742, %v768
        %v778 = vadd.f32 %v743, %v768
        %v779 = vadd.f32 %v744, %v768
        %v780 = vadd.f32 %v745, %v768
        %v781 = vadd.f32 %v746, %v768
        %v782 = vadd.f32 %v747, %v768
        %v783 = vadd.f32 %v748, %v768
        %v784 = vadd.f32 %v749, %v768
        %v785 = vadd.f32 %v750, %v768
        %v786 = vadd.f32 %v751, %v768
        %v787 = vadd.f32 %v752, %v768
        %v788 = vadd.f32 %v753, %v768
        %v789 = vadd.f32 %v754, %v768
        %v790 = vadd.f32 %v755, %v768
        %v791 = vadd.f32 %v756, %v768
        %v792 = vadd.f32 %v757, %v768
        %v793 = vadd.f32 %v758, %v768
        %v794 = vadd.f32 %v759, %v768
        %v795 = vadd.f32 %v760, %v768
        %v796 = vadd.f32 %v761, %v768
        %v797 = vadd.f32 %v762, %v768
        %v798 = vadd.f32 %v763, %v768
        %v799 = vadd.f32 %v764, %v768
        %v800 = vadd.f32 %v765, %v768
        %v801 = vadd.f32 %v766, %v768
        %v802 = vpack.c.bf16 %v771, %v770
        %v803 = vpack.c.bf16 %v773, %v772
        %v804 = vpack.c.bf16 %v775, %v774
        %v805 = vpack.c.bf16 %v777, %v776
        %v806 = vpack.c.bf16 %v779, %v778
        %v807 = vpack.c.bf16 %v781, %v780
        %v808 = vpack.c.bf16 %v783, %v782
        %v809 = vpack.c.bf16 %v785, %v784
        %v810 = vpack.c.bf16 %v787, %v786
        %v811 = vpack.c.bf16 %v789, %v788
        %v812 = vpack.c.bf16 %v791, %v790
        %v813 = vpack.c.bf16 %v793, %v792
        %v814 = vpack.c.bf16 %v795, %v794
        %v815 = vpack.c.bf16 %v797, %v796
        %v816 = vpack.c.bf16 %v799, %v798
        %v817 = vpack.c.bf16 %v801, %v800
        %v818 = vld [vmem:[#allocation11] sm:$0xf]
        %v819 = vld [vmem:[#allocation11 + $0x4] sm:$0xf]
        %v820 = vld [vmem:[#allocation11 + $0x8] sm:$0xf]
        %v821 = vld [vmem:[#allocation11 + $0xc] sm:$0xf]
        %v822 = vld [vmem:[#allocation11 + $0x10] sm:$0xf]
        %v823 = vld [vmem:[#allocation11 + $0x14] sm:$0xf]
        %v824 = vld [vmem:[#allocation11 + $0x18] sm:$0xf]
        %v825 = vld [vmem:[#allocation11 + $0x1c] sm:$0xf]
        %v826 = vld [vmem:[#allocation11 + $0x20] sm:$0xf]
        %v827 = vld [vmem:[#allocation11 + $0x24] sm:$0xf]
        %v828 = vld [vmem:[#allocation11 + $0x28] sm:$0xf]
        %v829 = vld [vmem:[#allocation11 + $0x2c] sm:$0xf]
        %v830 = vld [vmem:[#allocation11 + $0x30] sm:$0xf]
        %v831 = vld [vmem:[#allocation11 + $0x34] sm:$0xf]
        %v832 = vld [vmem:[#allocation11 + $0x38] sm:$0xf]
        %v833 = vld [vmem:[#allocation11 + $0x3c] sm:$0xf]
        %v834 = vld [vmem:[%s5] sm:$0x1]
        %v836 = vperm.slane %v834, 0
        %v854 = vunpack.c.l.b16 %v818
        %v855 = vunpack.c.l.b16 %v819
        %v856 = vunpack.c.l.b16 %v820
        %v857 = vunpack.c.l.b16 %v821
        %v858 = vunpack.c.l.b16 %v822
        %v859 = vunpack.c.l.b16 %v823
        %v860 = vunpack.c.l.b16 %v824
        %v861 = vunpack.c.l.b16 %v825
        %v862 = vunpack.c.l.b16 %v826
        %v863 = vunpack.c.l.b16 %v827
        %v864 = vunpack.c.l.b16 %v828
        %v865 = vunpack.c.l.b16 %v829
        %v866 = vunpack.c.l.b16 %v830
        %v867 = vunpack.c.l.b16 %v831
        %v868 = vunpack.c.l.b16 %v832
        %v869 = vunpack.c.l.b16 %v833
        %v870 = vpack.c.b16 %v855, %v854
        %v871 = vpack.c.b16 %v857, %v856
        %v872 = vpack.c.b16 %v859, %v858
        %v873 = vpack.c.b16 %v861, %v860
        %v874 = vpack.c.b16 %v863, %v862
        %v875 = vpack.c.b16 %v865, %v864
        %v876 = vpack.c.b16 %v867, %v866
        %v877 = vpack.c.b16 %v869, %v868
        %886 = vmatpush.bf16.msra.mxu0 %v877
        %887 = vmatpush.bf16.msra.mxu0 %v876
        %888 = vmatpush.bf16.msra.mxu0 %v875
        %889 = vmatpush.bf16.msra.mxu0 %v874
        %890 = vmatpush.bf16.msra.mxu0 %v873
        %891 = vmatpush.bf16.msra.mxu0 %v872
        %892 = vmatpush.bf16.msra.mxu0 %v871
        %893 = vmatpush.bf16.msra.mxu0 %v870
        %894 = vmatmul.bf16.gmra.mxu0 %v802
        %v895 = vpop.f32.mrf.mxu0
        %v896 = vadd.f32 %v836, %v895
        %v897 = vpop.f32.mrf.mxu0
        %v898 = vadd.f32 %v836, %v897
        %899 = vmatmul.bf16.gmra.mxu0 %v803
        %v900 = vpop.f32.mrf.mxu0
        %v901 = vadd.f32 %v836, %v900
        %v902 = vpop.f32.mrf.mxu0
        %v903 = vadd.f32 %v836, %v902
        %904 = vmatmul.bf16.gmra.mxu0 %v804
        %v905 = vpop.f32.mrf.mxu0
        %v906 = vadd.f32 %v836, %v905
        %v907 = vpop.f32.mrf.mxu0
        %v908 = vadd.f32 %v836, %v907
        %909 = vmatmul.bf16.gmra.mxu0 %v805
        %v910 = vpop.f32.mrf.mxu0
        %v911 = vadd.f32 %v836, %v910
        %v912 = vpop.f32.mrf.mxu0
        %v913 = vadd.f32 %v836, %v912
        %914 = vmatmul.bf16.gmra.mxu0 %v806
        %v915 = vpop.f32.mrf.mxu0
        %v916 = vadd.f32 %v836, %v915
        %v917 = vpop.f32.mrf.mxu0
        %v918 = vadd.f32 %v836, %v917
        %919 = vmatmul.bf16.gmra.mxu0 %v807
        %v920 = vpop.f32.mrf.mxu0
        %v921 = vadd.f32 %v836, %v920
        %v922 = vpop.f32.mrf.mxu0
        %v923 = vadd.f32 %v836, %v922
        %924 = vmatmul.bf16.gmra.mxu0 %v808
        %v925 = vpop.f32.mrf.mxu0
        %v926 = vadd.f32 %v836, %v925
        %v927 = vpop.f32.mrf.mxu0
        %v928 = vadd.f32 %v836, %v927
        %929 = vmatmul.bf16.gmra.mxu0 %v809
        %v930 = vpop.f32.mrf.mxu0
        %v931 = vadd.f32 %v836, %v930
        %v932 = vpop.f32.mrf.mxu0
        %v933 = vadd.f32 %v836, %v932
        %934 = vmatmul.bf16.gmra.mxu0 %v810
        %v935 = vpop.f32.mrf.mxu0
        %v936 = vadd.f32 %v836, %v935
        %v937 = vpop.f32.mrf.mxu0
        %v938 = vadd.f32 %v836, %v937
        %939 = vmatmul.bf16.gmra.mxu0 %v811
        %v940 = vpop.f32.mrf.mxu0
        %v941 = vadd.f32 %v836, %v940
        %v942 = vpop.f32.mrf.mxu0
        %v943 = vadd.f32 %v836, %v942
        %944 = vmatmul.bf16.gmra.mxu0 %v812
        %v945 = vpop.f32.mrf.mxu0
        %v946 = vadd.f32 %v836, %v945
        %v947 = vpop.f32.mrf.mxu0
        %v948 = vadd.f32 %v836, %v947
        %949 = vmatmul.bf16.gmra.mxu0 %v813
        %v950 = vpop.f32.mrf.mxu0
        %v951 = vadd.f32 %v836, %v950
        %v952 = vpop.f32.mrf.mxu0
        %v953 = vadd.f32 %v836, %v952
        %954 = vmatmul.bf16.gmra.mxu0 %v814
        %v955 = vpop.f32.mrf.mxu0
        %v956 = vadd.f32 %v836, %v955
        %v957 = vpop.f32.mrf.mxu0
        %v958 = vadd.f32 %v836, %v957
        %959 = vmatmul.bf16.gmra.mxu0 %v815
        %v960 = vpop.f32.mrf.mxu0
        %v961 = vadd.f32 %v836, %v960
        %v962 = vpop.f32.mrf.mxu0
        %v963 = vadd.f32 %v836, %v962
        %964 = vmatmul.bf16.gmra.mxu0 %v816
        %v965 = vpop.f32.mrf.mxu0
        %v966 = vadd.f32 %v836, %v965
        %v967 = vpop.f32.mrf.mxu0
        %v968 = vadd.f32 %v836, %v967
        %969 = vmatmul.bf16.gmra.mxu0 %v817
        %v970 = vpop.f32.mrf.mxu0
        %v971 = vadd.f32 %v836, %v970
        %v972 = vpop.f32.mrf.mxu0
        %v973 = vadd.f32 %v836, %v972
        %974 = vdwg.mxu0
        %v975 = vpack.c.bf16 %v896, %v896
        %v976 = vpack.c.bf16 %v898, %v898
        %v977 = vpack.c.bf16 %v901, %v901
        %v978 = vpack.c.bf16 %v903, %v903
        %v979 = vpack.c.bf16 %v906, %v906
        %v980 = vpack.c.bf16 %v908, %v908
        %v981 = vpack.c.bf16 %v911, %v911
        %v982 = vpack.c.bf16 %v913, %v913
        %v983 = vpack.c.bf16 %v916, %v916
        %v984 = vpack.c.bf16 %v918, %v918
        %v985 = vpack.c.bf16 %v921, %v921
        %v986 = vpack.c.bf16 %v923, %v923
        %v987 = vpack.c.bf16 %v926, %v926
        %v988 = vpack.c.bf16 %v928, %v928
        %v989 = vpack.c.bf16 %v931, %v931
        %v990 = vpack.c.bf16 %v933, %v933
        %v991 = vpack.c.bf16 %v936, %v936
        %v992 = vpack.c.bf16 %v938, %v938
        %v993 = vpack.c.bf16 %v941, %v941
        %v994 = vpack.c.bf16 %v943, %v943
        %v995 = vpack.c.bf16 %v946, %v946
        %v996 = vpack.c.bf16 %v948, %v948
        %v997 = vpack.c.bf16 %v951, %v951
        %v998 = vpack.c.bf16 %v953, %v953
        %v999 = vpack.c.bf16 %v956, %v956
        %v1000 = vpack.c.bf16 %v958, %v958
        %v1001 = vpack.c.bf16 %v961, %v961
        %v1002 = vpack.c.bf16 %v963, %v963
        %v1003 = vpack.c.bf16 %v966, %v966
        %v1004 = vpack.c.bf16 %v968, %v968
        %v1005 = vpack.c.bf16 %v971, %v971
        %v1006 = vpack.c.bf16 %v973, %v973
        %1007 = vst [vmem:[#allocation2] sm:$0xf] %v975
        %1008 = vst [vmem:[#allocation2 + $0x4] sm:$0xf] %v976
        %1009 = vst [vmem:[#allocation2 + $0x8] sm:$0xf] %v977
        %1010 = vst [vmem:[#allocation2 + $0xc] sm:$0xf] %v978
        %1011 = vst [vmem:[#allocation2 + $0x10] sm:$0xf] %v979
        %1012 = vst [vmem:[#allocation2 + $0x14] sm:$0xf] %v980
        %1013 = vst [vmem:[#allocation2 + $0x18] sm:$0xf] %v981
        %1014 = vst [vmem:[#allocation2 + $0x1c] sm:$0xf] %v982
        %1015 = vst [vmem:[#allocation2 + $0x20] sm:$0xf] %v983
        %1016 = vst [vmem:[#allocation2 + $0x24] sm:$0xf] %v984
        %1017 = vst [vmem:[#allocation2 + $0x28] sm:$0xf] %v985
        %1018 = vst [vmem:[#allocation2 + $0x2c] sm:$0xf] %v986
        %1019 = vst [vmem:[#allocation2 + $0x30] sm:$0xf] %v987
        %1020 = vst [vmem:[#allocation2 + $0x34] sm:$0xf] %v988
        %1021 = vst [vmem:[#allocation2 + $0x38] sm:$0xf] %v989
        %1022 = vst [vmem:[#allocation2 + $0x3c] sm:$0xf] %v990
        %1023 = vst [vmem:[#allocation2 + $0x40] sm:$0xf] %v991
        %1024 = vst [vmem:[#allocation2 + $0x44] sm:$0xf] %v992
        %1025 = vst [vmem:[#allocation2 + $0x48] sm:$0xf] %v993
        %1026 = vst [vmem:[#allocation2 + $0x4c] sm:$0xf] %v994
        %1027 = vst [vmem:[#allocation2 + $0x50] sm:$0xf] %v995
        %1028 = vst [vmem:[#allocation2 + $0x54] sm:$0xf] %v996
        %1029 = vst [vmem:[#allocation2 + $0x58] sm:$0xf] %v997
        %1030 = vst [vmem:[#allocation2 + $0x5c] sm:$0xf] %v998
        %1031 = vst [vmem:[#allocation2 + $0x60] sm:$0xf] %v999
        %1032 = vst [vmem:[#allocation2 + $0x64] sm:$0xf] %v1000
        %1033 = vst [vmem:[#allocation2 + $0x68] sm:$0xf] %v1001
        %1034 = vst [vmem:[#allocation2 + $0x6c] sm:$0xf] %v1002
        %1035 = vst [vmem:[#allocation2 + $0x70] sm:$0xf] %v1003
        %1036 = vst [vmem:[#allocation2 + $0x74] sm:$0xf] %v1004
        %1037 = vst [vmem:[#allocation2 + $0x78] sm:$0xf] %v1005
        %1038 = vst [vmem:[#allocation2 + $0x7c] sm:$0xf] %v1006
        %v1039 = vld [vmem:[#allocation13] sm:$0xf]
        %v1040 = vld [vmem:[#allocation13 + $0x4] sm:$0xf]
        %v1041 = vld [vmem:[#allocation13 + $0x8] sm:$0xf]
        %v1042 = vld [vmem:[#allocation13 + $0xc] sm:$0xf]
        %v1043 = vld [vmem:[#allocation13 + $0x10] sm:$0xf]
        %v1044 = vld [vmem:[#allocation13 + $0x14] sm:$0xf]
        %v1045 = vld [vmem:[#allocation13 + $0x18] sm:$0xf]
        %v1046 = vld [vmem:[#allocation13 + $0x1c] sm:$0xf]
        %v1047 = vld [vmem:[#allocation13 + $0x20] sm:$0xf]
        %v1048 = vld [vmem:[#allocation13 + $0x24] sm:$0xf]
        %v1049 = vld [vmem:[#allocation13 + $0x28] sm:$0xf]
        %v1050 = vld [vmem:[#allocation13 + $0x2c] sm:$0xf]
        %v1051 = vld [vmem:[#allocation13 + $0x30] sm:$0xf]
        %v1052 = vld [vmem:[#allocation13 + $0x34] sm:$0xf]
        %v1053 = vld [vmem:[#allocation13 + $0x38] sm:$0xf]
        %v1054 = vld [vmem:[#allocation13 + $0x3c] sm:$0xf]
        %v1055 = vld [vmem:[%s7] sm:$0x1]
        %v1057 = vperm.slane %v1055, 0
        %v1075 = vunpack.c.l.b16 %v1039
        %v1076 = vunpack.c.l.b16 %v1040
        %v1077 = vunpack.c.l.b16 %v1041
        %v1078 = vunpack.c.l.b16 %v1042
        %v1079 = vunpack.c.l.b16 %v1043
        %v1080 = vunpack.c.l.b16 %v1044
        %v1081 = vunpack.c.l.b16 %v1045
        %v1082 = vunpack.c.l.b16 %v1046
        %v1083 = vunpack.c.l.b16 %v1047
        %v1084 = vunpack.c.l.b16 %v1048
        %v1085 = vunpack.c.l.b16 %v1049
        %v1086 = vunpack.c.l.b16 %v1050
        %v1087 = vunpack.c.l.b16 %v1051
        %v1088 = vunpack.c.l.b16 %v1052
        %v1089 = vunpack.c.l.b16 %v1053
        %v1090 = vunpack.c.l.b16 %v1054
        %v1091 = vpack.c.b16 %v1076, %v1075
        %v1092 = vpack.c.b16 %v1078, %v1077
        %v1093 = vpack.c.b16 %v1080, %v1079
        %v1094 = vpack.c.b16 %v1082, %v1081
        %v1095 = vpack.c.b16 %v1084, %v1083
        %v1096 = vpack.c.b16 %v1086, %v1085
        %v1097 = vpack.c.b16 %v1088, %v1087
        %v1098 = vpack.c.b16 %v1090, %v1089
        %1107 = vmatpush.bf16.msra.mxu0 %v1098
        %1108 = vmatpush.bf16.msra.mxu0 %v1097
        %1109 = vmatpush.bf16.msra.mxu0 %v1096
        %1110 = vmatpush.bf16.msra.mxu0 %v1095
        %1111 = vmatpush.bf16.msra.mxu0 %v1094
        %1112 = vmatpush.bf16.msra.mxu0 %v1093
        %1113 = vmatpush.bf16.msra.mxu0 %v1092
        %1114 = vmatpush.bf16.msra.mxu0 %v1091
        %1115 = vmatmul.bf16.gmra.mxu0 %v802
        %v1116 = vpop.f32.mrf.mxu0
        %v1117 = vadd.f32 %v1057, %v1116
        %v1118 = vpop.f32.mrf.mxu0
        %v1119 = vadd.f32 %v1057, %v1118
        %1120 = vmatmul.bf16.gmra.mxu0 %v803
        %v1121 = vpop.f32.mrf.mxu0
        %v1122 = vadd.f32 %v1057, %v1121
        %v1123 = vpop.f32.mrf.mxu0
        %v1124 = vadd.f32 %v1057, %v1123
        %1125 = vmatmul.bf16.gmra.mxu0 %v804
        %v1126 = vpop.f32.mrf.mxu0
        %v1127 = vadd.f32 %v1057, %v1126
        %v1128 = vpop.f32.mrf.mxu0
        %v1129 = vadd.f32 %v1057, %v1128
        %1130 = vmatmul.bf16.gmra.mxu0 %v805
        %v1131 = vpop.f32.mrf.mxu0
        %v1132 = vadd.f32 %v1057, %v1131
        %v1133 = vpop.f32.mrf.mxu0
        %v1134 = vadd.f32 %v1057, %v1133
        %1135 = vmatmul.bf16.gmra.mxu0 %v806
        %v1136 = vpop.f32.mrf.mxu0
        %v1137 = vadd.f32 %v1057, %v1136
        %v1138 = vpop.f32.mrf.mxu0
        %v1139 = vadd.f32 %v1057, %v1138
        %1140 = vmatmul.bf16.gmra.mxu0 %v807
        %v1141 = vpop.f32.mrf.mxu0
        %v1142 = vadd.f32 %v1057, %v1141
        %v1143 = vpop.f32.mrf.mxu0
        %v1144 = vadd.f32 %v1057, %v1143
        %1145 = vmatmul.bf16.gmra.mxu0 %v808
        %v1146 = vpop.f32.mrf.mxu0
        %v1147 = vadd.f32 %v1057, %v1146
        %v1148 = vpop.f32.mrf.mxu0
        %v1149 = vadd.f32 %v1057, %v1148
        %1150 = vmatmul.bf16.gmra.mxu0 %v809
        %v1151 = vpop.f32.mrf.mxu0
        %v1152 = vadd.f32 %v1057, %v1151
        %v1153 = vpop.f32.mrf.mxu0
        %v1154 = vadd.f32 %v1057, %v1153
        %1155 = vmatmul.bf16.gmra.mxu0 %v810
        %v1156 = vpop.f32.mrf.mxu0
        %v1157 = vadd.f32 %v1057, %v1156
        %v1158 = vpop.f32.mrf.mxu0
        %v1159 = vadd.f32 %v1057, %v1158
        %1160 = vmatmul.bf16.gmra.mxu0 %v811
        %v1161 = vpop.f32.mrf.mxu0
        %v1162 = vadd.f32 %v1057, %v1161
        %v1163 = vpop.f32.mrf.mxu0
        %v1164 = vadd.f32 %v1057, %v1163
        %1165 = vmatmul.bf16.gmra.mxu0 %v812
        %v1166 = vpop.f32.mrf.mxu0
        %v1167 = vadd.f32 %v1057, %v1166
        %v1168 = vpop.f32.mrf.mxu0
        %v1169 = vadd.f32 %v1057, %v1168
        %1170 = vmatmul.bf16.gmra.mxu0 %v813
        %v1171 = vpop.f32.mrf.mxu0
        %v1172 = vadd.f32 %v1057, %v1171
        %v1173 = vpop.f32.mrf.mxu0
        %v1174 = vadd.f32 %v1057, %v1173
        %1175 = vmatmul.bf16.gmra.mxu0 %v814
        %v1176 = vpop.f32.mrf.mxu0
        %v1177 = vadd.f32 %v1057, %v1176
        %v1178 = vpop.f32.mrf.mxu0
        %v1179 = vadd.f32 %v1057, %v1178
        %1180 = vmatmul.bf16.gmra.mxu0 %v815
        %v1181 = vpop.f32.mrf.mxu0
        %v1182 = vadd.f32 %v1057, %v1181
        %v1183 = vpop.f32.mrf.mxu0
        %v1184 = vadd.f32 %v1057, %v1183
        %1185 = vmatmul.bf16.gmra.mxu0 %v816
        %v1186 = vpop.f32.mrf.mxu0
        %v1187 = vadd.f32 %v1057, %v1186
        %v1188 = vpop.f32.mrf.mxu0
        %v1189 = vadd.f32 %v1057, %v1188
        %1190 = vmatmul.bf16.gmra.mxu0 %v817
        %v1191 = vpop.f32.mrf.mxu0
        %v1192 = vadd.f32 %v1057, %v1191
        %v1193 = vpop.f32.mrf.mxu0
        %v1194 = vadd.f32 %v1057, %v1193
        %1195 = vdwg.mxu0
        %1196 = vxpose.xlu0.b32.start [1/16] %v1117, 128
        %1197 = vxpose.xlu0.b32.cont [2/16] %v1119, 128
        %1198 = vxpose.xlu0.b32.cont [3/16] %v1122, 128
        %1199 = vxpose.xlu0.b32.cont [4/16] %v1124, 128
        %1200 = vxpose.xlu0.b32.cont [5/16] %v1127, 128
        %1201 = vxpose.xlu0.b32.cont [6/16] %v1129, 128
        %1202 = vxpose.xlu0.b32.cont [7/16] %v1132, 128
        %1203 = vxpose.xlu0.b32.cont [8/16] %v1134, 128
        %1204 = vxpose.xlu0.b32.cont [9/16] %v1137, 128
        %1205 = vxpose.xlu0.b32.cont [10/16] %v1139, 128
        %1206 = vxpose.xlu0.b32.cont [11/16] %v1142, 128
        %1207 = vxpose.xlu0.b32.cont [12/16] %v1144, 128
        %1208 = vxpose.xlu0.b32.cont [13/16] %v1147, 128
        %1209 = vxpose.xlu0.b32.cont [14/16] %v1149, 128
        %1210 = vxpose.xlu0.b32.cont [15/16] %v1152, 128
        %1211 = vxpose.xlu0.b32.end [16/16] %v1154, 128
        %v1212 = vpop.trf.xlu0
        %v1213 = vpop.trf.xlu0
        %v1214 = vpop.trf.xlu0
        %v1215 = vpop.trf.xlu0
        %v1216 = vpop.trf.xlu0
        %v1217 = vpop.trf.xlu0
        %v1218 = vpop.trf.xlu0
        %v1219 = vpop.trf.xlu0
        %v1220 = vpop.trf.xlu0
        %v1221 = vpop.trf.xlu0
        %v1222 = vpop.trf.xlu0
        %v1223 = vpop.trf.xlu0
        %v1224 = vpop.trf.xlu0
        %v1225 = vpop.trf.xlu0
        %v1226 = vpop.trf.xlu0
        %v1227 = vpop.trf.xlu0
        %1228 = vxpose.xlu0.b32.start [1/16] %v1157, 128
        %1229 = vxpose.xlu0.b32.cont [2/16] %v1159, 128
        %1230 = vxpose.xlu0.b32.cont [3/16] %v1162, 128
        %1231 = vxpose.xlu0.b32.cont [4/16] %v1164, 128
        %1232 = vxpose.xlu0.b32.cont [5/16] %v1167, 128
        %1233 = vxpose.xlu0.b32.cont [6/16] %v1169, 128
        %1234 = vxpose.xlu0.b32.cont [7/16] %v1172, 128
        %1235 = vxpose.xlu0.b32.cont [8/16] %v1174, 128
        %1236 = vxpose.xlu0.b32.cont [9/16] %v1177, 128
        %1237 = vxpose.xlu0.b32.cont [10/16] %v1179, 128
        %1238 = vxpose.xlu0.b32.cont [11/16] %v1182, 128
        %1239 = vxpose.xlu0.b32.cont [12/16] %v1184, 128
        %1240 = vxpose.xlu0.b32.cont [13/16] %v1187, 128
        %1241 = vxpose.xlu0.b32.cont [14/16] %v1189, 128
        %1242 = vxpose.xlu0.b32.cont [15/16] %v1192, 128
        %1243 = vxpose.xlu0.b32.end [16/16] %v1194, 128
        %v1244 = vpop.trf.xlu0
        %v1245 = vpop.trf.xlu0
        %v1246 = vpop.trf.xlu0
        %v1247 = vpop.trf.xlu0
        %v1248 = vpop.trf.xlu0
        %v1249 = vpop.trf.xlu0
        %v1250 = vpop.trf.xlu0
        %v1251 = vpop.trf.xlu0
        %v1252 = vpop.trf.xlu0
        %v1253 = vpop.trf.xlu0
        %v1254 = vpop.trf.xlu0
        %v1255 = vpop.trf.xlu0
        %v1256 = vpop.trf.xlu0
        %v1257 = vpop.trf.xlu0
        %v1258 = vpop.trf.xlu0
        %v1259 = vpop.trf.xlu0
        %v1260 = vpack.c.bf16 %v1244, %v1212
        %v1261 = vpack.c.bf16 %v1245, %v1213
        %v1262 = vpack.c.bf16 %v1246, %v1214
        %v1263 = vpack.c.bf16 %v1247, %v1215
        %v1264 = vpack.c.bf16 %v1248, %v1216
        %v1265 = vpack.c.bf16 %v1249, %v1217
        %v1266 = vpack.c.bf16 %v1250, %v1218
        %v1267 = vpack.c.bf16 %v1251, %v1219
        %v1268 = vpack.c.bf16 %v1252, %v1220
        %v1269 = vpack.c.bf16 %v1253, %v1221
        %v1270 = vpack.c.bf16 %v1254, %v1222
        %v1271 = vpack.c.bf16 %v1255, %v1223
        %v1272 = vpack.c.bf16 %v1256, %v1224
        %v1273 = vpack.c.bf16 %v1257, %v1225
        %v1274 = vpack.c.bf16 %v1258, %v1226
        %v1275 = vpack.c.bf16 %v1259, %v1227
        %1276 = vst [vmem:[#allocation3] sm:$0xff] %v1260
        %1277 = vst [vmem:[#allocation3 + $0x8] sm:$0xff] %v1261
        %1278 = vst [vmem:[#allocation3 + $0x10] sm:$0xff] %v1262
        %1279 = vst [vmem:[#allocation3 + $0x18] sm:$0xff] %v1263
        %1280 = vst [vmem:[#allocation3 + $0x20] sm:$0xff] %v1264
        %1281 = vst [vmem:[#allocation3 + $0x28] sm:$0xff] %v1265
        %1282 = vst [vmem:[#allocation3 + $0x30] sm:$0xff] %v1266
        %1283 = vst [vmem:[#allocation3 + $0x38] sm:$0xff] %v1267
        %1284 = vst [vmem:[#allocation3 + $0x40] sm:$0xff] %v1268
        %1285 = vst [vmem:[#allocation3 + $0x48] sm:$0xff] %v1269
        %1286 = vst [vmem:[#allocation3 + $0x50] sm:$0xff] %v1270
        %1287 = vst [vmem:[#allocation3 + $0x58] sm:$0xff] %v1271
        %1288 = vst [vmem:[#allocation3 + $0x60] sm:$0xff] %v1272
        %1289 = vst [vmem:[#allocation3 + $0x68] sm:$0xff] %v1273
        %1290 = vst [vmem:[#allocation3 + $0x70] sm:$0xff] %v1274
        %1291 = vst [vmem:[#allocation3 + $0x78] sm:$0xff] %v1275
        %v1292 = vld [vmem:[#allocation14] sm:$0xf]
        %v1293 = vld [vmem:[#allocation14 + $0x4] sm:$0xf]
        %v1294 = vld [vmem:[#allocation14 + $0x8] sm:$0xf]
        %v1295 = vld [vmem:[#allocation14 + $0xc] sm:$0xf]
        %v1296 = vld [vmem:[#allocation14 + $0x10] sm:$0xf]
        %v1297 = vld [vmem:[#allocation14 + $0x14] sm:$0xf]
        %v1298 = vld [vmem:[#allocation14 + $0x18] sm:$0xf]
        %v1299 = vld [vmem:[#allocation14 + $0x1c] sm:$0xf]
        %v1300 = vld [vmem:[#allocation14 + $0x20] sm:$0xf]
        %v1301 = vld [vmem:[#allocation14 + $0x24] sm:$0xf]
        %v1302 = vld [vmem:[#allocation14 + $0x28] sm:$0xf]
        %v1303 = vld [vmem:[#allocation14 + $0x2c] sm:$0xf]
        %v1304 = vld [vmem:[#allocation14 + $0x30] sm:$0xf]
        %v1305 = vld [vmem:[#allocation14 + $0x34] sm:$0xf]
        %v1306 = vld [vmem:[#allocation14 + $0x38] sm:$0xf]
        %v1307 = vld [vmem:[#allocation14 + $0x3c] sm:$0xf]
        %v1308 = vld [vmem:[%s9] sm:$0x1]
        %v1310 = vperm.slane %v1308, 0
        %v1328 = vunpack.c.l.b16 %v1292
        %v1329 = vunpack.c.l.b16 %v1293
        %v1330 = vunpack.c.l.b16 %v1294
        %v1331 = vunpack.c.l.b16 %v1295
        %v1332 = vunpack.c.l.b16 %v1296
        %v1333 = vunpack.c.l.b16 %v1297
        %v1334 = vunpack.c.l.b16 %v1298
        %v1335 = vunpack.c.l.b16 %v1299
        %v1336 = vunpack.c.l.b16 %v1300
        %v1337 = vunpack.c.l.b16 %v1301
        %v1338 = vunpack.c.l.b16 %v1302
        %v1339 = vunpack.c.l.b16 %v1303
        %v1340 = vunpack.c.l.b16 %v1304
        %v1341 = vunpack.c.l.b16 %v1305
        %v1342 = vunpack.c.l.b16 %v1306
        %v1343 = vunpack.c.l.b16 %v1307
        %v1344 = vpack.c.b16 %v1329, %v1328
        %v1345 = vpack.c.b16 %v1331, %v1330
        %v1346 = vpack.c.b16 %v1333, %v1332
        %v1347 = vpack.c.b16 %v1335, %v1334
        %v1348 = vpack.c.b16 %v1337, %v1336
        %v1349 = vpack.c.b16 %v1339, %v1338
        %v1350 = vpack.c.b16 %v1341, %v1340
        %v1351 = vpack.c.b16 %v1343, %v1342
        %1360 = vmatpush.bf16.msra.mxu0 %v1351
        %1361 = vmatpush.bf16.msra.mxu0 %v1350
        %1362 = vmatpush.bf16.msra.mxu0 %v1349
        %1363 = vmatpush.bf16.msra.mxu0 %v1348
        %1364 = vmatpush.bf16.msra.mxu0 %v1347
        %1365 = vmatpush.bf16.msra.mxu0 %v1346
        %1366 = vmatpush.bf16.msra.mxu0 %v1345
        %1367 = vmatpush.bf16.msra.mxu0 %v1344
        %1368 = vmatmul.bf16.gmra.mxu0 %v802
        %v1369 = vpop.f32.mrf.mxu0
        %v1370 = vadd.f32 %v1310, %v1369
        %v1371 = vpop.f32.mrf.mxu0
        %v1372 = vadd.f32 %v1310, %v1371
        %1373 = vmatmul.bf16.gmra.mxu0 %v803
        %v1374 = vpop.f32.mrf.mxu0
        %v1375 = vadd.f32 %v1310, %v1374
        %v1376 = vpop.f32.mrf.mxu0
        %v1377 = vadd.f32 %v1310, %v1376
        %1378 = vmatmul.bf16.gmra.mxu0 %v804
        %v1379 = vpop.f32.mrf.mxu0
        %v1380 = vadd.f32 %v1310, %v1379
        %v1381 = vpop.f32.mrf.mxu0
        %v1382 = vadd.f32 %v1310, %v1381
        %1383 = vmatmul.bf16.gmra.mxu0 %v805
        %v1384 = vpop.f32.mrf.mxu0
        %v1385 = vadd.f32 %v1310, %v1384
        %v1386 = vpop.f32.mrf.mxu0
        %v1387 = vadd.f32 %v1310, %v1386
        %1388 = vmatmul.bf16.gmra.mxu0 %v806
        %v1389 = vpop.f32.mrf.mxu0
        %v1390 = vadd.f32 %v1310, %v1389
        %v1391 = vpop.f32.mrf.mxu0
        %v1392 = vadd.f32 %v1310, %v1391
        %1393 = vmatmul.bf16.gmra.mxu0 %v807
        %v1394 = vpop.f32.mrf.mxu0
        %v1395 = vadd.f32 %v1310, %v1394
        %v1396 = vpop.f32.mrf.mxu0
        %v1397 = vadd.f32 %v1310, %v1396
        %1398 = vmatmul.bf16.gmra.mxu0 %v808
        %v1399 = vpop.f32.mrf.mxu0
        %v1400 = vadd.f32 %v1310, %v1399
        %v1401 = vpop.f32.mrf.mxu0
        %v1402 = vadd.f32 %v1310, %v1401
        %1403 = vmatmul.bf16.gmra.mxu0 %v809
        %v1404 = vpop.f32.mrf.mxu0
        %v1405 = vadd.f32 %v1310, %v1404
        %v1406 = vpop.f32.mrf.mxu0
        %v1407 = vadd.f32 %v1310, %v1406
        %1408 = vmatmul.bf16.gmra.mxu0 %v810
        %v1409 = vpop.f32.mrf.mxu0
        %v1410 = vadd.f32 %v1310, %v1409
        %v1411 = vpop.f32.mrf.mxu0
        %v1412 = vadd.f32 %v1310, %v1411
        %1413 = vmatmul.bf16.gmra.mxu0 %v811
        %v1414 = vpop.f32.mrf.mxu0
        %v1415 = vadd.f32 %v1310, %v1414
        %v1416 = vpop.f32.mrf.mxu0
        %v1417 = vadd.f32 %v1310, %v1416
        %1418 = vmatmul.bf16.gmra.mxu0 %v812
        %v1419 = vpop.f32.mrf.mxu0
        %v1420 = vadd.f32 %v1310, %v1419
        %v1421 = vpop.f32.mrf.mxu0
        %v1422 = vadd.f32 %v1310, %v1421
        %1423 = vmatmul.bf16.gmra.mxu0 %v813
        %v1424 = vpop.f32.mrf.mxu0
        %v1425 = vadd.f32 %v1310, %v1424
        %v1426 = vpop.f32.mrf.mxu0
        %v1427 = vadd.f32 %v1310, %v1426
        %1428 = vmatmul.bf16.gmra.mxu0 %v814
        %v1429 = vpop.f32.mrf.mxu0
        %v1430 = vadd.f32 %v1310, %v1429
        %v1431 = vpop.f32.mrf.mxu0
        %v1432 = vadd.f32 %v1310, %v1431
        %1433 = vmatmul.bf16.gmra.mxu0 %v815
        %v1434 = vpop.f32.mrf.mxu0
        %v1435 = vadd.f32 %v1310, %v1434
        %v1436 = vpop.f32.mrf.mxu0
        %v1437 = vadd.f32 %v1310, %v1436
        %1438 = vmatmul.bf16.gmra.mxu0 %v816
        %v1439 = vpop.f32.mrf.mxu0
        %v1440 = vadd.f32 %v1310, %v1439
        %v1441 = vpop.f32.mrf.mxu0
        %v1442 = vadd.f32 %v1310, %v1441
        %1443 = vmatmul.bf16.gmra.mxu0 %v817
        %v1444 = vpop.f32.mrf.mxu0
        %v1445 = vadd.f32 %v1310, %v1444
        %v1446 = vpop.f32.mrf.mxu0
        %v1447 = vadd.f32 %v1310, %v1446
        %1448 = vdwg.mxu0
        %v1449 = vpack.c.bf16 %v1370, %v1370
        %v1450 = vpack.c.bf16 %v1372, %v1372
        %v1451 = vpack.c.bf16 %v1375, %v1375
        %v1452 = vpack.c.bf16 %v1377, %v1377
        %v1453 = vpack.c.bf16 %v1380, %v1380
        %v1454 = vpack.c.bf16 %v1382, %v1382
        %v1455 = vpack.c.bf16 %v1385, %v1385
        %v1456 = vpack.c.bf16 %v1387, %v1387
        %v1457 = vpack.c.bf16 %v1390, %v1390
        %v1458 = vpack.c.bf16 %v1392, %v1392
        %v1459 = vpack.c.bf16 %v1395, %v1395
        %v1460 = vpack.c.bf16 %v1397, %v1397
        %v1461 = vpack.c.bf16 %v1400, %v1400
        %v1462 = vpack.c.bf16 %v1402, %v1402
        %v1463 = vpack.c.bf16 %v1405, %v1405
        %v1464 = vpack.c.bf16 %v1407, %v1407
        %v1465 = vpack.c.bf16 %v1410, %v1410
        %v1466 = vpack.c.bf16 %v1412, %v1412
        %v1467 = vpack.c.bf16 %v1415, %v1415
        %v1468 = vpack.c.bf16 %v1417, %v1417
        %v1469 = vpack.c.bf16 %v1420, %v1420
        %v1470 = vpack.c.bf16 %v1422, %v1422
        %v1471 = vpack.c.bf16 %v1425, %v1425
        %v1472 = vpack.c.bf16 %v1427, %v1427
        %v1473 = vpack.c.bf16 %v1430, %v1430
        %v1474 = vpack.c.bf16 %v1432, %v1432
        %v1475 = vpack.c.bf16 %v1435, %v1435
        %v1476 = vpack.c.bf16 %v1437, %v1437
        %v1477 = vpack.c.bf16 %v1440, %v1440
        %v1478 = vpack.c.bf16 %v1442, %v1442
        %v1479 = vpack.c.bf16 %v1445, %v1445
        %v1480 = vpack.c.bf16 %v1447, %v1447
        %1481 = vst [vmem:[#allocation4] sm:$0xf] %v1449
        %1482 = vst [vmem:[#allocation4 + $0x4] sm:$0xf] %v1450
        %1483 = vst [vmem:[#allocation4 + $0x8] sm:$0xf] %v1451
        %1484 = vst [vmem:[#allocation4 + $0xc] sm:$0xf] %v1452
        %1485 = vst [vmem:[#allocation4 + $0x10] sm:$0xf] %v1453
        %1486 = vst [vmem:[#allocation4 + $0x14] sm:$0xf] %v1454
        %1487 = vst [vmem:[#allocation4 + $0x18] sm:$0xf] %v1455
        %1488 = vst [vmem:[#allocation4 + $0x1c] sm:$0xf] %v1456
        %1489 = vst [vmem:[#allocation4 + $0x20] sm:$0xf] %v1457
        %1490 = vst [vmem:[#allocation4 + $0x24] sm:$0xf] %v1458
        %1491 = vst [vmem:[#allocation4 + $0x28] sm:$0xf] %v1459
        %1492 = vst [vmem:[#allocation4 + $0x2c] sm:$0xf] %v1460
        %1493 = vst [vmem:[#allocation4 + $0x30] sm:$0xf] %v1461
        %1494 = vst [vmem:[#allocation4 + $0x34] sm:$0xf] %v1462
        %1495 = vst [vmem:[#allocation4 + $0x38] sm:$0xf] %v1463
        %1496 = vst [vmem:[#allocation4 + $0x3c] sm:$0xf] %v1464
        %1497 = vst [vmem:[#allocation4 + $0x40] sm:$0xf] %v1465
        %1498 = vst [vmem:[#allocation4 + $0x44] sm:$0xf] %v1466
        %1499 = vst [vmem:[#allocation4 + $0x48] sm:$0xf] %v1467
        %1500 = vst [vmem:[#allocation4 + $0x4c] sm:$0xf] %v1468
        %1501 = vst [vmem:[#allocation4 + $0x50] sm:$0xf] %v1469
        %1502 = vst [vmem:[#allocation4 + $0x54] sm:$0xf] %v1470
        %1503 = vst [vmem:[#allocation4 + $0x58] sm:$0xf] %v1471
        %1504 = vst [vmem:[#allocation4 + $0x5c] sm:$0xf] %v1472
        %1505 = vst [vmem:[#allocation4 + $0x60] sm:$0xf] %v1473
        %1506 = vst [vmem:[#allocation4 + $0x64] sm:$0xf] %v1474
        %1507 = vst [vmem:[#allocation4 + $0x68] sm:$0xf] %v1475
        %1508 = vst [vmem:[#allocation4 + $0x6c] sm:$0xf] %v1476
        %1509 = vst [vmem:[#allocation4 + $0x70] sm:$0xf] %v1477
        %1510 = vst [vmem:[#allocation4 + $0x74] sm:$0xf] %v1478
        %1511 = vst [vmem:[#allocation4 + $0x78] sm:$0xf] %v1479
        %1512 = vst [vmem:[#allocation4 + $0x7c] sm:$0xf] %v1480
        %v1513 = vld [vmem:[#allocation16] sm:$0xf]
        %v1514 = vld [vmem:[#allocation16 + $0x4] sm:$0xf]
        %v1515 = vld [vmem:[#allocation16 + $0x8] sm:$0xf]
        %v1516 = vld [vmem:[#allocation16 + $0xc] sm:$0xf]
        %v1517 = vld [vmem:[#allocation16 + $0x10] sm:$0xf]
        %v1518 = vld [vmem:[#allocation16 + $0x14] sm:$0xf]
        %v1519 = vld [vmem:[#allocation16 + $0x18] sm:$0xf]
        %v1520 = vld [vmem:[#allocation16 + $0x1c] sm:$0xf]
        %v1521 = vld [vmem:[#allocation16 + $0x20] sm:$0xf]
        %v1522 = vld [vmem:[#allocation16 + $0x24] sm:$0xf]
        %v1523 = vld [vmem:[#allocation16 + $0x28] sm:$0xf]
        %v1524 = vld [vmem:[#allocation16 + $0x2c] sm:$0xf]
        %v1525 = vld [vmem:[#allocation16 + $0x30] sm:$0xf]
        %v1526 = vld [vmem:[#allocation16 + $0x34] sm:$0xf]
        %v1527 = vld [vmem:[#allocation16 + $0x38] sm:$0xf]
        %v1528 = vld [vmem:[#allocation16 + $0x3c] sm:$0xf]
        %v1529 = vld [vmem:[%s11] sm:$0x1]
        %v1530 = vld [vmem:[#allocation2] sm:$0xf]
        %v1531 = vld [vmem:[#allocation2 + $0x4] sm:$0xf]
        %v1532 = vld [vmem:[#allocation2 + $0x8] sm:$0xf]
        %v1533 = vld [vmem:[#allocation2 + $0xc] sm:$0xf]
        %v1534 = vld [vmem:[#allocation2 + $0x10] sm:$0xf]
        %v1535 = vld [vmem:[#allocation2 + $0x14] sm:$0xf]
        %v1536 = vld [vmem:[#allocation2 + $0x18] sm:$0xf]
        %v1537 = vld [vmem:[#allocation2 + $0x1c] sm:$0xf]
        %v1538 = vld [vmem:[#allocation2 + $0x20] sm:$0xf]
        %v1539 = vld [vmem:[#allocation2 + $0x24] sm:$0xf]
        %v1540 = vld [vmem:[#allocation2 + $0x28] sm:$0xf]
        %v1541 = vld [vmem:[#allocation2 + $0x2c] sm:$0xf]
        %v1542 = vld [vmem:[#allocation2 + $0x30] sm:$0xf]
        %v1543 = vld [vmem:[#allocation2 + $0x34] sm:$0xf]
        %v1544 = vld [vmem:[#allocation2 + $0x38] sm:$0xf]
        %v1545 = vld [vmem:[#allocation2 + $0x3c] sm:$0xf]
        %v1546 = vld [vmem:[#allocation2 + $0x40] sm:$0xf]
        %v1547 = vld [vmem:[#allocation2 + $0x44] sm:$0xf]
        %v1548 = vld [vmem:[#allocation2 + $0x48] sm:$0xf]
        %v1549 = vld [vmem:[#allocation2 + $0x4c] sm:$0xf]
        %v1550 = vld [vmem:[#allocation2 + $0x50] sm:$0xf]
        %v1551 = vld [vmem:[#allocation2 + $0x54] sm:$0xf]
        %v1552 = vld [vmem:[#allocation2 + $0x58] sm:$0xf]
        %v1553 = vld [vmem:[#allocation2 + $0x5c] sm:$0xf]
        %v1554 = vld [vmem:[#allocation2 + $0x60] sm:$0xf]
        %v1555 = vld [vmem:[#allocation2 + $0x64] sm:$0xf]
        %v1556 = vld [vmem:[#allocation2 + $0x68] sm:$0xf]
        %v1557 = vld [vmem:[#allocation2 + $0x6c] sm:$0xf]
        %v1558 = vld [vmem:[#allocation2 + $0x70] sm:$0xf]
        %v1559 = vld [vmem:[#allocation2 + $0x74] sm:$0xf]
        %v1560 = vld [vmem:[#allocation2 + $0x78] sm:$0xf]
        %v1561 = vld [vmem:[#allocation2 + $0x7c] sm:$0xf]
        %v1562 = vld [vmem:[#allocation3] sm:$0xff]
        %v1563 = vld [vmem:[#allocation3 + $0x8] sm:$0xff]
        %v1564 = vld [vmem:[#allocation3 + $0x10] sm:$0xff]
        %v1565 = vld [vmem:[#allocation3 + $0x18] sm:$0xff]
        %v1566 = vld [vmem:[#allocation3 + $0x20] sm:$0xff]
        %v1567 = vld [vmem:[#allocation3 + $0x28] sm:$0xff]
        %v1568 = vld [vmem:[#allocation3 + $0x30] sm:$0xff]
        %v1569 = vld [vmem:[#allocation3 + $0x38] sm:$0xff]
        %v1570 = vld [vmem:[#allocation3 + $0x40] sm:$0xff]
        %v1571 = vld [vmem:[#allocation3 + $0x48] sm:$0xff]
        %v1572 = vld [vmem:[#allocation3 + $0x50] sm:$0xff]
        %v1573 = vld [vmem:[#allocation3 + $0x58] sm:$0xff]
        %v1574 = vld [vmem:[#allocation3 + $0x60] sm:$0xff]
        %v1575 = vld [vmem:[#allocation3 + $0x68] sm:$0xff]
        %v1576 = vld [vmem:[#allocation3 + $0x70] sm:$0xff]
        %v1577 = vld [vmem:[#allocation3 + $0x78] sm:$0xff]
        %v1610 = vunpack.c.l.b16 %v1530
        %v1611 = vunpack.c.l.b16 %v1531
        %v1612 = vunpack.c.l.b16 %v1532
        %v1613 = vunpack.c.l.b16 %v1533
        %v1614 = vunpack.c.l.b16 %v1534
        %v1615 = vunpack.c.l.b16 %v1535
        %v1616 = vunpack.c.l.b16 %v1536
        %v1617 = vunpack.c.l.b16 %v1537
        %v1618 = vunpack.c.l.b16 %v1538
        %v1619 = vunpack.c.l.b16 %v1539
        %v1620 = vunpack.c.l.b16 %v1540
        %v1621 = vunpack.c.l.b16 %v1541
        %v1622 = vunpack.c.l.b16 %v1542
        %v1623 = vunpack.c.l.b16 %v1543
        %v1624 = vunpack.c.l.b16 %v1544
        %v1625 = vunpack.c.l.b16 %v1545
        %v1626 = vunpack.c.l.b16 %v1546
        %v1627 = vunpack.c.l.b16 %v1547
        %v1628 = vunpack.c.l.b16 %v1548
        %v1629 = vunpack.c.l.b16 %v1549
        %v1630 = vunpack.c.l.b16 %v1550
        %v1631 = vunpack.c.l.b16 %v1551
        %v1632 = vunpack.c.l.b16 %v1552
        %v1633 = vunpack.c.l.b16 %v1553
        %v1634 = vunpack.c.l.b16 %v1554
        %v1635 = vunpack.c.l.b16 %v1555
        %v1636 = vunpack.c.l.b16 %v1556
        %v1637 = vunpack.c.l.b16 %v1557
        %v1638 = vunpack.c.l.b16 %v1558
        %v1639 = vunpack.c.l.b16 %v1559
        %v1640 = vunpack.c.l.b16 %v1560
        %v1641 = vunpack.c.l.b16 %v1561
        %v1642 = vpack.c.b16 %v1611, %v1610
        %v1643 = vpack.c.b16 %v1613, %v1612
        %v1644 = vpack.c.b16 %v1615, %v1614
        %v1645 = vpack.c.b16 %v1617, %v1616
        %v1646 = vpack.c.b16 %v1619, %v1618
        %v1647 = vpack.c.b16 %v1621, %v1620
        %v1648 = vpack.c.b16 %v1623, %v1622
        %v1649 = vpack.c.b16 %v1625, %v1624
        %v1650 = vpack.c.b16 %v1627, %v1626
        %v1651 = vpack.c.b16 %v1629, %v1628
        %v1652 = vpack.c.b16 %v1631, %v1630
        %v1653 = vpack.c.b16 %v1633, %v1632
        %v1654 = vpack.c.b16 %v1635, %v1634
        %v1655 = vpack.c.b16 %v1637, %v1636
        %v1656 = vpack.c.b16 %v1639, %v1638
        %v1657 = vpack.c.b16 %v1641, %v1640
        %v1690 = vunpack.c.l.b16 %v1562
        %v1691 = vunpack.c.h.b16 %v1562
        %v1692 = vunpack.c.l.b16 %v1563
        %v1693 = vunpack.c.h.b16 %v1563
        %v1694 = vunpack.c.l.b16 %v1564
        %v1695 = vunpack.c.h.b16 %v1564
        %v1696 = vunpack.c.l.b16 %v1565
        %v1697 = vunpack.c.h.b16 %v1565
        %v1698 = vunpack.c.l.b16 %v1566
        %v1699 = vunpack.c.h.b16 %v1566
        %v1700 = vunpack.c.l.b16 %v1567
        %v1701 = vunpack.c.h.b16 %v1567
        %v1702 = vunpack.c.l.b16 %v1568
        %v1703 = vunpack.c.h.b16 %v1568
        %v1704 = vunpack.c.l.b16 %v1569
        %v1705 = vunpack.c.h.b16 %v1569
        %v1706 = vunpack.c.l.b16 %v1570
        %v1707 = vunpack.c.h.b16 %v1570
        %v1708 = vunpack.c.l.b16 %v1571
        %v1709 = vunpack.c.h.b16 %v1571
        %v1710 = vunpack.c.l.b16 %v1572
        %v1711 = vunpack.c.h.b16 %v1572
        %v1712 = vunpack.c.l.b16 %v1573
        %v1713 = vunpack.c.h.b16 %v1573
        %v1714 = vunpack.c.l.b16 %v1574
        %v1715 = vunpack.c.h.b16 %v1574
        %v1716 = vunpack.c.l.b16 %v1575
        %v1717 = vunpack.c.h.b16 %v1575
        %v1718 = vunpack.c.l.b16 %v1576
        %v1719 = vunpack.c.h.b16 %v1576
        %v1720 = vunpack.c.l.b16 %v1577
        %v1721 = vunpack.c.h.b16 %v1577
        %v1722 = vpack.c.b16 %v1692, %v1690
        %v1723 = vpack.c.b16 %v1693, %v1691
        %v1724 = vpack.c.b16 %v1696, %v1694
        %v1725 = vpack.c.b16 %v1697, %v1695
        %v1726 = vpack.c.b16 %v1700, %v1698
        %v1727 = vpack.c.b16 %v1701, %v1699
        %v1728 = vpack.c.b16 %v1704, %v1702
        %v1729 = vpack.c.b16 %v1705, %v1703
        %v1730 = vpack.c.b16 %v1708, %v1706
        %v1731 = vpack.c.b16 %v1709, %v1707
        %v1732 = vpack.c.b16 %v1712, %v1710
        %v1733 = vpack.c.b16 %v1713, %v1711
        %v1734 = vpack.c.b16 %v1716, %v1714
        %v1735 = vpack.c.b16 %v1717, %v1715
        %v1736 = vpack.c.b16 %v1720, %v1718
        %v1737 = vpack.c.b16 %v1721, %v1719
        %1754 = vmatpush.bf16.msra.mxu0 %v1736
        %1755 = vmatpush.bf16.msra.mxu0 %v1734
        %1756 = vmatpush.bf16.msra.mxu0 %v1732
        %1757 = vmatpush.bf16.msra.mxu0 %v1730
        %1758 = vmatpush.bf16.msra.mxu0 %v1728
        %1759 = vmatpush.bf16.msra.mxu0 %v1726
        %1760 = vmatpush.bf16.msra.mxu0 %v1724
        %1761 = vmatpush.bf16.msra.mxu0 %v1722
        %1762 = vmatmul.bf16.gmra.mxu0 %v1642
        %v1763 = vpop.f32.mrf.mxu0
        %v1764 = vadd.f32 0.0, %v1763
        %v1765 = vpop.f32.mrf.mxu0
        %v1766 = vadd.f32 0.0, %v1765
        %1767 = vmatmul.bf16.gmra.mxu0 %v1643
        %v1768 = vpop.f32.mrf.mxu0
        %v1769 = vadd.f32 0.0, %v1768
        %v1770 = vpop.f32.mrf.mxu0
        %v1771 = vadd.f32 0.0, %v1770
        %1772 = vmatmul.bf16.gmra.mxu0 %v1644
        %v1773 = vpop.f32.mrf.mxu0
        %v1774 = vadd.f32 0.0, %v1773
        %v1775 = vpop.f32.mrf.mxu0
        %v1776 = vadd.f32 0.0, %v1775
        %1777 = vmatmul.bf16.gmra.mxu0 %v1645
        %v1778 = vpop.f32.mrf.mxu0
        %v1779 = vadd.f32 0.0, %v1778
        %v1780 = vpop.f32.mrf.mxu0
        %v1781 = vadd.f32 0.0, %v1780
        %1782 = vmatmul.bf16.gmra.mxu0 %v1646
        %v1783 = vpop.f32.mrf.mxu0
        %v1784 = vadd.f32 0.0, %v1783
        %v1785 = vpop.f32.mrf.mxu0
        %v1786 = vadd.f32 0.0, %v1785
        %1787 = vmatmul.bf16.gmra.mxu0 %v1647
        %v1788 = vpop.f32.mrf.mxu0
        %v1789 = vadd.f32 0.0, %v1788
        %v1790 = vpop.f32.mrf.mxu0
        %v1791 = vadd.f32 0.0, %v1790
        %1792 = vmatmul.bf16.gmra.mxu0 %v1648
        %v1793 = vpop.f32.mrf.mxu0
        %v1794 = vadd.f32 0.0, %v1793
        %v1795 = vpop.f32.mrf.mxu0
        %v1796 = vadd.f32 0.0, %v1795
        %1797 = vmatmul.bf16.gmra.mxu0 %v1649
        %v1798 = vpop.f32.mrf.mxu0
        %v1799 = vadd.f32 0.0, %v1798
        %v1800 = vpop.f32.mrf.mxu0
        %v1801 = vadd.f32 0.0, %v1800
        %1802 = vmatmul.bf16.gmra.mxu0 %v1650
        %v1803 = vpop.f32.mrf.mxu0
        %v1804 = vadd.f32 0.0, %v1803
        %v1805 = vpop.f32.mrf.mxu0
        %v1806 = vadd.f32 0.0, %v1805
        %1807 = vmatmul.bf16.gmra.mxu0 %v1651
        %v1808 = vpop.f32.mrf.mxu0
        %v1809 = vadd.f32 0.0, %v1808
        %v1810 = vpop.f32.mrf.mxu0
        %v1811 = vadd.f32 0.0, %v1810
        %1812 = vmatmul.bf16.gmra.mxu0 %v1652
        %v1813 = vpop.f32.mrf.mxu0
        %v1814 = vadd.f32 0.0, %v1813
        %v1815 = vpop.f32.mrf.mxu0
        %v1816 = vadd.f32 0.0, %v1815
        %1817 = vmatmul.bf16.gmra.mxu0 %v1653
        %v1818 = vpop.f32.mrf.mxu0
        %v1819 = vadd.f32 0.0, %v1818
        %v1820 = vpop.f32.mrf.mxu0
        %v1821 = vadd.f32 0.0, %v1820
        %1822 = vmatmul.bf16.gmra.mxu0 %v1654
        %v1823 = vpop.f32.mrf.mxu0
        %v1824 = vadd.f32 0.0, %v1823
        %v1825 = vpop.f32.mrf.mxu0
        %v1826 = vadd.f32 0.0, %v1825
        %1827 = vmatmul.bf16.gmra.mxu0 %v1655
        %v1828 = vpop.f32.mrf.mxu0
        %v1829 = vadd.f32 0.0, %v1828
        %v1830 = vpop.f32.mrf.mxu0
        %v1831 = vadd.f32 0.0, %v1830
        %1832 = vmatmul.bf16.gmra.mxu0 %v1656
        %v1833 = vpop.f32.mrf.mxu0
        %v1834 = vadd.f32 0.0, %v1833
        %v1835 = vpop.f32.mrf.mxu0
        %v1836 = vadd.f32 0.0, %v1835
        %1837 = vmatmul.bf16.gmra.mxu0 %v1657
        %v1838 = vpop.f32.mrf.mxu0
        %v1839 = vadd.f32 0.0, %v1838
        %v1840 = vpop.f32.mrf.mxu0
        %v1841 = vadd.f32 0.0, %v1840
        %1842 = vdwg.mxu0
        %1843 = vmatpush.bf16.msra.mxu0 %v1737
        %1844 = vmatpush.bf16.msra.mxu0 %v1735
        %1845 = vmatpush.bf16.msra.mxu0 %v1733
        %1846 = vmatpush.bf16.msra.mxu0 %v1731
        %1847 = vmatpush.bf16.msra.mxu0 %v1729
        %1848 = vmatpush.bf16.msra.mxu0 %v1727
        %1849 = vmatpush.bf16.msra.mxu0 %v1725
        %1850 = vmatpush.bf16.msra.mxu0 %v1723
        %1851 = vmatmul.bf16.gmra.mxu0 %v1642
        %v1852 = vpop.f32.mrf.mxu0
        %v1853 = vadd.f32 0.0, %v1852
        %v1854 = vpop.f32.mrf.mxu0
        %v1855 = vadd.f32 0.0, %v1854
        %1856 = vmatmul.bf16.gmra.mxu0 %v1643
        %v1857 = vpop.f32.mrf.mxu0
        %v1858 = vadd.f32 0.0, %v1857
        %v1859 = vpop.f32.mrf.mxu0
        %v1860 = vadd.f32 0.0, %v1859
        %1861 = vmatmul.bf16.gmra.mxu0 %v1644
        %v1862 = vpop.f32.mrf.mxu0
        %v1863 = vadd.f32 0.0, %v1862
        %v1864 = vpop.f32.mrf.mxu0
        %v1865 = vadd.f32 0.0, %v1864
        %1866 = vmatmul.bf16.gmra.mxu0 %v1645
        %v1867 = vpop.f32.mrf.mxu0
        %v1868 = vadd.f32 0.0, %v1867
        %v1869 = vpop.f32.mrf.mxu0
        %v1870 = vadd.f32 0.0, %v1869
        %1871 = vmatmul.bf16.gmra.mxu0 %v1646
        %v1872 = vpop.f32.mrf.mxu0
        %v1873 = vadd.f32 0.0, %v1872
        %v1874 = vpop.f32.mrf.mxu0
        %v1875 = vadd.f32 0.0, %v1874
        %1876 = vmatmul.bf16.gmra.mxu0 %v1647
        %v1877 = vpop.f32.mrf.mxu0
        %v1878 = vadd.f32 0.0, %v1877
        %v1879 = vpop.f32.mrf.mxu0
        %v1880 = vadd.f32 0.0, %v1879
        %1881 = vmatmul.bf16.gmra.mxu0 %v1648
        %v1882 = vpop.f32.mrf.mxu0
        %v1883 = vadd.f32 0.0, %v1882
        %v1884 = vpop.f32.mrf.mxu0
        %v1885 = vadd.f32 0.0, %v1884
        %1886 = vmatmul.bf16.gmra.mxu0 %v1649
        %v1887 = vpop.f32.mrf.mxu0
        %v1888 = vadd.f32 0.0, %v1887
        %v1889 = vpop.f32.mrf.mxu0
        %v1890 = vadd.f32 0.0, %v1889
        %1891 = vmatmul.bf16.gmra.mxu0 %v1650
        %v1892 = vpop.f32.mrf.mxu0
        %v1893 = vadd.f32 0.0, %v1892
        %v1894 = vpop.f32.mrf.mxu0
        %v1895 = vadd.f32 0.0, %v1894
        %1896 = vmatmul.bf16.gmra.mxu0 %v1651
        %v1897 = vpop.f32.mrf.mxu0
        %v1898 = vadd.f32 0.0, %v1897
        %v1899 = vpop.f32.mrf.mxu0
        %v1900 = vadd.f32 0.0, %v1899
        %1901 = vmatmul.bf16.gmra.mxu0 %v1652
        %v1902 = vpop.f32.mrf.mxu0
        %v1903 = vadd.f32 0.0, %v1902
        %v1904 = vpop.f32.mrf.mxu0
        %v1905 = vadd.f32 0.0, %v1904
        %1906 = vmatmul.bf16.gmra.mxu0 %v1653
        %v1907 = vpop.f32.mrf.mxu0
        %v1908 = vadd.f32 0.0, %v1907
        %v1909 = vpop.f32.mrf.mxu0
        %v1910 = vadd.f32 0.0, %v1909
        %1911 = vmatmul.bf16.gmra.mxu0 %v1654
        %v1912 = vpop.f32.mrf.mxu0
        %v1913 = vadd.f32 0.0, %v1912
        %v1914 = vpop.f32.mrf.mxu0
        %v1915 = vadd.f32 0.0, %v1914
        %1916 = vmatmul.bf16.gmra.mxu0 %v1655
        %v1917 = vpop.f32.mrf.mxu0
        %v1918 = vadd.f32 0.0, %v1917
        %v1919 = vpop.f32.mrf.mxu0
        %v1920 = vadd.f32 0.0, %v1919
        %1921 = vmatmul.bf16.gmra.mxu0 %v1656
        %v1922 = vpop.f32.mrf.mxu0
        %v1923 = vadd.f32 0.0, %v1922
        %v1924 = vpop.f32.mrf.mxu0
        %v1925 = vadd.f32 0.0, %v1924
        %1926 = vmatmul.bf16.gmra.mxu0 %v1657
        %v1927 = vpop.f32.mrf.mxu0
        %v1928 = vadd.f32 0.0, %v1927
        %v1929 = vpop.f32.mrf.mxu0
        %v1930 = vadd.f32 0.0, %v1929
        %1931 = vdwg.mxu0
        %v1932 = vmax.f32 %v1764, %v1853
        %1933 = vmax.xlane.f32.xlu0 %v1932
        %v1934 = vpop.xlane.xlu0 %1933
        %v1935 = vmax.f32 %v1766, %v1855
        %1936 = vmax.xlane.f32.xlu0 %v1935
        %v1937 = vpop.xlane.xlu0 %1936
        %v1938 = vmax.f32 %v1769, %v1858
        %1939 = vmax.xlane.f32.xlu0 %v1938
        %v1940 = vpop.xlane.xlu0 %1939
        %v1941 = vmax.f32 %v1771, %v1860
        %1942 = vmax.xlane.f32.xlu0 %v1941
        %v1943 = vpop.xlane.xlu0 %1942
        %v1944 = vmax.f32 %v1774, %v1863
        %1945 = vmax.xlane.f32.xlu0 %v1944
        %v1946 = vpop.xlane.xlu0 %1945
        %v1947 = vmax.f32 %v1776, %v1865
        %1948 = vmax.xlane.f32.xlu0 %v1947
        %v1949 = vpop.xlane.xlu0 %1948
        %v1950 = vmax.f32 %v1779, %v1868
        %1951 = vmax.xlane.f32.xlu0 %v1950
        %v1952 = vpop.xlane.xlu0 %1951
        %v1953 = vmax.f32 %v1781, %v1870
        %1954 = vmax.xlane.f32.xlu0 %v1953
        %v1955 = vpop.xlane.xlu0 %1954
        %v1956 = vmax.f32 %v1784, %v1873
        %1957 = vmax.xlane.f32.xlu0 %v1956
        %v1958 = vpop.xlane.xlu0 %1957
        %v1959 = vmax.f32 %v1786, %v1875
        %1960 = vmax.xlane.f32.xlu0 %v1959
        %v1961 = vpop.xlane.xlu0 %1960
        %v1962 = vmax.f32 %v1789, %v1878
        %1963 = vmax.xlane.f32.xlu0 %v1962
        %v1964 = vpop.xlane.xlu0 %1963
        %v1965 = vmax.f32 %v1791, %v1880
        %1966 = vmax.xlane.f32.xlu0 %v1965
        %v1967 = vpop.xlane.xlu0 %1966
        %v1968 = vmax.f32 %v1794, %v1883
        %1969 = vmax.xlane.f32.xlu0 %v1968
        %v1970 = vpop.xlane.xlu0 %1969
        %v1971 = vmax.f32 %v1796, %v1885
        %1972 = vmax.xlane.f32.xlu0 %v1971
        %v1973 = vpop.xlane.xlu0 %1972
        %v1974 = vmax.f32 %v1799, %v1888
        %1975 = vmax.xlane.f32.xlu0 %v1974
        %v1976 = vpop.xlane.xlu0 %1975
        %v1977 = vmax.f32 %v1801, %v1890
        %1978 = vmax.xlane.f32.xlu0 %v1977
        %v1979 = vpop.xlane.xlu0 %1978
        %v1980 = vmax.f32 %v1804, %v1893
        %1981 = vmax.xlane.f32.xlu0 %v1980
        %v1982 = vpop.xlane.xlu0 %1981
        %v1983 = vmax.f32 %v1806, %v1895
        %1984 = vmax.xlane.f32.xlu0 %v1983
        %v1985 = vpop.xlane.xlu0 %1984
        %v1986 = vmax.f32 %v1809, %v1898
        %1987 = vmax.xlane.f32.xlu0 %v1986
        %v1988 = vpop.xlane.xlu0 %1987
        %v1989 = vmax.f32 %v1811, %v1900
        %1990 = vmax.xlane.f32.xlu0 %v1989
        %v1991 = vpop.xlane.xlu0 %1990
        %v1992 = vmax.f32 %v1814, %v1903
        %1993 = vmax.xlane.f32.xlu0 %v1992
        %v1994 = vpop.xlane.xlu0 %1993
        %v1995 = vmax.f32 %v1816, %v1905
        %1996 = vmax.xlane.f32.xlu0 %v1995
        %v1997 = vpop.xlane.xlu0 %1996
        %v1998 = vmax.f32 %v1819, %v1908
        %1999 = vmax.xlane.f32.xlu0 %v1998
        %v2000 = vpop.xlane.xlu0 %1999
        %v2001 = vmax.f32 %v1821, %v1910
        %2002 = vmax.xlane.f32.xlu0 %v2001
        %v2003 = vpop.xlane.xlu0 %2002
        %v2004 = vmax.f32 %v1824, %v1913
        %2005 = vmax.xlane.f32.xlu0 %v2004
        %v2006 = vpop.xlane.xlu0 %2005
        %v2007 = vmax.f32 %v1826, %v1915
        %2008 = vmax.xlane.f32.xlu0 %v2007
        %v2009 = vpop.xlane.xlu0 %2008
        %v2010 = vmax.f32 %v1829, %v1918
        %2011 = vmax.xlane.f32.xlu0 %v2010
        %v2012 = vpop.xlane.xlu0 %2011
        %v2013 = vmax.f32 %v1831, %v1920
        %2014 = vmax.xlane.f32.xlu0 %v2013
        %v2015 = vpop.xlane.xlu0 %2014
        %v2016 = vmax.f32 %v1834, %v1923
        %2017 = vmax.xlane.f32.xlu0 %v2016
        %v2018 = vpop.xlane.xlu0 %2017
        %v2019 = vmax.f32 %v1836, %v1925
        %2020 = vmax.xlane.f32.xlu0 %v2019
        %v2021 = vpop.xlane.xlu0 %2020
        %v2022 = vmax.f32 %v1839, %v1928
        %2023 = vmax.xlane.f32.xlu0 %v2022
        %v2024 = vpop.xlane.xlu0 %2023
        %v2025 = vmax.f32 %v1841, %v1930
        %2026 = vmax.xlane.f32.xlu0 %v2025
        %v2027 = vpop.xlane.xlu0 %2026
        %v2028 = vsub.f32 %v1764, %v1934
        %v2029 = vsub.f32 %v1853, %v1934
        %v2030 = vsub.f32 %v1766, %v1937
        %v2031 = vsub.f32 %v1855, %v1937
        %v2032 = vsub.f32 %v1769, %v1940
        %v2033 = vsub.f32 %v1858, %v1940
        %v2034 = vsub.f32 %v1771, %v1943
        %v2035 = vsub.f32 %v1860, %v1943
        %v2036 = vsub.f32 %v1774, %v1946
        %v2037 = vsub.f32 %v1863, %v1946
        %v2038 = vsub.f32 %v1776, %v1949
        %v2039 = vsub.f32 %v1865, %v1949
        %v2040 = vsub.f32 %v1779, %v1952
        %v2041 = vsub.f32 %v1868, %v1952
        %v2042 = vsub.f32 %v1781, %v1955
        %v2043 = vsub.f32 %v1870, %v1955
        %v2044 = vsub.f32 %v1784, %v1958
        %v2045 = vsub.f32 %v1873, %v1958
        %v2046 = vsub.f32 %v1786, %v1961
        %v2047 = vsub.f32 %v1875, %v1961
        %v2048 = vsub.f32 %v1789, %v1964
        %v2049 = vsub.f32 %v1878, %v1964
        %v2050 = vsub.f32 %v1791, %v1967
        %v2051 = vsub.f32 %v1880, %v1967
        %v2052 = vsub.f32 %v1794, %v1970
        %v2053 = vsub.f32 %v1883, %v1970
        %v2054 = vsub.f32 %v1796, %v1973
        %v2055 = vsub.f32 %v1885, %v1973
        %v2056 = vsub.f32 %v1799, %v1976
        %v2057 = vsub.f32 %v1888, %v1976
        %v2058 = vsub.f32 %v1801, %v1979
        %v2059 = vsub.f32 %v1890, %v1979
        %v2060 = vsub.f32 %v1804, %v1982
        %v2061 = vsub.f32 %v1893, %v1982
        %v2062 = vsub.f32 %v1806, %v1985
        %v2063 = vsub.f32 %v1895, %v1985
        %v2064 = vsub.f32 %v1809, %v1988
        %v2065 = vsub.f32 %v1898, %v1988
        %v2066 = vsub.f32 %v1811, %v1991
        %v2067 = vsub.f32 %v1900, %v1991
        %v2068 = vsub.f32 %v1814, %v1994
        %v2069 = vsub.f32 %v1903, %v1994
        %v2070 = vsub.f32 %v1816, %v1997
        %v2071 = vsub.f32 %v1905, %v1997
        %v2072 = vsub.f32 %v1819, %v2000
        %v2073 = vsub.f32 %v1908, %v2000
        %v2074 = vsub.f32 %v1821, %v2003
        %v2075 = vsub.f32 %v1910, %v2003
        %v2076 = vsub.f32 %v1824, %v2006
        %v2077 = vsub.f32 %v1913, %v2006
        %v2078 = vsub.f32 %v1826, %v2009
        %v2079 = vsub.f32 %v1915, %v2009
        %v2080 = vsub.f32 %v1829, %v2012
        %v2081 = vsub.f32 %v1918, %v2012
        %v2082 = vsub.f32 %v1831, %v2015
        %v2083 = vsub.f32 %v1920, %v2015
        %v2084 = vsub.f32 %v1834, %v2018
        %v2085 = vsub.f32 %v1923, %v2018
        %v2086 = vsub.f32 %v1836, %v2021
        %v2087 = vsub.f32 %v1925, %v2021
        %v2088 = vsub.f32 %v1839, %v2024
        %v2089 = vsub.f32 %v1928, %v2024
        %v2090 = vsub.f32 %v1841, %v2027
        %v2091 = vsub.f32 %v1930, %v2027
        %v2092 = vmul.f32 %v2028, 1.442695
        %v2093 = vpow.pop %v2092
        %v2094 = vmul.f32 %v2029, 1.442695
        %v2095 = vpow.pop %v2094
        %v2096 = vmul.f32 %v2030, 1.442695
        %v2097 = vpow.pop %v2096
        %v2098 = vmul.f32 %v2031, 1.442695
        %v2099 = vpow.pop %v2098
        %v2100 = vmul.f32 %v2032, 1.442695
        %v2101 = vpow.pop %v2100
        %v2102 = vmul.f32 %v2033, 1.442695
        %v2103 = vpow.pop %v2102
        %v2104 = vmul.f32 %v2034, 1.442695
        %v2105 = vpow.pop %v2104
        %v2106 = vmul.f32 %v2035, 1.442695
        %v2107 = vpow.pop %v2106
        %v2108 = vmul.f32 %v2036, 1.442695
        %v2109 = vpow.pop %v2108
        %v2110 = vmul.f32 %v2037, 1.442695
        %v2111 = vpow.pop %v2110
        %v2112 = vmul.f32 %v2038, 1.442695
        %v2113 = vpow.pop %v2112
        %v2114 = vmul.f32 %v2039, 1.442695
        %v2115 = vpow.pop %v2114
        %v2116 = vmul.f32 %v2040, 1.442695
        %v2117 = vpow.pop %v2116
        %v2118 = vmul.f32 %v2041, 1.442695
        %v2119 = vpow.pop %v2118
        %v2120 = vmul.f32 %v2042, 1.442695
        %v2121 = vpow.pop %v2120
        %v2122 = vmul.f32 %v2043, 1.442695
        %v2123 = vpow.pop %v2122
        %v2124 = vmul.f32 %v2044, 1.442695
        %v2125 = vpow.pop %v2124
        %v2126 = vmul.f32 %v2045, 1.442695
        %v2127 = vpow.pop %v2126
        %v2128 = vmul.f32 %v2046, 1.442695
        %v2129 = vpow.pop %v2128
        %v2130 = vmul.f32 %v2047, 1.442695
        %v2131 = vpow.pop %v2130
        %v2132 = vmul.f32 %v2048, 1.442695
        %v2133 = vpow.pop %v2132
        %v2134 = vmul.f32 %v2049, 1.442695
        %v2135 = vpow.pop %v2134
        %v2136 = vmul.f32 %v2050, 1.442695
        %v2137 = vpow.pop %v2136
        %v2138 = vmul.f32 %v2051, 1.442695
        %v2139 = vpow.pop %v2138
        %v2140 = vmul.f32 %v2052, 1.442695
        %v2141 = vpow.pop %v2140
        %v2142 = vmul.f32 %v2053, 1.442695
        %v2143 = vpow.pop %v2142
        %v2144 = vmul.f32 %v2054, 1.442695
        %v2145 = vpow.pop %v2144
        %v2146 = vmul.f32 %v2055, 1.442695
        %v2147 = vpow.pop %v2146
        %v2148 = vmul.f32 %v2056, 1.442695
        %v2149 = vpow.pop %v2148
        %v2150 = vmul.f32 %v2057, 1.442695
        %v2151 = vpow.pop %v2150
        %v2152 = vmul.f32 %v2058, 1.442695
        %v2153 = vpow.pop %v2152
        %v2154 = vmul.f32 %v2059, 1.442695
        %v2155 = vpow.pop %v2154
        %v2156 = vmul.f32 %v2060, 1.442695
        %v2157 = vpow.pop %v2156
        %v2158 = vmul.f32 %v2061, 1.442695
        %v2159 = vpow.pop %v2158
        %v2160 = vmul.f32 %v2062, 1.442695
        %v2161 = vpow.pop %v2160
        %v2162 = vmul.f32 %v2063, 1.442695
        %v2163 = vpow.pop %v2162
        %v2164 = vmul.f32 %v2064, 1.442695
        %v2165 = vpow.pop %v2164
        %v2166 = vmul.f32 %v2065, 1.442695
        %v2167 = vpow.pop %v2166
        %v2168 = vmul.f32 %v2066, 1.442695
        %v2169 = vpow.pop %v2168
        %v2170 = vmul.f32 %v2067, 1.442695
        %v2171 = vpow.pop %v2170
        %v2172 = vmul.f32 %v2068, 1.442695
        %v2173 = vpow.pop %v2172
        %v2174 = vmul.f32 %v2069, 1.442695
        %v2175 = vpow.pop %v2174
        %v2176 = vmul.f32 %v2070, 1.442695
        %v2177 = vpow.pop %v2176
        %v2178 = vmul.f32 %v2071, 1.442695
        %v2179 = vpow.pop %v2178
        %v2180 = vmul.f32 %v2072, 1.442695
        %v2181 = vpow.pop %v2180
        %v2182 = vmul.f32 %v2073, 1.442695
        %v2183 = vpow.pop %v2182
        %v2184 = vmul.f32 %v2074, 1.442695
        %v2185 = vpow.pop %v2184
        %v2186 = vmul.f32 %v2075, 1.442695
        %v2187 = vpow.pop %v2186
        %v2188 = vmul.f32 %v2076, 1.442695
        %v2189 = vpow.pop %v2188
        %v2190 = vmul.f32 %v2077, 1.442695
        %v2191 = vpow.pop %v2190
        %v2192 = vmul.f32 %v2078, 1.442695
        %v2193 = vpow.pop %v2192
        %v2194 = vmul.f32 %v2079, 1.442695
        %v2195 = vpow.pop %v2194
        %v2196 = vmul.f32 %v2080, 1.442695
        %v2197 = vpow.pop %v2196
        %v2198 = vmul.f32 %v2081, 1.442695
        %v2199 = vpow.pop %v2198
        %v2200 = vmul.f32 %v2082, 1.442695
        %v2201 = vpow.pop %v2200
        %v2202 = vmul.f32 %v2083, 1.442695
        %v2203 = vpow.pop %v2202
        %v2204 = vmul.f32 %v2084, 1.442695
        %v2205 = vpow.pop %v2204
        %v2206 = vmul.f32 %v2085, 1.442695
        %v2207 = vpow.pop %v2206
        %v2208 = vmul.f32 %v2086, 1.442695
        %v2209 = vpow.pop %v2208
        %v2210 = vmul.f32 %v2087, 1.442695
        %v2211 = vpow.pop %v2210
        %v2212 = vmul.f32 %v2088, 1.442695
        %v2213 = vpow.pop %v2212
        %v2214 = vmul.f32 %v2089, 1.442695
        %v2215 = vpow.pop %v2214
        %v2216 = vmul.f32 %v2090, 1.442695
        %v2217 = vpow.pop %v2216
        %v2218 = vmul.f32 %v2091, 1.442695
        %v2219 = vpow.pop %v2218
        %v2220 = vadd.f32 %v2093, %v2095
        %2221 = vadd.xlane.f32.xlu0 %v2220
        %v2222 = vpop.xlane.xlu0 %2221
        %v2223 = vadd.f32 %v2097, %v2099
        %2224 = vadd.xlane.f32.xlu0 %v2223
        %v2225 = vpop.xlane.xlu0 %2224
        %v2226 = vadd.f32 %v2101, %v2103
        %2227 = vadd.xlane.f32.xlu0 %v2226
        %v2228 = vpop.xlane.xlu0 %2227
        %v2229 = vadd.f32 %v2105, %v2107
        %2230 = vadd.xlane.f32.xlu0 %v2229
        %v2231 = vpop.xlane.xlu0 %2230
        %v2232 = vadd.f32 %v2109, %v2111
        %2233 = vadd.xlane.f32.xlu0 %v2232
        %v2234 = vpop.xlane.xlu0 %2233
        %v2235 = vadd.f32 %v2113, %v2115
        %2236 = vadd.xlane.f32.xlu0 %v2235
        %v2237 = vpop.xlane.xlu0 %2236
        %v2238 = vadd.f32 %v2117, %v2119
        %2239 = vadd.xlane.f32.xlu0 %v2238
        %v2240 = vpop.xlane.xlu0 %2239
        %v2241 = vadd.f32 %v2121, %v2123
        %2242 = vadd.xlane.f32.xlu0 %v2241
        %v2243 = vpop.xlane.xlu0 %2242
        %v2244 = vadd.f32 %v2125, %v2127
        %2245 = vadd.xlane.f32.xlu0 %v2244
        %v2246 = vpop.xlane.xlu0 %2245
        %v2247 = vadd.f32 %v2129, %v2131
        %2248 = vadd.xlane.f32.xlu0 %v2247
        %v2249 = vpop.xlane.xlu0 %2248
        %v2250 = vadd.f32 %v2133, %v2135
        %2251 = vadd.xlane.f32.xlu0 %v2250
        %v2252 = vpop.xlane.xlu0 %2251
        %v2253 = vadd.f32 %v2137, %v2139
        %2254 = vadd.xlane.f32.xlu0 %v2253
        %v2255 = vpop.xlane.xlu0 %2254
        %v2256 = vadd.f32 %v2141, %v2143
        %2257 = vadd.xlane.f32.xlu0 %v2256
        %v2258 = vpop.xlane.xlu0 %2257
        %v2259 = vadd.f32 %v2145, %v2147
        %2260 = vadd.xlane.f32.xlu0 %v2259
        %v2261 = vpop.xlane.xlu0 %2260
        %v2262 = vadd.f32 %v2149, %v2151
        %2263 = vadd.xlane.f32.xlu0 %v2262
        %v2264 = vpop.xlane.xlu0 %2263
        %v2265 = vadd.f32 %v2153, %v2155
        %2266 = vadd.xlane.f32.xlu0 %v2265
        %v2267 = vpop.xlane.xlu0 %2266
        %v2268 = vadd.f32 %v2157, %v2159
        %2269 = vadd.xlane.f32.xlu0 %v2268
        %v2270 = vpop.xlane.xlu0 %2269
        %v2271 = vadd.f32 %v2161, %v2163
        %2272 = vadd.xlane.f32.xlu0 %v2271
        %v2273 = vpop.xlane.xlu0 %2272
        %v2274 = vadd.f32 %v2165, %v2167
        %2275 = vadd.xlane.f32.xlu0 %v2274
        %v2276 = vpop.xlane.xlu0 %2275
        %v2277 = vadd.f32 %v2169, %v2171
        %2278 = vadd.xlane.f32.xlu0 %v2277
        %v2279 = vpop.xlane.xlu0 %2278
        %v2280 = vadd.f32 %v2173, %v2175
        %2281 = vadd.xlane.f32.xlu0 %v2280
        %v2282 = vpop.xlane.xlu0 %2281
        %v2283 = vadd.f32 %v2177, %v2179
        %2284 = vadd.xlane.f32.xlu0 %v2283
        %v2285 = vpop.xlane.xlu0 %2284
        %v2286 = vadd.f32 %v2181, %v2183
        %2287 = vadd.xlane.f32.xlu0 %v2286
        %v2288 = vpop.xlane.xlu0 %2287
        %v2289 = vadd.f32 %v2185, %v2187
        %2290 = vadd.xlane.f32.xlu0 %v2289
        %v2291 = vpop.xlane.xlu0 %2290
        %v2292 = vadd.f32 %v2189, %v2191
        %2293 = vadd.xlane.f32.xlu0 %v2292
        %v2294 = vpop.xlane.xlu0 %2293
        %v2295 = vadd.f32 %v2193, %v2195
        %2296 = vadd.xlane.f32.xlu0 %v2295
        %v2297 = vpop.xlane.xlu0 %2296
        %v2298 = vadd.f32 %v2197, %v2199
        %2299 = vadd.xlane.f32.xlu0 %v2298
        %v2300 = vpop.xlane.xlu0 %2299
        %v2301 = vadd.f32 %v2201, %v2203
        %2302 = vadd.xlane.f32.xlu0 %v2301
        %v2303 = vpop.xlane.xlu0 %2302
        %v2304 = vadd.f32 %v2205, %v2207
        %2305 = vadd.xlane.f32.xlu0 %v2304
        %v2306 = vpop.xlane.xlu0 %2305
        %v2307 = vadd.f32 %v2209, %v2211
        %2308 = vadd.xlane.f32.xlu0 %v2307
        %v2309 = vpop.xlane.xlu0 %2308
        %v2310 = vadd.f32 %v2213, %v2215
        %2311 = vadd.xlane.f32.xlu0 %v2310
        %v2312 = vpop.xlane.xlu0 %2311
        %v2313 = vadd.f32 %v2217, %v2219
        %2314 = vadd.xlane.f32.xlu0 %v2313
        %v2315 = vpop.xlane.xlu0 %2314
        %v2316 = vpack.c.bf16 %v2097, %v2093
        %v2317 = vpack.c.bf16 %v2099, %v2095
        %v2318 = vpack.c.bf16 %v2105, %v2101
        %v2319 = vpack.c.bf16 %v2107, %v2103
        %v2320 = vpack.c.bf16 %v2113, %v2109
        %v2321 = vpack.c.bf16 %v2115, %v2111
        %v2322 = vpack.c.bf16 %v2121, %v2117
        %v2323 = vpack.c.bf16 %v2123, %v2119
        %v2324 = vpack.c.bf16 %v2129, %v2125
        %v2325 = vpack.c.bf16 %v2131, %v2127
        %v2326 = vpack.c.bf16 %v2137, %v2133
        %v2327 = vpack.c.bf16 %v2139, %v2135
        %v2328 = vpack.c.bf16 %v2145, %v2141
        %v2329 = vpack.c.bf16 %v2147, %v2143
        %v2330 = vpack.c.bf16 %v2153, %v2149
        %v2331 = vpack.c.bf16 %v2155, %v2151
        %v2332 = vpack.c.bf16 %v2161, %v2157
        %v2333 = vpack.c.bf16 %v2163, %v2159
        %v2334 = vpack.c.bf16 %v2169, %v2165
        %v2335 = vpack.c.bf16 %v2171, %v2167
        %v2336 = vpack.c.bf16 %v2177, %v2173
        %v2337 = vpack.c.bf16 %v2179, %v2175
        %v2338 = vpack.c.bf16 %v2185, %v2181
        %v2339 = vpack.c.bf16 %v2187, %v2183
        %v2340 = vpack.c.bf16 %v2193, %v2189
        %v2341 = vpack.c.bf16 %v2195, %v2191
        %v2342 = vpack.c.bf16 %v2201, %v2197
        %v2343 = vpack.c.bf16 %v2203, %v2199
        %v2344 = vpack.c.bf16 %v2209, %v2205
        %v2345 = vpack.c.bf16 %v2211, %v2207
        %v2346 = vpack.c.bf16 %v2217, %v2213
        %v2347 = vpack.c.bf16 %v2219, %v2215
        %v2348 = vld [vmem:[#allocation4] sm:$0xf]
        %v2349 = vld [vmem:[#allocation4 + $0x4] sm:$0xf]
        %v2350 = vld [vmem:[#allocation4 + $0x8] sm:$0xf]
        %v2351 = vld [vmem:[#allocation4 + $0xc] sm:$0xf]
        %v2352 = vld [vmem:[#allocation4 + $0x10] sm:$0xf]
        %v2353 = vld [vmem:[#allocation4 + $0x14] sm:$0xf]
        %v2354 = vld [vmem:[#allocation4 + $0x18] sm:$0xf]
        %v2355 = vld [vmem:[#allocation4 + $0x1c] sm:$0xf]
        %v2356 = vld [vmem:[#allocation4 + $0x20] sm:$0xf]
        %v2357 = vld [vmem:[#allocation4 + $0x24] sm:$0xf]
        %v2358 = vld [vmem:[#allocation4 + $0x28] sm:$0xf]
        %v2359 = vld [vmem:[#allocation4 + $0x2c] sm:$0xf]
        %v2360 = vld [vmem:[#allocation4 + $0x30] sm:$0xf]
        %v2361 = vld [vmem:[#allocation4 + $0x34] sm:$0xf]
        %v2362 = vld [vmem:[#allocation4 + $0x38] sm:$0xf]
        %v2363 = vld [vmem:[#allocation4 + $0x3c] sm:$0xf]
        %v2364 = vld [vmem:[#allocation4 + $0x40] sm:$0xf]
        %v2365 = vld [vmem:[#allocation4 + $0x44] sm:$0xf]
        %v2366 = vld [vmem:[#allocation4 + $0x48] sm:$0xf]
        %v2367 = vld [vmem:[#allocation4 + $0x4c] sm:$0xf]
        %v2368 = vld [vmem:[#allocation4 + $0x50] sm:$0xf]
        %v2369 = vld [vmem:[#allocation4 + $0x54] sm:$0xf]
        %v2370 = vld [vmem:[#allocation4 + $0x58] sm:$0xf]
        %v2371 = vld [vmem:[#allocation4 + $0x5c] sm:$0xf]
        %v2372 = vld [vmem:[#allocation4 + $0x60] sm:$0xf]
        %v2373 = vld [vmem:[#allocation4 + $0x64] sm:$0xf]
        %v2374 = vld [vmem:[#allocation4 + $0x68] sm:$0xf]
        %v2375 = vld [vmem:[#allocation4 + $0x6c] sm:$0xf]
        %v2376 = vld [vmem:[#allocation4 + $0x70] sm:$0xf]
        %v2377 = vld [vmem:[#allocation4 + $0x74] sm:$0xf]
        %v2378 = vld [vmem:[#allocation4 + $0x78] sm:$0xf]
        %v2379 = vld [vmem:[#allocation4 + $0x7c] sm:$0xf]
        %v2412 = vunpack.c.l.b16 %v2348
        %v2413 = vunpack.c.l.b16 %v2349
        %v2414 = vunpack.c.l.b16 %v2350
        %v2415 = vunpack.c.l.b16 %v2351
        %v2416 = vunpack.c.l.b16 %v2352
        %v2417 = vunpack.c.l.b16 %v2353
        %v2418 = vunpack.c.l.b16 %v2354
        %v2419 = vunpack.c.l.b16 %v2355
        %v2420 = vunpack.c.l.b16 %v2356
        %v2421 = vunpack.c.l.b16 %v2357
        %v2422 = vunpack.c.l.b16 %v2358
        %v2423 = vunpack.c.l.b16 %v2359
        %v2424 = vunpack.c.l.b16 %v2360
        %v2425 = vunpack.c.l.b16 %v2361
        %v2426 = vunpack.c.l.b16 %v2362
        %v2427 = vunpack.c.l.b16 %v2363
        %v2428 = vunpack.c.l.b16 %v2364
        %v2429 = vunpack.c.l.b16 %v2365
        %v2430 = vunpack.c.l.b16 %v2366
        %v2431 = vunpack.c.l.b16 %v2367
        %v2432 = vunpack.c.l.b16 %v2368
        %v2433 = vunpack.c.l.b16 %v2369
        %v2434 = vunpack.c.l.b16 %v2370
        %v2435 = vunpack.c.l.b16 %v2371
        %v2436 = vunpack.c.l.b16 %v2372
        %v2437 = vunpack.c.l.b16 %v2373
        %v2438 = vunpack.c.l.b16 %v2374
        %v2439 = vunpack.c.l.b16 %v2375
        %v2440 = vunpack.c.l.b16 %v2376
        %v2441 = vunpack.c.l.b16 %v2377
        %v2442 = vunpack.c.l.b16 %v2378
        %v2443 = vunpack.c.l.b16 %v2379
        %v2444 = vpack.c.b16 %v2413, %v2412
        %v2445 = vpack.c.b16 %v2415, %v2414
        %v2446 = vpack.c.b16 %v2417, %v2416
        %v2447 = vpack.c.b16 %v2419, %v2418
        %v2448 = vpack.c.b16 %v2421, %v2420
        %v2449 = vpack.c.b16 %v2423, %v2422
        %v2450 = vpack.c.b16 %v2425, %v2424
        %v2451 = vpack.c.b16 %v2427, %v2426
        %v2452 = vpack.c.b16 %v2429, %v2428
        %v2453 = vpack.c.b16 %v2431, %v2430
        %v2454 = vpack.c.b16 %v2433, %v2432
        %v2455 = vpack.c.b16 %v2435, %v2434
        %v2456 = vpack.c.b16 %v2437, %v2436
        %v2457 = vpack.c.b16 %v2439, %v2438
        %v2458 = vpack.c.b16 %v2441, %v2440
        %v2459 = vpack.c.b16 %v2443, %v2442
        %2476 = vmatpush.bf16.msra.mxu0 %v2451
        %2477 = vmatpush.bf16.msra.mxu0 %v2450
        %2478 = vmatpush.bf16.msra.mxu0 %v2449
        %2479 = vmatpush.bf16.msra.mxu0 %v2448
        %2480 = vmatpush.bf16.msra.mxu0 %v2447
        %2481 = vmatpush.bf16.msra.mxu0 %v2446
        %2482 = vmatpush.bf16.msra.mxu0 %v2445
        %2483 = vmatpush.bf16.msra.mxu0 %v2444
        %2484 = vmatmul.bf16.gmra.mxu0 %v2316
        %v2485 = vpop.f32.mrf.mxu0
        %v2486 = vadd.f32 0.0, %v2485
        %v2487 = vpop.f32.mrf.mxu0
        %v2488 = vadd.f32 0.0, %v2487
        %2489 = vmatmul.bf16.gmra.mxu0 %v2318
        %v2490 = vpop.f32.mrf.mxu0
        %v2491 = vadd.f32 0.0, %v2490
        %v2492 = vpop.f32.mrf.mxu0
        %v2493 = vadd.f32 0.0, %v2492
        %2494 = vmatmul.bf16.gmra.mxu0 %v2320
        %v2495 = vpop.f32.mrf.mxu0
        %v2496 = vadd.f32 0.0, %v2495
        %v2497 = vpop.f32.mrf.mxu0
        %v2498 = vadd.f32 0.0, %v2497
        %2499 = vmatmul.bf16.gmra.mxu0 %v2322
        %v2500 = vpop.f32.mrf.mxu0
        %v2501 = vadd.f32 0.0, %v2500
        %v2502 = vpop.f32.mrf.mxu0
        %v2503 = vadd.f32 0.0, %v2502
        %2504 = vmatmul.bf16.gmra.mxu0 %v2324
        %v2505 = vpop.f32.mrf.mxu0
        %v2506 = vadd.f32 0.0, %v2505
        %v2507 = vpop.f32.mrf.mxu0
        %v2508 = vadd.f32 0.0, %v2507
        %2509 = vmatmul.bf16.gmra.mxu0 %v2326
        %v2510 = vpop.f32.mrf.mxu0
        %v2511 = vadd.f32 0.0, %v2510
        %v2512 = vpop.f32.mrf.mxu0
        %v2513 = vadd.f32 0.0, %v2512
        %2514 = vmatmul.bf16.gmra.mxu0 %v2328
        %v2515 = vpop.f32.mrf.mxu0
        %v2516 = vadd.f32 0.0, %v2515
        %v2517 = vpop.f32.mrf.mxu0
        %v2518 = vadd.f32 0.0, %v2517
        %2519 = vmatmul.bf16.gmra.mxu0 %v2330
        %v2520 = vpop.f32.mrf.mxu0
        %v2521 = vadd.f32 0.0, %v2520
        %v2522 = vpop.f32.mrf.mxu0
        %v2523 = vadd.f32 0.0, %v2522
        %2524 = vmatmul.bf16.gmra.mxu0 %v2332
        %v2525 = vpop.f32.mrf.mxu0
        %v2526 = vadd.f32 0.0, %v2525
        %v2527 = vpop.f32.mrf.mxu0
        %v2528 = vadd.f32 0.0, %v2527
        %2529 = vmatmul.bf16.gmra.mxu0 %v2334
        %v2530 = vpop.f32.mrf.mxu0
        %v2531 = vadd.f32 0.0, %v2530
        %v2532 = vpop.f32.mrf.mxu0
        %v2533 = vadd.f32 0.0, %v2532
        %2534 = vmatmul.bf16.gmra.mxu0 %v2336
        %v2535 = vpop.f32.mrf.mxu0
        %v2536 = vadd.f32 0.0, %v2535
        %v2537 = vpop.f32.mrf.mxu0
        %v2538 = vadd.f32 0.0, %v2537
        %2539 = vmatmul.bf16.gmra.mxu0 %v2338
        %v2540 = vpop.f32.mrf.mxu0
        %v2541 = vadd.f32 0.0, %v2540
        %v2542 = vpop.f32.mrf.mxu0
        %v2543 = vadd.f32 0.0, %v2542
        %2544 = vmatmul.bf16.gmra.mxu0 %v2340
        %v2545 = vpop.f32.mrf.mxu0
        %v2546 = vadd.f32 0.0, %v2545
        %v2547 = vpop.f32.mrf.mxu0
        %v2548 = vadd.f32 0.0, %v2547
        %2549 = vmatmul.bf16.gmra.mxu0 %v2342
        %v2550 = vpop.f32.mrf.mxu0
        %v2551 = vadd.f32 0.0, %v2550
        %v2552 = vpop.f32.mrf.mxu0
        %v2553 = vadd.f32 0.0, %v2552
        %2554 = vmatmul.bf16.gmra.mxu0 %v2344
        %v2555 = vpop.f32.mrf.mxu0
        %v2556 = vadd.f32 0.0, %v2555
        %v2557 = vpop.f32.mrf.mxu0
        %v2558 = vadd.f32 0.0, %v2557
        %2559 = vmatmul.bf16.gmra.mxu0 %v2346
        %v2560 = vpop.f32.mrf.mxu0
        %v2561 = vadd.f32 0.0, %v2560
        %v2562 = vpop.f32.mrf.mxu0
        %v2563 = vadd.f32 0.0, %v2562
        %2564 = vdwg.mxu0
        %2565 = vmatpush.bf16.msra.mxu0 %v2459
        %2566 = vmatpush.bf16.msra.mxu0 %v2458
        %2567 = vmatpush.bf16.msra.mxu0 %v2457
        %2568 = vmatpush.bf16.msra.mxu0 %v2456
        %2569 = vmatpush.bf16.msra.mxu0 %v2455
        %2570 = vmatpush.bf16.msra.mxu0 %v2454
        %2571 = vmatpush.bf16.msra.mxu0 %v2453
        %2572 = vmatpush.bf16.msra.mxu0 %v2452
        %2573 = vmatmul.bf16.gmra.mxu0 %v2317
        %v2574 = vpop.f32.mrf.mxu0
        %v2575 = vadd.f32 %v2486, %v2574
        %v2576 = vpop.f32.mrf.mxu0
        %v2577 = vadd.f32 %v2488, %v2576
        %2578 = vmatmul.bf16.gmra.mxu0 %v2319
        %v2579 = vpop.f32.mrf.mxu0
        %v2580 = vadd.f32 %v2491, %v2579
        %v2581 = vpop.f32.mrf.mxu0
        %v2582 = vadd.f32 %v2493, %v2581
        %2583 = vmatmul.bf16.gmra.mxu0 %v2321
        %v2584 = vpop.f32.mrf.mxu0
        %v2585 = vadd.f32 %v2496, %v2584
        %v2586 = vpop.f32.mrf.mxu0
        %v2587 = vadd.f32 %v2498, %v2586
        %2588 = vmatmul.bf16.gmra.mxu0 %v2323
        %v2589 = vpop.f32.mrf.mxu0
        %v2590 = vadd.f32 %v2501, %v2589
        %v2591 = vpop.f32.mrf.mxu0
        %v2592 = vadd.f32 %v2503, %v2591
        %2593 = vmatmul.bf16.gmra.mxu0 %v2325
        %v2594 = vpop.f32.mrf.mxu0
        %v2595 = vadd.f32 %v2506, %v2594
        %v2596 = vpop.f32.mrf.mxu0
        %v2597 = vadd.f32 %v2508, %v2596
        %2598 = vmatmul.bf16.gmra.mxu0 %v2327
        %v2599 = vpop.f32.mrf.mxu0
        %v2600 = vadd.f32 %v2511, %v2599
        %v2601 = vpop.f32.mrf.mxu0
        %v2602 = vadd.f32 %v2513, %v2601
        %2603 = vmatmul.bf16.gmra.mxu0 %v2329
        %v2604 = vpop.f32.mrf.mxu0
        %v2605 = vadd.f32 %v2516, %v2604
        %v2606 = vpop.f32.mrf.mxu0
        %v2607 = vadd.f32 %v2518, %v2606
        %2608 = vmatmul.bf16.gmra.mxu0 %v2331
        %v2609 = vpop.f32.mrf.mxu0
        %v2610 = vadd.f32 %v2521, %v2609
        %v2611 = vpop.f32.mrf.mxu0
        %v2612 = vadd.f32 %v2523, %v2611
        %2613 = vmatmul.bf16.gmra.mxu0 %v2333
        %v2614 = vpop.f32.mrf.mxu0
        %v2615 = vadd.f32 %v2526, %v2614
        %v2616 = vpop.f32.mrf.mxu0
        %v2617 = vadd.f32 %v2528, %v2616
        %2618 = vmatmul.bf16.gmra.mxu0 %v2335
        %v2619 = vpop.f32.mrf.mxu0
        %v2620 = vadd.f32 %v2531, %v2619
        %v2621 = vpop.f32.mrf.mxu0
        %v2622 = vadd.f32 %v2533, %v2621
        %2623 = vmatmul.bf16.gmra.mxu0 %v2337
        %v2624 = vpop.f32.mrf.mxu0
        %v2625 = vadd.f32 %v2536, %v2624
        %v2626 = vpop.f32.mrf.mxu0
        %v2627 = vadd.f32 %v2538, %v2626
        %2628 = vmatmul.bf16.gmra.mxu0 %v2339
        %v2629 = vpop.f32.mrf.mxu0
        %v2630 = vadd.f32 %v2541, %v2629
        %v2631 = vpop.f32.mrf.mxu0
        %v2632 = vadd.f32 %v2543, %v2631
        %2633 = vmatmul.bf16.gmra.mxu0 %v2341
        %v2634 = vpop.f32.mrf.mxu0
        %v2635 = vadd.f32 %v2546, %v2634
        %v2636 = vpop.f32.mrf.mxu0
        %v2637 = vadd.f32 %v2548, %v2636
        %2638 = vmatmul.bf16.gmra.mxu0 %v2343
        %v2639 = vpop.f32.mrf.mxu0
        %v2640 = vadd.f32 %v2551, %v2639
        %v2641 = vpop.f32.mrf.mxu0
        %v2642 = vadd.f32 %v2553, %v2641
        %2643 = vmatmul.bf16.gmra.mxu0 %v2345
        %v2644 = vpop.f32.mrf.mxu0
        %v2645 = vadd.f32 %v2556, %v2644
        %v2646 = vpop.f32.mrf.mxu0
        %v2647 = vadd.f32 %v2558, %v2646
        %2648 = vmatmul.bf16.gmra.mxu0 %v2347
        %v2649 = vpop.f32.mrf.mxu0
        %v2650 = vadd.f32 %v2561, %v2649
        %v2651 = vpop.f32.mrf.mxu0
        %v2652 = vadd.f32 %v2563, %v2651
        %2653 = vdwg.mxu0
        %v2654 = vrcp.pop %v2222
        %v2655 = vrcp.pop %v2225
        %v2656 = vrcp.pop %v2228
        %v2657 = vrcp.pop %v2231
        %v2658 = vrcp.pop %v2234
        %v2659 = vrcp.pop %v2237
        %v2660 = vrcp.pop %v2240
        %v2661 = vrcp.pop %v2243
        %v2662 = vrcp.pop %v2246
        %v2663 = vrcp.pop %v2249
        %v2664 = vrcp.pop %v2252
        %v2665 = vrcp.pop %v2255
        %v2666 = vrcp.pop %v2258
        %v2667 = vrcp.pop %v2261
        %v2668 = vrcp.pop %v2264
        %v2669 = vrcp.pop %v2267
        %v2670 = vrcp.pop %v2270
        %v2671 = vrcp.pop %v2273
        %v2672 = vrcp.pop %v2276
        %v2673 = vrcp.pop %v2279
        %v2674 = vrcp.pop %v2282
        %v2675 = vrcp.pop %v2285
        %v2676 = vrcp.pop %v2288
        %v2677 = vrcp.pop %v2291
        %v2678 = vrcp.pop %v2294
        %v2679 = vrcp.pop %v2297
        %v2680 = vrcp.pop %v2300
        %v2681 = vrcp.pop %v2303
        %v2682 = vrcp.pop %v2306
        %v2683 = vrcp.pop %v2309
        %v2684 = vrcp.pop %v2312
        %v2685 = vrcp.pop %v2315
        %v2686 = vmul.f32 %v2575, %v2654
        %v2687 = vmul.f32 %v2577, %v2655
        %v2688 = vmul.f32 %v2580, %v2656
        %v2689 = vmul.f32 %v2582, %v2657
        %v2690 = vmul.f32 %v2585, %v2658
        %v2691 = vmul.f32 %v2587, %v2659
        %v2692 = vmul.f32 %v2590, %v2660
        %v2693 = vmul.f32 %v2592, %v2661
        %v2694 = vmul.f32 %v2595, %v2662
        %v2695 = vmul.f32 %v2597, %v2663
        %v2696 = vmul.f32 %v2600, %v2664
        %v2697 = vmul.f32 %v2602, %v2665
        %v2698 = vmul.f32 %v2605, %v2666
        %v2699 = vmul.f32 %v2607, %v2667
        %v2700 = vmul.f32 %v2610, %v2668
        %v2701 = vmul.f32 %v2612, %v2669
        %v2702 = vmul.f32 %v2615, %v2670
        %v2703 = vmul.f32 %v2617, %v2671
        %v2704 = vmul.f32 %v2620, %v2672
        %v2705 = vmul.f32 %v2622, %v2673
        %v2706 = vmul.f32 %v2625, %v2674
        %v2707 = vmul.f32 %v2627, %v2675
        %v2708 = vmul.f32 %v2630, %v2676
        %v2709 = vmul.f32 %v2632, %v2677
        %v2710 = vmul.f32 %v2635, %v2678
        %v2711 = vmul.f32 %v2637, %v2679
        %v2712 = vmul.f32 %v2640, %v2680
        %v2713 = vmul.f32 %v2642, %v2681
        %v2714 = vmul.f32 %v2645, %v2682
        %v2715 = vmul.f32 %v2647, %v2683
        %v2716 = vmul.f32 %v2650, %v2684
        %v2717 = vmul.f32 %v2652, %v2685
        %v2718 = vpack.c.bf16 %v2687, %v2686
        %v2719 = vpack.c.bf16 %v2689, %v2688
        %v2720 = vpack.c.bf16 %v2691, %v2690
        %v2721 = vpack.c.bf16 %v2693, %v2692
        %v2722 = vpack.c.bf16 %v2695, %v2694
        %v2723 = vpack.c.bf16 %v2697, %v2696
        %v2724 = vpack.c.bf16 %v2699, %v2698
        %v2725 = vpack.c.bf16 %v2701, %v2700
        %v2726 = vpack.c.bf16 %v2703, %v2702
        %v2727 = vpack.c.bf16 %v2705, %v2704
        %v2728 = vpack.c.bf16 %v2707, %v2706
        %v2729 = vpack.c.bf16 %v2709, %v2708
        %v2730 = vpack.c.bf16 %v2711, %v2710
        %v2731 = vpack.c.bf16 %v2713, %v2712
        %v2732 = vpack.c.bf16 %v2715, %v2714
        %v2733 = vpack.c.bf16 %v2717, %v2716
        %v2735 = vperm.slane %v1529, 0
        %v2753 = vunpack.c.l.b16 %v1513
        %v2754 = vunpack.c.l.b16 %v1514
        %v2755 = vunpack.c.l.b16 %v1515
        %v2756 = vunpack.c.l.b16 %v1516
        %v2757 = vunpack.c.l.b16 %v1517
        %v2758 = vunpack.c.l.b16 %v1518
        %v2759 = vunpack.c.l.b16 %v1519
        %v2760 = vunpack.c.l.b16 %v1520
        %v2761 = vunpack.c.l.b16 %v1521
        %v2762 = vunpack.c.l.b16 %v1522
        %v2763 = vunpack.c.l.b16 %v1523
        %v2764 = vunpack.c.l.b16 %v1524
        %v2765 = vunpack.c.l.b16 %v1525
        %v2766 = vunpack.c.l.b16 %v1526
        %v2767 = vunpack.c.l.b16 %v1527
        %v2768 = vunpack.c.l.b16 %v1528
        %v2769 = vpack.c.b16 %v2754, %v2753
        %v2770 = vpack.c.b16 %v2756, %v2755
        %v2771 = vpack.c.b16 %v2758, %v2757
        %v2772 = vpack.c.b16 %v2760, %v2759
        %v2773 = vpack.c.b16 %v2762, %v2761
        %v2774 = vpack.c.b16 %v2764, %v2763
        %v2775 = vpack.c.b16 %v2766, %v2765
        %v2776 = vpack.c.b16 %v2768, %v2767
        %2785 = vmatpush.bf16.msra.mxu0 %v2776
        %2786 = vmatpush.bf16.msra.mxu0 %v2775
        %2787 = vmatpush.bf16.msra.mxu0 %v2774
        %2788 = vmatpush.bf16.msra.mxu0 %v2773
        %2789 = vmatpush.bf16.msra.mxu0 %v2772
        %2790 = vmatpush.bf16.msra.mxu0 %v2771
        %2791 = vmatpush.bf16.msra.mxu0 %v2770
        %2792 = vmatpush.bf16.msra.mxu0 %v2769
        %2793 = vmatmul.bf16.gmra.mxu0 %v2718
        %v2794 = vpop.f32.mrf.mxu0
        %v2795 = vadd.f32 %v2735, %v2794
        %v2796 = vpop.f32.mrf.mxu0
        %v2797 = vadd.f32 %v2735, %v2796
        %2798 = vmatmul.bf16.gmra.mxu0 %v2719
        %v2799 = vpop.f32.mrf.mxu0
        %v2800 = vadd.f32 %v2735, %v2799
        %v2801 = vpop.f32.mrf.mxu0
        %v2802 = vadd.f32 %v2735, %v2801
        %2803 = vmatmul.bf16.gmra.mxu0 %v2720
        %v2804 = vpop.f32.mrf.mxu0
        %v2805 = vadd.f32 %v2735, %v2804
        %v2806 = vpop.f32.mrf.mxu0
        %v2807 = vadd.f32 %v2735, %v2806
        %2808 = vmatmul.bf16.gmra.mxu0 %v2721
        %v2809 = vpop.f32.mrf.mxu0
        %v2810 = vadd.f32 %v2735, %v2809
        %v2811 = vpop.f32.mrf.mxu0
        %v2812 = vadd.f32 %v2735, %v2811
        %2813 = vmatmul.bf16.gmra.mxu0 %v2722
        %v2814 = vpop.f32.mrf.mxu0
        %v2815 = vadd.f32 %v2735, %v2814
        %v2816 = vpop.f32.mrf.mxu0
        %v2817 = vadd.f32 %v2735, %v2816
        %2818 = vmatmul.bf16.gmra.mxu0 %v2723
        %v2819 = vpop.f32.mrf.mxu0
        %v2820 = vadd.f32 %v2735, %v2819
        %v2821 = vpop.f32.mrf.mxu0
        %v2822 = vadd.f32 %v2735, %v2821
        %2823 = vmatmul.bf16.gmra.mxu0 %v2724
        %v2824 = vpop.f32.mrf.mxu0
        %v2825 = vadd.f32 %v2735, %v2824
        %v2826 = vpop.f32.mrf.mxu0
        %v2827 = vadd.f32 %v2735, %v2826
        %2828 = vmatmul.bf16.gmra.mxu0 %v2725
        %v2829 = vpop.f32.mrf.mxu0
        %v2830 = vadd.f32 %v2735, %v2829
        %v2831 = vpop.f32.mrf.mxu0
        %v2832 = vadd.f32 %v2735, %v2831
        %2833 = vmatmul.bf16.gmra.mxu0 %v2726
        %v2834 = vpop.f32.mrf.mxu0
        %v2835 = vadd.f32 %v2735, %v2834
        %v2836 = vpop.f32.mrf.mxu0
        %v2837 = vadd.f32 %v2735, %v2836
        %2838 = vmatmul.bf16.gmra.mxu0 %v2727
        %v2839 = vpop.f32.mrf.mxu0
        %v2840 = vadd.f32 %v2735, %v2839
        %v2841 = vpop.f32.mrf.mxu0
        %v2842 = vadd.f32 %v2735, %v2841
        %2843 = vmatmul.bf16.gmra.mxu0 %v2728
        %v2844 = vpop.f32.mrf.mxu0
        %v2845 = vadd.f32 %v2735, %v2844
        %v2846 = vpop.f32.mrf.mxu0
        %v2847 = vadd.f32 %v2735, %v2846
        %2848 = vmatmul.bf16.gmra.mxu0 %v2729
        %v2849 = vpop.f32.mrf.mxu0
        %v2850 = vadd.f32 %v2735, %v2849
        %v2851 = vpop.f32.mrf.mxu0
        %v2852 = vadd.f32 %v2735, %v2851
        %2853 = vmatmul.bf16.gmra.mxu0 %v2730
        %v2854 = vpop.f32.mrf.mxu0
        %v2855 = vadd.f32 %v2735, %v2854
        %v2856 = vpop.f32.mrf.mxu0
        %v2857 = vadd.f32 %v2735, %v2856
        %2858 = vmatmul.bf16.gmra.mxu0 %v2731
        %v2859 = vpop.f32.mrf.mxu0
        %v2860 = vadd.f32 %v2735, %v2859
        %v2861 = vpop.f32.mrf.mxu0
        %v2862 = vadd.f32 %v2735, %v2861
        %2863 = vmatmul.bf16.gmra.mxu0 %v2732
        %v2864 = vpop.f32.mrf.mxu0
        %v2865 = vadd.f32 %v2735, %v2864
        %v2866 = vpop.f32.mrf.mxu0
        %v2867 = vadd.f32 %v2735, %v2866
        %2868 = vmatmul.bf16.gmra.mxu0 %v2733
        %v2869 = vpop.f32.mrf.mxu0
        %v2870 = vadd.f32 %v2735, %v2869
        %v2871 = vpop.f32.mrf.mxu0
        %v2872 = vadd.f32 %v2735, %v2871
        %2873 = vdwg.mxu0
        %v2874 = vld [vmem:[%s459] sm:$0xff]
        %v2875 = vld [vmem:[%s459 + $0x8] sm:$0xff]
        %v2876 = vld [vmem:[%s459 + $0x10] sm:$0xff]
        %v2877 = vld [vmem:[%s459 + $0x18] sm:$0xff]
        %v2878 = vld [vmem:[%s459 + $0x20] sm:$0xff]
        %v2879 = vld [vmem:[%s459 + $0x28] sm:$0xff]
        %v2880 = vld [vmem:[%s459 + $0x30] sm:$0xff]
        %v2881 = vld [vmem:[%s459 + $0x38] sm:$0xff]
        %v2882 = vld [vmem:[%s459 + $0x40] sm:$0xff]
        %v2883 = vld [vmem:[%s459 + $0x48] sm:$0xff]
        %v2884 = vld [vmem:[%s459 + $0x50] sm:$0xff]
        %v2885 = vld [vmem:[%s459 + $0x58] sm:$0xff]
        %v2886 = vld [vmem:[%s459 + $0x60] sm:$0xff]
        %v2887 = vld [vmem:[%s459 + $0x68] sm:$0xff]
        %v2888 = vld [vmem:[%s459 + $0x70] sm:$0xff]
        %v2889 = vld [vmem:[%s459 + $0x78] sm:$0xff]
        %v2890 = vld [vmem:[%s459 + $0x80] sm:$0xff]
        %v2891 = vld [vmem:[%s459 + $0x88] sm:$0xff]
        %v2892 = vld [vmem:[%s459 + $0x90] sm:$0xff]
        %v2893 = vld [vmem:[%s459 + $0x98] sm:$0xff]
        %v2894 = vld [vmem:[%s459 + $0xa0] sm:$0xff]
        %v2895 = vld [vmem:[%s459 + $0xa8] sm:$0xff]
        %v2896 = vld [vmem:[%s459 + $0xb0] sm:$0xff]
        %v2897 = vld [vmem:[%s459 + $0xb8] sm:$0xff]
        %v2898 = vld [vmem:[%s459 + $0xc0] sm:$0xff]
        %v2899 = vld [vmem:[%s459 + $0xc8] sm:$0xff]
        %v2900 = vld [vmem:[%s459 + $0xd0] sm:$0xff]
        %v2901 = vld [vmem:[%s459 + $0xd8] sm:$0xff]
        %v2902 = vld [vmem:[%s459 + $0xe0] sm:$0xff]
        %v2903 = vld [vmem:[%s459 + $0xe8] sm:$0xff]
        %v2904 = vld [vmem:[%s459 + $0xf0] sm:$0xff]
        %v2905 = vld [vmem:[%s459 + $0xf8] sm:$0xff]
        %v2906 = vadd.f32 %v2795, %v2874
        %v2907 = vadd.f32 %v2797, %v2875
        %v2908 = vadd.f32 %v2800, %v2876
        %v2909 = vadd.f32 %v2802, %v2877
        %v2910 = vadd.f32 %v2805, %v2878
        %v2911 = vadd.f32 %v2807, %v2879
        %v2912 = vadd.f32 %v2810, %v2880
        %v2913 = vadd.f32 %v2812, %v2881
        %v2914 = vadd.f32 %v2815, %v2882
        %v2915 = vadd.f32 %v2817, %v2883
        %v2916 = vadd.f32 %v2820, %v2884
        %v2917 = vadd.f32 %v2822, %v2885
        %v2918 = vadd.f32 %v2825, %v2886
        %v2919 = vadd.f32 %v2827, %v2887
        %v2920 = vadd.f32 %v2830, %v2888
        %v2921 = vadd.f32 %v2832, %v2889
        %v2922 = vadd.f32 %v2835, %v2890
        %v2923 = vadd.f32 %v2837, %v2891
        %v2924 = vadd.f32 %v2840, %v2892
        %v2925 = vadd.f32 %v2842, %v2893
        %v2926 = vadd.f32 %v2845, %v2894
        %v2927 = vadd.f32 %v2847, %v2895
        %v2928 = vadd.f32 %v2850, %v2896
        %v2929 = vadd.f32 %v2852, %v2897
        %v2930 = vadd.f32 %v2855, %v2898
        %v2931 = vadd.f32 %v2857, %v2899
        %v2932 = vadd.f32 %v2860, %v2900
        %v2933 = vadd.f32 %v2862, %v2901
        %v2934 = vadd.f32 %v2865, %v2902
        %v2935 = vadd.f32 %v2867, %v2903
        %v2936 = vadd.f32 %v2870, %v2904
        %v2937 = vadd.f32 %v2872, %v2905
        %2938 = vst [vmem:[%s530] sm:$0xff] %v2906
        %2939 = vst [vmem:[%s530 + $0x8] sm:$0xff] %v2907
        %2940 = vst [vmem:[%s530 + $0x10] sm:$0xff] %v2908
        %2941 = vst [vmem:[%s530 + $0x18] sm:$0xff] %v2909
        %2942 = vst [vmem:[%s530 + $0x20] sm:$0xff] %v2910
        %2943 = vst [vmem:[%s530 + $0x28] sm:$0xff] %v2911
        %2944 = vst [vmem:[%s530 + $0x30] sm:$0xff] %v2912
        %2945 = vst [vmem:[%s530 + $0x38] sm:$0xff] %v2913
        %2946 = vst [vmem:[%s530 + $0x40] sm:$0xff] %v2914
        %2947 = vst [vmem:[%s530 + $0x48] sm:$0xff] %v2915
        %2948 = vst [vmem:[%s530 + $0x50] sm:$0xff] %v2916
        %2949 = vst [vmem:[%s530 + $0x58] sm:$0xff] %v2917
        %2950 = vst [vmem:[%s530 + $0x60] sm:$0xff] %v2918
        %2951 = vst [vmem:[%s530 + $0x68] sm:$0xff] %v2919
        %2952 = vst [vmem:[%s530 + $0x70] sm:$0xff] %v2920
        %2953 = vst [vmem:[%s530 + $0x78] sm:$0xff] %v2921
        %2954 = vst [vmem:[%s530 + $0x80] sm:$0xff] %v2922
        %2955 = vst [vmem:[%s530 + $0x88] sm:$0xff] %v2923
        %2956 = vst [vmem:[%s530 + $0x90] sm:$0xff] %v2924
        %2957 = vst [vmem:[%s530 + $0x98] sm:$0xff] %v2925
        %2958 = vst [vmem:[%s530 + $0xa0] sm:$0xff] %v2926
        %2959 = vst [vmem:[%s530 + $0xa8] sm:$0xff] %v2927
        %2960 = vst [vmem:[%s530 + $0xb0] sm:$0xff] %v2928
        %2961 = vst [vmem:[%s530 + $0xb8] sm:$0xff] %v2929
        %2962 = vst [vmem:[%s530 + $0xc0] sm:$0xff] %v2930
        %2963 = vst [vmem:[%s530 + $0xc8] sm:$0xff] %v2931
        %2964 = vst [vmem:[%s530 + $0xd0] sm:$0xff] %v2932
        %2965 = vst [vmem:[%s530 + $0xd8] sm:$0xff] %v2933
        %2966 = vst [vmem:[%s530 + $0xe0] sm:$0xff] %v2934
        %2967 = vst [vmem:[%s530 + $0xe8] sm:$0xff] %v2935
        %2968 = vst [vmem:[%s530 + $0xf0] sm:$0xff] %v2936
        %2969 = vst [vmem:[%s530 + $0xf8] sm:$0xff] %v2937
        %s2970 = sand.u32 %s297, 1
        %s2971 = scalar_lea.sflag [#allocation7], %s2970
        %s2972 = sand.u32 %s297, 1
        %s2973 = smul.addr %s2972, 256
        %s2974 = scalar_lea.vmem [#allocation17], %s2973
        // Predicated region
        $region97: #{tpu_custom_call.1} parent=67 // pred_check
          %p2975 = pneg %p307
        $region98: #{tpu_custom_call.1} parent=67 // pred_check_branch
          %2977 = sbr.rel (%p2975) target = $region100
        $region99: #{tpu_custom_call.1} parent=67 // pred_region
          %2979 = vsyncadd %s2971, 0
          %s2980 = smul.addr %s32, 32
          %s2981 = smul.addr %s2980, 8
          %s2982 = scalar_lea.hbm %s12, %s2981
          %s2983 = sshll.u32 %s2974, 4
          %s2984 = int_to_ptr.vmem [resolvable:$true] %s2983
          %s2985 = sshll.u32 %s2982, 4
          %s2986 = int_to_ptr.hbm [resolvable:$true] %s2985
          %2991 = dma.vmem_to_hbm [thread:$0]  %s2984, 4096, %s2986, %s2971, 128, 128, 8
        $region100: #{tpu_custom_call.1} parent=67 // pred_fallthru
          _
      $region68: #{tpu_custom_call.1} parent=5 // pred_fallthru
        _
      %p2992 = scmp.le.s32.totalorder 2, %s27
      // Predicated region
      $region101: #{tpu_custom_call.1} parent=5 // pred_check
        %p2993 = pneg %p2992
      $region102: #{tpu_custom_call.1} parent=5 // pred_check_branch
        %2995 = sbr.rel (%p2993) target = $region104
      $region103: #{tpu_custom_call.1} parent=5 // pred_region
        %s2996 = ssub.s32 %s27, 2
        // Predicated region
        $region105: #{tpu_custom_call.1} parent=103 // pred_check
          %p2997 = pneg %p313
        $region106: #{tpu_custom_call.1} parent=103 // pred_check_branch
          %2999 = sbr.rel (%p2997) target = $region108
        $region107: #{tpu_custom_call.1} parent=103 // pred_region
          %s3000 = sand.u32 %s298, 1
          %s3001 = scalar_lea.sflag [#allocation7], %s3000
          %s3002 = sand.u32 %s298, 1
          %s3003 = smul.addr %s3002, 256
          %s3004 = scalar_lea.vmem [#allocation17], %s3003
          %3006 = dma.done %s3001, 4096
        $region108: #{tpu_custom_call.1} parent=103 // pred_fallthru
          _
      $region104: #{tpu_custom_call.1} parent=5 // pred_fallthru
        _
    $region6: #{tpu_custom_call.1} parent=1 // loop_footer
      %s31 = sadd.s32 1, %s27
    $region7: #{tpu_custom_call.1} parent=1 // loop_footer_branch
      %26 = sbr.rel target = $region3
    $region8: #{tpu_custom_call.1} parent=1 // loop_exit
      _
    %3007 = vsyncpa [#allocation6], 1
    %s3008 = scalar_lea.sflag [#allocation6], 1
    %3009 = vsyncpa %s3008, 1
    %3010 = vsyncpa [#allocation9], 1
    %3011 = vsyncpa [#allocation12], 1
    %3012 = vsyncpa [#allocation15], 1
    %3013 = vsyncpa [#allocation7], 1
    %s3014 = scalar_lea.sflag [#allocation7], 1
    %3015 = vsyncpa %s3014, 1

</llo_original>
